<compile_context>
chip_gen: v7x
topology: tpu7x:2x2x1
jax: 0.10.0
libtpu: 0.0.40
codegen_flags: <defaults>
</compile_context>

<pallas_src>
import math

import jax
import jax.numpy as jnp
from jax import lax
from jax.experimental import pallas as pl
from jax.experimental.pallas import tpu as pltpu


_COMPILER_PARAMS = pltpu.CompilerParams(
    dimension_semantics=("parallel",),
    vmem_limit_bytes=32 * 1024 * 1024,
)


def _pick_tile(m, desired):
    """Largest row tile <= desired that divides m and is a multiple of 8
    (falls back to the full extent, which is always a legal block shape)."""
    if m <= desired:
        return m
    t = (desired // 8) * 8
    while t >= 8:
        if m % t == 0:
            return t
        t -= 8
    return m


# ----------------------------------------------------------------------------
# Pallas kernels
# ----------------------------------------------------------------------------

def _conv_pool_relu_kernel(p00_ref, p01_ref, p10_ref, p11_ref, w_ref, b_ref,
                           o_ref):
    """Fused conv (GEMM over per-pooling-phase im2col patches) + 2x2 maxpool
    + bias + ReLU.  Each p*_ref block is (tile_m, K); w is (K, OC)."""
    w = w_ref[...]
    z = jnp.dot(p00_ref[...], w, preferred_element_type=jnp.float32)
    z = jnp.maximum(z, jnp.dot(p01_ref[...], w,
                               preferred_element_type=jnp.float32))
    z = jnp.maximum(z, jnp.dot(p10_ref[...], w,
                               preferred_element_type=jnp.float32))
    z = jnp.maximum(z, jnp.dot(p11_ref[...], w,
                               preferred_element_type=jnp.float32))
    o_ref[...] = jnp.maximum(z + b_ref[...], 0.0).astype(o_ref.dtype)


def _fc_head_kernel(x_ref, w1_ref, b1_ref, w2_ref, b2_ref, o_ref):
    """Fused fc1 + ReLU + fc2 + log_softmax over one tile of rows.
    log_softmax sees the full logit row (no grid over N)."""
    h = jnp.dot(x_ref[...], w1_ref[...],
                preferred_element_type=jnp.float32) + b1_ref[...]
    h = jnp.maximum(h, 0.0)
    y = jnp.dot(h, w2_ref[...],
                preferred_element_type=jnp.float32) + b2_ref[...]
    m = jnp.max(y, axis=-1, keepdims=True)
    s = y - m
    lse = jnp.log(jnp.sum(jnp.exp(s), axis=-1, keepdims=True))
    o_ref[...] = (s - lse).astype(o_ref.dtype)


# ----------------------------------------------------------------------------
# pallas_call wrappers (gridded over rows, weights kept VMEM-resident)
# ----------------------------------------------------------------------------

def conv_pool_relu(phases, w, b, *, desired_tile):
    """phases: 4 arrays (M, K) (one per 2x2-pool phase); w: (K, OC); b: (1, OC).
    Returns the pooled, ReLU'd conv output (M, OC)."""
    M, K = phases[0].shape
    OC = w.shape[1]
    tm = _pick_tile(M, desired_tile)
    p_spec = pl.BlockSpec((tm, K), lambda i: (i, 0))
    return pl.pallas_call(
        _conv_pool_relu_kernel,
        out_shape=jax.ShapeDtypeStruct((M, OC), jnp.float32),
        grid=(M // tm,),
        in_specs=[p_spec, p_spec, p_spec, p_spec,
                  pl.BlockSpec((K, OC), lambda i: (0, 0)),
                  pl.BlockSpec((1, OC), lambda i: (0, 0))],
        out_specs=pl.BlockSpec((tm, OC), lambda i: (i, 0)),
        compiler_params=_COMPILER_PARAMS,
    )(*phases, w, b)


def fc_head(x, w1, b1, w2, b2, *, desired_tile=512):
    """Fused fc1+ReLU+fc2+log_softmax.  x: (B, 800)."""
    M, K1 = x.shape
    N1 = w1.shape[1]
    N2 = w2.shape[1]
    tm = _pick_tile(M, desired_tile)
    return pl.pallas_call(
        _fc_head_kernel,
        out_shape=jax.ShapeDtypeStruct((M, N2), jnp.float32),
        grid=(M // tm,),
        in_specs=[pl.BlockSpec((tm, K1), lambda i: (i, 0)),
                  pl.BlockSpec((K1, N1), lambda i: (0, 0)),
                  pl.BlockSpec((1, N1), lambda i: (0, 0)),
                  pl.BlockSpec((N1, N2), lambda i: (0, 0)),
                  pl.BlockSpec((1, N2), lambda i: (0, 0))],
        out_specs=pl.BlockSpec((tm, N2), lambda i: (i, 0)),
        compiler_params=_COMPILER_PARAMS,
    )(x, w1, b1, w2, b2)


# ----------------------------------------------------------------------------
# XLA glue: per-pooling-phase im2col (patch extraction only; all math is in
# the Pallas kernels above)
# ----------------------------------------------------------------------------

def _pooled_phase_patches(x, k):
    """x: (B, H, W, C) NHWC.  For a valid k x k conv (stride 1) followed by a
    2x2/2 maxpool, returns the 4 im2col patch matrices (one per pooling phase
    (a, b)), each (B*PH*PW, k*k*C) with column order (kh, kw, c)."""
    B, H, W, C = x.shape
    OH, OW = H - k + 1, W - k + 1
    PH, PW = OH // 2, OW // 2
    mats = []
    for a in (0, 1):
        for b in (0, 1):
            taps = []
            for kh in range(k):
                for kw in range(k):
                    taps.append(
                        x[:,
                          a + kh:a + kh + 2 * (PH - 1) + 1:2,
                          b + kw:b + kw + 2 * (PW - 1) + 1:2,
                          :])                          # (B, PH, PW, C)
            p = jnp.stack(taps, axis=3)                # (B, PH, PW, k*k, C)
            mats.append(p.reshape(B * PH * PW, k * k * C))
    return mats, PH, PW


# ----------------------------------------------------------------------------
# Parameters
# ----------------------------------------------------------------------------

def init_params(key):
    ks = jax.random.split(key, 8)

    def u(k, shape, fan_in):
        bound = 1.0 / math.sqrt(fan_in)
        return jax.random.uniform(k, shape, jnp.float32, -bound, bound)

    return {
        "conv1_w": u(ks[0], (20, 1, 5, 5), 1 * 5 * 5),
        "conv1_b": u(ks[1], (20,), 1 * 5 * 5),
        "conv2_w": u(ks[2], (50, 20, 5, 5), 20 * 5 * 5),
        "conv2_b": u(ks[3], (50,), 20 * 5 * 5),
        "fc1_w":   u(ks[4], (256, 800), 800),
        "fc1_b":   u(ks[5], (256,), 800),
        "fc2_w":   u(ks[6], (10, 256), 256),
        "fc2_b":   u(ks[7], (10,), 256),
    }


def prepare_params(params):
    """One-time (outside jit) repack of PyTorch-layout parameters into the
    layouts the kernels consume: conv weights as (kh*kw*c, oc) patch matrices,
    fc weights pre-transposed to (K, N), and the PyTorch (C, H, W) flatten
    order folded into a row permutation of fc1's weight."""
    k = 5
    w1 = jnp.transpose(params["conv1_w"], (2, 3, 1, 0)).reshape(k * k * 1, 20)
    w2 = jnp.transpose(params["conv2_w"], (2, 3, 1, 0)).reshape(k * k * 20, 50)
    # our flattened feature order is (h, w, c); torch's view(-1, 800) is (c, h, w)
    q = jnp.arange(4 * 4 * 50)
    h, w_, c = q // 200, (q // 50) % 4, q % 50
    perm = c * 16 + h * 4 + w_
    fc1_w = params["fc1_w"].T[perm, :]          # (800, 256), rows in (h, w, c)
    fc2_w = params["fc2_w"].T                   # (256, 10)
    return {
        "w1": w1, "b1": params["conv1_b"].reshape(1, 20),
        "w2": w2, "b2": params["conv2_b"].reshape(1, 50),
        "fc1_w": fc1_w, "fc1_b": params["fc1_b"].reshape(1, 256),
        "fc2_w": fc2_w, "fc2_b": params["fc2_b"].reshape(1, 10),
    }


# ----------------------------------------------------------------------------
# Forward pass
# ----------------------------------------------------------------------------

def net_forward(x, p):
    """x: (B, 1, 28, 28) float32 -> (B, 10) log-probabilities."""
    B = x.shape[0]
    x = x.reshape(B, 28, 28, 1)                                    # NCHW (C=1) -> NHWC

    # conv1 (1->20, 5x5) + ReLU + 2x2 maxpool, fused in one gridded kernel
    ph1, PH1, PW1 = _pooled_phase_patches(x, 5)                    # 4 x (B*144, 25)
    y1 = conv_pool_relu(ph1, p["w1"], p["b1"], desired_tile=4096)  # (B*144, 20)
    y1 = y1.reshape(B, PH1, PW1, 20)                               # (B, 12, 12, 20)

    # conv2 (20->50, 5x5) + ReLU + 2x2 maxpool
    ph2, PH2, PW2 = _pooled_phase_patches(y1, 5)                   # 4 x (B*16, 500)
    y2 = conv_pool_relu(ph2, p["w2"], p["b2"], desired_tile=512)   # (B*16, 50)

    feat = y2.reshape(B, PH2 * PW2 * 50)                           # (B, 800), (h, w, c) order
    # fc1 + ReLU + fc2 + log_softmax fused in one gridded kernel
    return fc_head(feat, p["fc1_w"], p["fc1_b"], p["fc2_w"], p["fc2_b"],
                   desired_tile=512)


# ----------------------------------------------------------------------------
# Pure-JAX reference (PyTorch `Net` semantics) for validation
# ----------------------------------------------------------------------------

def reference_forward(x, params):
    hi = lax.Precision.HIGHEST

    def conv(z, w, b):
        y = lax.conv_general_dilated(
            z, w, (1, 1), "VALID",
            dimension_numbers=("NCHW", "OIHW", "NCHW"), precision=hi)
        return y + b.reshape(1, -1, 1, 1)

    def pool(z):
        return lax.reduce_window(z, -jnp.inf, lax.max,
                                 (1, 1, 2, 2), (1, 1, 2, 2), "VALID")

    y = pool(jax.nn.relu(conv(x, params["conv1_w"], params["conv1_b"])))
    y = pool(jax.nn.relu(conv(y, params["conv2_w"], params["conv2_b"])))
    y = y.reshape(x.shape[0], 4 * 4 * 50)
    y = jax.nn.relu(jnp.dot(y, params["fc1_w"].T, precision=hi) + params["fc1_b"])
    y = jnp.dot(y, params["fc2_w"].T, precision=hi) + params["fc2_b"]
    return jax.nn.log_softmax(y, axis=1)


if __name__ == "__main__":
    key = jax.random.PRNGKey(0)
    pkey, xkey = jax.random.split(key)
    params = init_params(pkey)
    kparams = prepare_params(params)          # one-time repack, outside jit

    # MNIST-shaped input (28x28 is required by the 4*4*50 flatten), batch=2
    x = jax.random.normal(xkey, (2, 1, 28, 28), dtype=jnp.float32)

    out = jax.jit(net_forward)(x, kparams)
    out = jax.block_until_ready(out)

    assert out.shape == (2, 10), out.shape
    assert out.dtype == jnp.float32
    # log_softmax rows must sum (in prob space) to ~1
    assert bool(jnp.all(jnp.abs(jnp.sum(jnp.exp(out), axis=1) - 1.0) < 1e-4))
    # match the PyTorch-semantics pure-JAX reference
    ref = jax.block_until_ready(jax.jit(reference_forward)(x, params))
    assert bool(jnp.all(jnp.abs(out - ref) < 5e-3)), \
        float(jnp.max(jnp.abs(out - ref)))
    print("KERNEL_OK")
</pallas_src>

<mosaic_0001>
module attributes {stable_mosaic.version = 11 : i64} {
  func.func @_conv_pool_relu_kernel(%arg0: i32, %arg1: memref<288x25xf32, #tpu.memory_space<vmem>>, %arg2: memref<288x25xf32, #tpu.memory_space<vmem>>, %arg3: memref<288x25xf32, #tpu.memory_space<vmem>>, %arg4: memref<288x25xf32, #tpu.memory_space<vmem>>, %arg5: memref<25x20xf32, #tpu.memory_space<vmem>>, %arg6: memref<1x20xf32, #tpu.memory_space<vmem>>, %arg7: memref<288x20xf32, #tpu.memory_space<vmem>>) attributes {dimension_semantics = [#tpu.dimension_semantics<parallel>], iteration_bounds = array<i64: 1>, scalar_prefetch = 0 : i64, scratch_operands = 0 : i64, tpu.core_type = #tpu.core_type<tc>, window_params = [{transform_indices = @transform_0, window_bounds = array<i64: 288, 25>}, {transform_indices = @transform_1, window_bounds = array<i64: 288, 25>}, {transform_indices = @transform_2, window_bounds = array<i64: 288, 25>}, {transform_indices = @transform_3, window_bounds = array<i64: 288, 25>}, {pipeline_mode = #tpu.pipeline_mode<synchronous>, transform_indices = @transform_4, window_bounds = array<i64: 25, 20>}, {pipeline_mode = #tpu.pipeline_mode<synchronous>, transform_indices = @transform_5, window_bounds = array<i64: 1, 20>}, {transform_indices = @transform_6, window_bounds = array<i64: 288, 20>}]} {
    %c0 = arith.constant 0 : index
    %c0_0 = arith.constant 0 : index
    %0 = vector.load %arg5[%c0, %c0_0] : memref<25x20xf32, #tpu.memory_space<vmem>>, vector<25x20xf32>
    %c0_1 = arith.constant 0 : index
    %c0_2 = arith.constant 0 : index
    %1 = vector.load %arg1[%c0_1, %c0_2] : memref<288x25xf32, #tpu.memory_space<vmem>>, vector<288x25xf32>
    %cst = arith.constant dense<0.000000e+00> : vector<288x20xf32>
    %2 = tpu.matmul %1, %0, %cst {dimension_numbers = #tpu.dot_dimension_numbers<[1], [0], [0], [1], [0, 0, 1, 1], [], []>} : vector<288x25xf32>, vector<25x20xf32>, vector<288x20xf32> -> vector<288x20xf32>
    %c0_3 = arith.constant 0 : index
    %c0_4 = arith.constant 0 : index
    %3 = vector.load %arg2[%c0_3, %c0_4] : memref<288x25xf32, #tpu.memory_space<vmem>>, vector<288x25xf32>
    %cst_5 = arith.constant dense<0.000000e+00> : vector<288x20xf32>
    %4 = tpu.matmul %3, %0, %cst_5 {dimension_numbers = #tpu.dot_dimension_numbers<[1], [0], [0], [1], [0, 0, 1, 1], [], []>} : vector<288x25xf32>, vector<25x20xf32>, vector<288x20xf32> -> vector<288x20xf32>
    %5 = arith.maximumf %2, %4 : vector<288x20xf32>
    %c0_6 = arith.constant 0 : index
    %c0_7 = arith.constant 0 : index
    %6 = vector.load %arg3[%c0_6, %c0_7] : memref<288x25xf32, #tpu.memory_space<vmem>>, vector<288x25xf32>
    %cst_8 = arith.constant dense<0.000000e+00> : vector<288x20xf32>
    %7 = tpu.matmul %6, %0, %cst_8 {dimension_numbers = #tpu.dot_dimension_numbers<[1], [0], [0], [1], [0, 0, 1, 1], [], []>} : vector<288x25xf32>, vector<25x20xf32>, vector<288x20xf32> -> vector<288x20xf32>
    %8 = arith.maximumf %5, %7 : vector<288x20xf32>
    %c0_9 = arith.constant 0 : index
    %c0_10 = arith.constant 0 : index
    %9 = vector.load %arg4[%c0_9, %c0_10] : memref<288x25xf32, #tpu.memory_space<vmem>>, vector<288x25xf32>
    %cst_11 = arith.constant dense<0.000000e+00> : vector<288x20xf32>
    %10 = tpu.matmul %9, %0, %cst_11 {dimension_numbers = #tpu.dot_dimension_numbers<[1], [0], [0], [1], [0, 0, 1, 1], [], []>} : vector<288x25xf32>, vector<25x20xf32>, vector<288x20xf32> -> vector<288x20xf32>
    %11 = arith.maximumf %8, %10 : vector<288x20xf32>
    %c0_12 = arith.constant 0 : index
    %c0_13 = arith.constant 0 : index
    %12 = vector.load %arg6[%c0_12, %c0_13] : memref<1x20xf32, #tpu.memory_space<vmem>>, vector<1x20xf32>
    %13 = vector.broadcast %12 : vector<1x20xf32> to vector<288x20xf32>
    %14 = arith.addf %11, %13 : vector<288x20xf32>
    %cst_14 = arith.constant 0.000000e+00 : f32
    %15 = vector.broadcast %cst_14 : f32 to vector<288x20xf32>
    %16 = arith.maximumf %14, %15 : vector<288x20xf32>
    %c0_15 = arith.constant 0 : index
    %c0_16 = arith.constant 0 : index
    %17 = vector.load %arg7[%c0_15, %c0_16] : memref<288x20xf32, #tpu.memory_space<vmem>>, vector<288x20xf32>
    tpu.vector_store %arg7[%c0_15, %c0_16], %16 {strides = array<i32>} : memref<288x20xf32, #tpu.memory_space<vmem>>, vector<288x20xf32>,
    return
  }
  func.func @transform_0(%arg0: i32) -> (i32, i32) {
    %c0_i32 = arith.constant 0 : i32
    %c0_i32_0 = arith.constant 0 : i32
    return %arg0, %c0_i32 : i32, i32
  }
  func.func @transform_1(%arg0: i32) -> (i32, i32) {
    %c0_i32 = arith.constant 0 : i32
    %c0_i32_0 = arith.constant 0 : i32
    return %arg0, %c0_i32 : i32, i32
  }
  func.func @transform_2(%arg0: i32) -> (i32, i32) {
    %c0_i32 = arith.constant 0 : i32
    %c0_i32_0 = arith.constant 0 : i32
    return %arg0, %c0_i32 : i32, i32
  }
  func.func @transform_3(%arg0: i32) -> (i32, i32) {
    %c0_i32 = arith.constant 0 : i32
    %c0_i32_0 = arith.constant 0 : i32
    return %arg0, %c0_i32 : i32, i32
  }
  func.func @transform_4(%arg0: i32) -> (i32, i32) {
    %c0_i32 = arith.constant 0 : i32
    %c0_i32_0 = arith.constant 0 : i32
    %c0_i32_1 = arith.constant 0 : i32
    return %c0_i32, %c0_i32_0 : i32, i32
  }
  func.func @transform_5(%arg0: i32) -> (i32, i32) {
    %c0_i32 = arith.constant 0 : i32
    %c0_i32_0 = arith.constant 0 : i32
    %c0_i32_1 = arith.constant 0 : i32
    return %c0_i32, %c0_i32_0 : i32, i32
  }
  func.func @transform_6(%arg0: i32) -> (i32, i32) {
    %c0_i32 = arith.constant 0 : i32
    %c0_i32_0 = arith.constant 0 : i32
    return %arg0, %c0_i32 : i32, i32
  }
}

module attributes {stable_mosaic.version = 11 : i64} {
  func.func @_conv_pool_relu_kernel(%arg0: i32, %arg1: memref<32x500xf32, #tpu.memory_space<vmem>>, %arg2: memref<32x500xf32, #tpu.memory_space<vmem>>, %arg3: memref<32x500xf32, #tpu.memory_space<vmem>>, %arg4: memref<32x500xf32, #tpu.memory_space<vmem>>, %arg5: memref<500x50xf32, #tpu.memory_space<vmem>>, %arg6: memref<1x50xf32, #tpu.memory_space<vmem>>, %arg7: memref<32x50xf32, #tpu.memory_space<vmem>>) attributes {dimension_semantics = [#tpu.dimension_semantics<parallel>], iteration_bounds = array<i64: 1>, scalar_prefetch = 0 : i64, scratch_operands = 0 : i64, tpu.core_type = #tpu.core_type<tc>, window_params = [{transform_indices = @transform_0, window_bounds = array<i64: 32, 500>}, {transform_indices = @transform_1, window_bounds = array<i64: 32, 500>}, {transform_indices = @transform_2, window_bounds = array<i64: 32, 500>}, {transform_indices = @transform_3, window_bounds = array<i64: 32, 500>}, {pipeline_mode = #tpu.pipeline_mode<synchronous>, transform_indices = @transform_4, window_bounds = array<i64: 500, 50>}, {pipeline_mode = #tpu.pipeline_mode<synchronous>, transform_indices = @transform_5, window_bounds = array<i64: 1, 50>}, {transform_indices = @transform_6, window_bounds = array<i64: 32, 50>}]} {
    %c0 = arith.constant 0 : index
    %c0_0 = arith.constant 0 : index
    %0 = vector.load %arg5[%c0, %c0_0] : memref<500x50xf32, #tpu.memory_space<vmem>>, vector<500x50xf32>
    %c0_1 = arith.constant 0 : index
    %c0_2 = arith.constant 0 : index
    %1 = vector.load %arg1[%c0_1, %c0_2] : memref<32x500xf32, #tpu.memory_space<vmem>>, vector<32x500xf32>
    %cst = arith.constant dense<0.000000e+00> : vector<32x50xf32>
    %2 = tpu.matmul %1, %0, %cst {dimension_numbers = #tpu.dot_dimension_numbers<[1], [0], [0], [1], [0, 0, 1, 1], [], []>} : vector<32x500xf32>, vector<500x50xf32>, vector<32x50xf32> -> vector<32x50xf32>
    %c0_3 = arith.constant 0 : index
    %c0_4 = arith.constant 0 : index
    %3 = vector.load %arg2[%c0_3, %c0_4] : memref<32x500xf32, #tpu.memory_space<vmem>>, vector<32x500xf32>
    %cst_5 = arith.constant dense<0.000000e+00> : vector<32x50xf32>
    %4 = tpu.matmul %3, %0, %cst_5 {dimension_numbers = #tpu.dot_dimension_numbers<[1], [0], [0], [1], [0, 0, 1, 1], [], []>} : vector<32x500xf32>, vector<500x50xf32>, vector<32x50xf32> -> vector<32x50xf32>
    %5 = arith.maximumf %2, %4 : vector<32x50xf32>
    %c0_6 = arith.constant 0 : index
    %c0_7 = arith.constant 0 : index
    %6 = vector.load %arg3[%c0_6, %c0_7] : memref<32x500xf32, #tpu.memory_space<vmem>>, vector<32x500xf32>
    %cst_8 = arith.constant dense<0.000000e+00> : vector<32x50xf32>
    %7 = tpu.matmul %6, %0, %cst_8 {dimension_numbers = #tpu.dot_dimension_numbers<[1], [0], [0], [1], [0, 0, 1, 1], [], []>} : vector<32x500xf32>, vector<500x50xf32>, vector<32x50xf32> -> vector<32x50xf32>
    %8 = arith.maximumf %5, %7 : vector<32x50xf32>
    %c0_9 = arith.constant 0 : index
    %c0_10 = arith.constant 0 : index
    %9 = vector.load %arg4[%c0_9, %c0_10] : memref<32x500xf32, #tpu.memory_space<vmem>>, vector<32x500xf32>
    %cst_11 = arith.constant dense<0.000000e+00> : vector<32x50xf32>
    %10 = tpu.matmul %9, %0, %cst_11 {dimension_numbers = #tpu.dot_dimension_numbers<[1], [0], [0], [1], [0, 0, 1, 1], [], []>} : vector<32x500xf32>, vector<500x50xf32>, vector<32x50xf32> -> vector<32x50xf32>
    %11 = arith.maximumf %8, %10 : vector<32x50xf32>
    %c0_12 = arith.constant 0 : index
    %c0_13 = arith.constant 0 : index
    %12 = vector.load %arg6[%c0_12, %c0_13] : memref<1x50xf32, #tpu.memory_space<vmem>>, vector<1x50xf32>
    %13 = vector.broadcast %12 : vector<1x50xf32> to vector<32x50xf32>
    %14 = arith.addf %11, %13 : vector<32x50xf32>
    %cst_14 = arith.constant 0.000000e+00 : f32
    %15 = vector.broadcast %cst_14 : f32 to vector<32x50xf32>
    %16 = arith.maximumf %14, %15 : vector<32x50xf32>
    %c0_15 = arith.constant 0 : index
    %c0_16 = arith.constant 0 : index
    %17 = vector.load %arg7[%c0_15, %c0_16] : memref<32x50xf32, #tpu.memory_space<vmem>>, vector<32x50xf32>
    tpu.vector_store %arg7[%c0_15, %c0_16], %16 {strides = array<i32>} : memref<32x50xf32, #tpu.memory_space<vmem>>, vector<32x50xf32>,
    return
  }
  func.func @transform_0(%arg0: i32) -> (i32, i32) {
    %c0_i32 = arith.constant 0 : i32
    %c0_i32_0 = arith.constant 0 : i32
    return %arg0, %c0_i32 : i32, i32
  }
  func.func @transform_1(%arg0: i32) -> (i32, i32) {
    %c0_i32 = arith.constant 0 : i32
    %c0_i32_0 = arith.constant 0 : i32
    return %arg0, %c0_i32 : i32, i32
  }
  func.func @transform_2(%arg0: i32) -> (i32, i32) {
    %c0_i32 = arith.constant 0 : i32
    %c0_i32_0 = arith.constant 0 : i32
    return %arg0, %c0_i32 : i32, i32
  }
  func.func @transform_3(%arg0: i32) -> (i32, i32) {
    %c0_i32 = arith.constant 0 : i32
    %c0_i32_0 = arith.constant 0 : i32
    return %arg0, %c0_i32 : i32, i32
  }
  func.func @transform_4(%arg0: i32) -> (i32, i32) {
    %c0_i32 = arith.constant 0 : i32
    %c0_i32_0 = arith.constant 0 : i32
    %c0_i32_1 = arith.constant 0 : i32
    return %c0_i32, %c0_i32_0 : i32, i32
  }
  func.func @transform_5(%arg0: i32) -> (i32, i32) {
    %c0_i32 = arith.constant 0 : i32
    %c0_i32_0 = arith.constant 0 : i32
    %c0_i32_1 = arith.constant 0 : i32
    return %c0_i32, %c0_i32_0 : i32, i32
  }
  func.func @transform_6(%arg0: i32) -> (i32, i32) {
    %c0_i32 = arith.constant 0 : i32
    %c0_i32_0 = arith.constant 0 : i32
    return %arg0, %c0_i32 : i32, i32
  }
}

module attributes {stable_mosaic.version = 11 : i64} {
  func.func @_fc_head_kernel(%arg0: i32, %arg1: memref<2x800xf32, #tpu.memory_space<vmem>>, %arg2: memref<800x256xf32, #tpu.memory_space<vmem>>, %arg3: memref<1x256xf32, #tpu.memory_space<vmem>>, %arg4: memref<256x10xf32, #tpu.memory_space<vmem>>, %arg5: memref<1x10xf32, #tpu.memory_space<vmem>>, %arg6: memref<2x10xf32, #tpu.memory_space<vmem>>) attributes {dimension_semantics = [#tpu.dimension_semantics<parallel>], iteration_bounds = array<i64: 1>, scalar_prefetch = 0 : i64, scratch_operands = 0 : i64, tpu.core_type = #tpu.core_type<tc>, window_params = [{transform_indices = @transform_0, window_bounds = array<i64: 2, 800>}, {pipeline_mode = #tpu.pipeline_mode<synchronous>, transform_indices = @transform_1, window_bounds = array<i64: 800, 256>}, {pipeline_mode = #tpu.pipeline_mode<synchronous>, transform_indices = @transform_2, window_bounds = array<i64: 1, 256>}, {pipeline_mode = #tpu.pipeline_mode<synchronous>, transform_indices = @transform_3, window_bounds = array<i64: 256, 10>}, {pipeline_mode = #tpu.pipeline_mode<synchronous>, transform_indices = @transform_4, window_bounds = array<i64: 1, 10>}, {transform_indices = @transform_5, window_bounds = array<i64: 2, 10>}]} {
    %c0 = arith.constant 0 : index
    %c0_0 = arith.constant 0 : index
    %0 = vector.load %arg1[%c0, %c0_0] : memref<2x800xf32, #tpu.memory_space<vmem>>, vector<2x800xf32>
    %c0_1 = arith.constant 0 : index
    %c0_2 = arith.constant 0 : index
    %1 = vector.load %arg2[%c0_1, %c0_2] : memref<800x256xf32, #tpu.memory_space<vmem>>, vector<800x256xf32>
    %cst = arith.constant dense<0.000000e+00> : vector<2x256xf32>
    %2 = tpu.matmul %0, %1, %cst {dimension_numbers = #tpu.dot_dimension_numbers<[1], [0], [0], [1], [0, 0, 1, 1], [], []>} : vector<2x800xf32>, vector<800x256xf32>, vector<2x256xf32> -> vector<2x256xf32>
    %c0_3 = arith.constant 0 : index
    %c0_4 = arith.constant 0 : index
    %3 = vector.load %arg3[%c0_3, %c0_4] : memref<1x256xf32, #tpu.memory_space<vmem>>, vector<1x256xf32>
    %4 = vector.broadcast %3 : vector<1x256xf32> to vector<2x256xf32>
    %5 = arith.addf %2, %4 : vector<2x256xf32>
    %cst_5 = arith.constant 0.000000e+00 : f32
    %6 = vector.broadcast %cst_5 : f32 to vector<2x256xf32>
    %7 = arith.maximumf %5, %6 : vector<2x256xf32>
    %c0_6 = arith.constant 0 : index
    %c0_7 = arith.constant 0 : index
    %8 = vector.load %arg4[%c0_6, %c0_7] : memref<256x10xf32, #tpu.memory_space<vmem>>, vector<256x10xf32>
    %cst_8 = arith.constant dense<0.000000e+00> : vector<2x10xf32>
    %9 = tpu.matmul %7, %8, %cst_8 {dimension_numbers = #tpu.dot_dimension_numbers<[1], [0], [0], [1], [0, 0, 1, 1], [], []>} : vector<2x256xf32>, vector<256x10xf32>, vector<2x10xf32> -> vector<2x10xf32>
    %c0_9 = arith.constant 0 : index
    %c0_10 = arith.constant 0 : index
    %10 = vector.load %arg5[%c0_9, %c0_10] : memref<1x10xf32, #tpu.memory_space<vmem>>, vector<1x10xf32>
    %11 = vector.broadcast %10 : vector<1x10xf32> to vector<2x10xf32>
    %12 = arith.addf %9, %11 : vector<2x10xf32>
    %cst_11 = arith.constant dense<0xFF800000> : vector<2xf32>
    %13 = vector.multi_reduction <maximumf>, %12, %cst_11 [1] : vector<2x10xf32> to vector<2xf32>
    %14 = vector.shape_cast %13 : vector<2xf32> to vector<2x1xf32>
    %15 = vector.broadcast %14 : vector<2x1xf32> to vector<2x10xf32>
    %16 = arith.subf %12, %15 : vector<2x10xf32>
    %17 = math.exp %16 : vector<2x10xf32>
    %cst_12 = arith.constant dense<0.000000e+00> : vector<2xf32>
    %18 = vector.multi_reduction <add>, %17, %cst_12 [1] : vector<2x10xf32> to vector<2xf32>
    %19 = vector.shape_cast %18 : vector<2xf32> to vector<2x1xf32>
    %20 = math.log %19 : vector<2x1xf32>
    %21 = vector.broadcast %20 : vector<2x1xf32> to vector<2x10xf32>
    %22 = arith.subf %16, %21 : vector<2x10xf32>
    %c0_13 = arith.constant 0 : index
    %c0_14 = arith.constant 0 : index
    %23 = vector.load %arg6[%c0_13, %c0_14] : memref<2x10xf32, #tpu.memory_space<vmem>>, vector<2x10xf32>
    tpu.vector_store %arg6[%c0_13, %c0_14], %22 {strides = array<i32>} : memref<2x10xf32, #tpu.memory_space<vmem>>, vector<2x10xf32>,
    return
  }
  func.func @transform_0(%arg0: i32) -> (i32, i32) {
    %c0_i32 = arith.constant 0 : i32
    %c0_i32_0 = arith.constant 0 : i32
    return %arg0, %c0_i32 : i32, i32
  }
  func.func @transform_1(%arg0: i32) -> (i32, i32) {
    %c0_i32 = arith.constant 0 : i32
    %c0_i32_0 = arith.constant 0 : i32
    %c0_i32_1 = arith.constant 0 : i32
    return %c0_i32, %c0_i32_0 : i32, i32
  }
  func.func @transform_2(%arg0: i32) -> (i32, i32) {
    %c0_i32 = arith.constant 0 : i32
    %c0_i32_0 = arith.constant 0 : i32
    %c0_i32_1 = arith.constant 0 : i32
    return %c0_i32, %c0_i32_0 : i32, i32
  }
  func.func @transform_3(%arg0: i32) -> (i32, i32) {
    %c0_i32 = arith.constant 0 : i32
    %c0_i32_0 = arith.constant 0 : i32
    %c0_i32_1 = arith.constant 0 : i32
    return %c0_i32, %c0_i32_0 : i32, i32
  }
  func.func @transform_4(%arg0: i32) -> (i32, i32) {
    %c0_i32 = arith.constant 0 : i32
    %c0_i32_0 = arith.constant 0 : i32
    %c0_i32_1 = arith.constant 0 : i32
    return %c0_i32, %c0_i32_0 : i32, i32
  }
  func.func @transform_5(%arg0: i32) -> (i32, i32) {
    %c0_i32 = arith.constant 0 : i32
    %c0_i32_0 = arith.constant 0 : i32
    return %arg0, %c0_i32 : i32, i32
  }
}

</mosaic_0001>

<llo_original>
// kernel: net_forward.3
$region0: #{net_forward.3}
  #allocation0 [shape = 'u32[]', space=smem, size = 0x4, offset = 0x4, fixed_abs, tag = 'smem constant byte address 0x4 - core index']
  #allocation1 [shape = 'u32[144,128]{1,0:T(1,128)}', space=vmem, size = 0x12000, scoped, tag = 'internal scratch']
  %s0 = inlined_call_operand.vmem [shape: f32[288,25], index: 0, kind: input, shape index: {}]
  %s1 = inlined_call_operand.vmem [shape: f32[288,25], index: 1, kind: input, shape index: {}]
  %s2 = inlined_call_operand.vmem [shape: f32[288,25], index: 2, kind: input, shape index: {}]
  %s3 = inlined_call_operand.vmem [shape: f32[288,25], index: 3, kind: input, shape index: {}]
  %s4 = inlined_call_operand.vmem [shape: f32[25,20], index: 4, kind: input, shape index: {}]
  %s5 = inlined_call_operand.vmem [shape: f32[1,20], index: 5, kind: input, shape index: {}]
  %s6 = inlined_call_operand.vmem [shape: f32[288,20], index: 6, kind: output, shape index: {}]
  %s7 = sld [smem:[#allocation0]]
  $region34: #{net_forward.3} parent=0
    _
  %s9 = ssub.s32 1, %s7
  %s10 = scalar_select 0, %s9, %s7
  // Predicated region
  $region2: #{net_forward.3} parent=0 // pred_check
    _
  $region3: #{net_forward.3} parent=0 // pred_check_branch
    %12 = sbr.rel (0) target = $region5
  $region4: #{net_forward.3} parent=0 // pred_region
    _
  $region5: #{net_forward.3} parent=0 // pred_fallthru
    _
  // Predicated region
  $region6: #{net_forward.3} parent=0 // pred_check
    _
  $region7: #{net_forward.3} parent=0 // pred_check_branch
    %14 = sbr.rel (0) target = $region9
  $region8: #{net_forward.3} parent=0 // pred_region
    _
  $region9: #{net_forward.3} parent=0 // pred_fallthru
    _
  // Predicated region
  $region10: #{net_forward.3} parent=0 // pred_check
    _
  $region11: #{net_forward.3} parent=0 // pred_check_branch
    %16 = sbr.rel (0) target = $region13
  $region12: #{net_forward.3} parent=0 // pred_region
    _
  $region13: #{net_forward.3} parent=0 // pred_fallthru
    _
  // Predicated region
  $region14: #{net_forward.3} parent=0 // pred_check
    _
  $region15: #{net_forward.3} parent=0 // pred_check_branch
    %18 = sbr.rel (0) target = $region17
  $region16: #{net_forward.3} parent=0 // pred_region
    _
  $region17: #{net_forward.3} parent=0 // pred_fallthru
    _
  // Predicated region
  $region18: #{net_forward.3} parent=0 // pred_check
    _
  $region19: #{net_forward.3} parent=0 // pred_check_branch
    %20 = sbr.rel (0) target = $region21
  $region20: #{net_forward.3} parent=0 // pred_region
    _
  $region21: #{net_forward.3} parent=0 // pred_fallthru
    _
  // Predicated region
  $region22: #{net_forward.3} parent=0 // pred_check
    _
  $region23: #{net_forward.3} parent=0 // pred_check_branch
    %22 = sbr.rel (0) target = $region25
  $region24: #{net_forward.3} parent=0 // pred_region
    _
  $region25: #{net_forward.3} parent=0 // pred_fallthru
    _
  %v23 = vld [vmem:[%s4] sm:$0xff]
  %v24 = vld [vmem:[%s4 + $0x8] sm:$0xff]
  %v25 = vld [vmem:[%s4 + $0x10] sm:$0xff]
  %v26 = vld [vmem:[%s4 + $0x18] sm:$0x1]
  %v27 = vld [vmem:[%s0] sm:$0xff]
  %v28 = vld [vmem:[%s0 + $0x8] sm:$0xff]
  %v29 = vld [vmem:[%s0 + $0x10] sm:$0xff]
  %v30 = vld [vmem:[%s0 + $0x18] sm:$0xff]
  %v31 = vld [vmem:[%s0 + $0x20] sm:$0xff]
  %v32 = vld [vmem:[%s0 + $0x28] sm:$0xff]
  %v33 = vld [vmem:[%s0 + $0x30] sm:$0xff]
  %v34 = vld [vmem:[%s0 + $0x38] sm:$0xff]
  %v35 = vld [vmem:[%s0 + $0x40] sm:$0xff]
  %v36 = vld [vmem:[%s0 + $0x48] sm:$0xff]
  %v37 = vld [vmem:[%s0 + $0x50] sm:$0xff]
  %v38 = vld [vmem:[%s0 + $0x58] sm:$0xff]
  %v39 = vld [vmem:[%s0 + $0x60] sm:$0xff]
  %v40 = vld [vmem:[%s0 + $0x68] sm:$0xff]
  %v41 = vld [vmem:[%s0 + $0x70] sm:$0xff]
  %v42 = vld [vmem:[%s0 + $0x78] sm:$0xff]
  %v43 = vld [vmem:[%s0 + $0x80] sm:$0xff]
  %v44 = vld [vmem:[%s0 + $0x88] sm:$0xff]
  %v45 = vld [vmem:[%s0 + $0x90] sm:$0xff]
  %v46 = vld [vmem:[%s0 + $0x98] sm:$0xff]
  %v47 = vld [vmem:[%s0 + $0xa0] sm:$0xff]
  %v48 = vld [vmem:[%s0 + $0xa8] sm:$0xff]
  %v49 = vld [vmem:[%s0 + $0xb0] sm:$0xff]
  %v50 = vld [vmem:[%s0 + $0xb8] sm:$0xff]
  %v51 = vld [vmem:[%s0 + $0xc0] sm:$0xff]
  %v52 = vld [vmem:[%s0 + $0xc8] sm:$0xff]
  %v53 = vld [vmem:[%s0 + $0xd0] sm:$0xff]
  %v54 = vld [vmem:[%s0 + $0xd8] sm:$0xff]
  %v55 = vld [vmem:[%s0 + $0xe0] sm:$0xff]
  %v56 = vld [vmem:[%s0 + $0xe8] sm:$0xff]
  %v57 = vld [vmem:[%s0 + $0xf0] sm:$0xff]
  %v58 = vld [vmem:[%s0 + $0xf8] sm:$0xff]
  %v59 = vld [vmem:[%s0 + $0x100] sm:$0xff]
  %v60 = vld [vmem:[%s0 + $0x108] sm:$0xff]
  %v61 = vld [vmem:[%s0 + $0x110] sm:$0xff]
  %v62 = vld [vmem:[%s0 + $0x118] sm:$0xff]
  %vm63 = vcmask 203776
  %v65 = vsel %vm63, %v27, 0
  %v68 = vsel %vm63, %v28, 0
  %v71 = vsel %vm63, %v29, 0
  %v74 = vsel %vm63, %v30, 0
  %v77 = vsel %vm63, %v31, 0
  %v80 = vsel %vm63, %v32, 0
  %v83 = vsel %vm63, %v33, 0
  %v86 = vsel %vm63, %v34, 0
  %v89 = vsel %vm63, %v35, 0
  %v92 = vsel %vm63, %v36, 0
  %v95 = vsel %vm63, %v37, 0
  %v98 = vsel %vm63, %v38, 0
  %v101 = vsel %vm63, %v39, 0
  %v104 = vsel %vm63, %v40, 0
  %v107 = vsel %vm63, %v41, 0
  %v110 = vsel %vm63, %v42, 0
  %v113 = vsel %vm63, %v43, 0
  %v116 = vsel %vm63, %v44, 0
  %v119 = vsel %vm63, %v45, 0
  %v122 = vsel %vm63, %v46, 0
  %v125 = vsel %vm63, %v47, 0
  %v128 = vsel %vm63, %v48, 0
  %v131 = vsel %vm63, %v49, 0
  %v134 = vsel %vm63, %v50, 0
  %v137 = vsel %vm63, %v51, 0
  %v140 = vsel %vm63, %v52, 0
  %v143 = vsel %vm63, %v53, 0
  %v146 = vsel %vm63, %v54, 0
  %v149 = vsel %vm63, %v55, 0
  %v152 = vsel %vm63, %v56, 0
  %v155 = vsel %vm63, %v57, 0
  %v158 = vsel %vm63, %v58, 0
  %v161 = vsel %vm63, %v59, 0
  %v164 = vsel %vm63, %v60, 0
  %v167 = vsel %vm63, %v61, 0
  %v170 = vsel %vm63, %v62, 0
  %vm172 = vcmask 1040384
  %v174 = vsel %vm172, %v26, 0
  %176 = vmatprep.subr.mxu0 0.0
  %177 = vmatpush1.msra.mxu0 %v23
  %178 = vmatprep.subr.mxu0 0.0
  %179 = vmatpush1.msra.mxu0 %v24
  %180 = vmatprep.subr.mxu0 0.0
  %181 = vmatpush1.msra.mxu0 %v25
  %182 = vmatprep.subr.mxu0 0.0
  %183 = vmatpush1.msra.mxu0 %v174
  %184 = vmatprep.subr.mxu0 0.0
  %185 = vmatpush1.msra.mxu0 0.0
  %186 = vmatprep.subr.mxu0 0.0
  %187 = vmatpush1.msra.mxu0 0.0
  %188 = vmatprep.subr.mxu0 0.0
  %189 = vmatpush1.msra.mxu0 0.0
  %190 = vmatprep.subr.mxu0 0.0
  %191 = vmatpush1.msra.mxu0 0.0
  %192 = vmatprep.subr.mxu0 0.0
  %193 = vmatpush1.msra.mxu0 0.0
  %194 = vmatprep.subr.mxu0 0.0
  %195 = vmatpush1.msra.mxu0 0.0
  %196 = vmatprep.subr.mxu0 0.0
  %197 = vmatpush1.msra.mxu0 0.0
  %198 = vmatprep.subr.mxu0 0.0
  %199 = vmatpush1.msra.mxu0 0.0
  %200 = vmatprep.subr.mxu0 0.0
  %201 = vmatpush1.msra.mxu0 0.0
  %202 = vmatprep.subr.mxu0 0.0
  %203 = vmatpush1.msra.mxu0 0.0
  %204 = vmatprep.subr.mxu0 0.0
  %205 = vmatpush1.msra.mxu0 0.0
  %206 = vmatprep.subr.mxu0 0.0
  %207 = vmatpush1.msra.mxu0 0.0
  %208 = vmatprep.subr.mxu0 0.0
  %209 = vmatpush1.msra.mxu0 0.0
  %210 = vmatprep.subr.mxu0 0.0
  %211 = vmatpush1.msra.mxu0 0.0
  %212 = vmatprep.subr.mxu0 0.0
  %213 = vmatpush1.msra.mxu0 0.0
  %214 = vmatprep.subr.mxu0 0.0
  %215 = vmatpush1.msra.mxu0 0.0
  %216 = vmatprep.subr.mxu0 0.0
  %217 = vmatpush1.msra.mxu0 0.0
  %218 = vmatprep.subr.mxu0 0.0
  %219 = vmatpush1.msra.mxu0 0.0
  %220 = vmatprep.subr.mxu0 0.0
  %221 = vmatpush1.msra.mxu0 0.0
  %222 = vmatprep.subr.mxu0 0.0
  %223 = vmatpush1.msra.mxu0 0.0
  %224 = vmatprep.subr.mxu0 0.0
  %225 = vmatpush1.msra.mxu0 0.0
  %226 = vmatprep.subr.mxu0 0.0
  %227 = vmatpush1.msra.mxu0 0.0
  %228 = vmatprep.subr.mxu0 0.0
  %229 = vmatpush1.msra.mxu0 0.0
  %230 = vmatprep.subr.mxu0 0.0
  %231 = vmatpush1.msra.mxu0 0.0
  %232 = vmatprep.subr.mxu0 0.0
  %233 = vmatpush1.msra.mxu0 0.0
  %234 = vmatprep.subr.mxu0 0.0
  %235 = vmatpush1.msra.mxu0 0.0
  %236 = vmatprep.subr.mxu0 0.0
  %237 = vmatpush1.msra.mxu0 0.0
  %238 = vmatprep.subr.mxu0 0.0
  %239 = vmatpush1.msra.mxu0 0.0
  %240 = vmatprep.mubr.f32.mxu0 0.0
  %241 = vmatmul.mubr.f32.gmra.mrb[0].mxu0 %v65
  %v242 = vpop.f32.mrb[0].mxu0
  %v243 = vadd.f32 0.0, %v242
  %v244 = vpop.f32.mrb[0].mxu0
  %245 = vmatprep.mubr.f32.mxu0 0.0
  %246 = vmatmul.mubr.f32.gmra.mrb[0].mxu0 %v68
  %v247 = vpop.f32.mrb[0].mxu0
  %v248 = vadd.f32 0.0, %v247
  %v249 = vpop.f32.mrb[0].mxu0
  %250 = vmatprep.mubr.f32.mxu0 0.0
  %251 = vmatmul.mubr.f32.gmra.mrb[0].mxu0 %v71
  %v252 = vpop.f32.mrb[0].mxu0
  %v253 = vadd.f32 0.0, %v252
  %v254 = vpop.f32.mrb[0].mxu0
  %255 = vmatprep.mubr.f32.mxu0 0.0
  %256 = vmatmul.mubr.f32.gmra.mrb[0].mxu0 %v74
  %v257 = vpop.f32.mrb[0].mxu0
  %v258 = vadd.f32 0.0, %v257
  %v259 = vpop.f32.mrb[0].mxu0
  %260 = vmatprep.mubr.f32.mxu0 0.0
  %261 = vmatmul.mubr.f32.gmra.mrb[0].mxu0 %v77
  %v262 = vpop.f32.mrb[0].mxu0
  %v263 = vadd.f32 0.0, %v262
  %v264 = vpop.f32.mrb[0].mxu0
  %265 = vmatprep.mubr.f32.mxu0 0.0
  %266 = vmatmul.mubr.f32.gmra.mrb[0].mxu0 %v80
  %v267 = vpop.f32.mrb[0].mxu0
  %v268 = vadd.f32 0.0, %v267
  %v269 = vpop.f32.mrb[0].mxu0
  %270 = vmatprep.mubr.f32.mxu0 0.0
  %271 = vmatmul.mubr.f32.gmra.mrb[0].mxu0 %v83
  %v272 = vpop.f32.mrb[0].mxu0
  %v273 = vadd.f32 0.0, %v272
  %v274 = vpop.f32.mrb[0].mxu0
  %275 = vmatprep.mubr.f32.mxu0 0.0
  %276 = vmatmul.mubr.f32.gmra.mrb[0].mxu0 %v86
  %v277 = vpop.f32.mrb[0].mxu0
  %v278 = vadd.f32 0.0, %v277
  %v279 = vpop.f32.mrb[0].mxu0
  %280 = vmatprep.mubr.f32.mxu0 0.0
  %281 = vmatmul.mubr.f32.gmra.mrb[0].mxu0 %v89
  %v282 = vpop.f32.mrb[0].mxu0
  %v283 = vadd.f32 0.0, %v282
  %v284 = vpop.f32.mrb[0].mxu0
  %285 = vmatprep.mubr.f32.mxu0 0.0
  %286 = vmatmul.mubr.f32.gmra.mrb[0].mxu0 %v92
  %v287 = vpop.f32.mrb[0].mxu0
  %v288 = vadd.f32 0.0, %v287
  %v289 = vpop.f32.mrb[0].mxu0
  %290 = vmatprep.mubr.f32.mxu0 0.0
  %291 = vmatmul.mubr.f32.gmra.mrb[0].mxu0 %v95
  %v292 = vpop.f32.mrb[0].mxu0
  %v293 = vadd.f32 0.0, %v292
  %v294 = vpop.f32.mrb[0].mxu0
  %295 = vmatprep.mubr.f32.mxu0 0.0
  %296 = vmatmul.mubr.f32.gmra.mrb[0].mxu0 %v98
  %v297 = vpop.f32.mrb[0].mxu0
  %v298 = vadd.f32 0.0, %v297
  %v299 = vpop.f32.mrb[0].mxu0
  %300 = vmatprep.mubr.f32.mxu0 0.0
  %301 = vmatmul.mubr.f32.gmra.mrb[0].mxu0 %v101
  %v302 = vpop.f32.mrb[0].mxu0
  %v303 = vadd.f32 0.0, %v302
  %v304 = vpop.f32.mrb[0].mxu0
  %305 = vmatprep.mubr.f32.mxu0 0.0
  %306 = vmatmul.mubr.f32.gmra.mrb[0].mxu0 %v104
  %v307 = vpop.f32.mrb[0].mxu0
  %v308 = vadd.f32 0.0, %v307
  %v309 = vpop.f32.mrb[0].mxu0
  %310 = vmatprep.mubr.f32.mxu0 0.0
  %311 = vmatmul.mubr.f32.gmra.mrb[0].mxu0 %v107
  %v312 = vpop.f32.mrb[0].mxu0
  %v313 = vadd.f32 0.0, %v312
  %v314 = vpop.f32.mrb[0].mxu0
  %315 = vmatprep.mubr.f32.mxu0 0.0
  %316 = vmatmul.mubr.f32.gmra.mrb[0].mxu0 %v110
  %v317 = vpop.f32.mrb[0].mxu0
  %v318 = vadd.f32 0.0, %v317
  %v319 = vpop.f32.mrb[0].mxu0
  %320 = vmatprep.mubr.f32.mxu0 0.0
  %321 = vmatmul.mubr.f32.gmra.mrb[0].mxu0 %v113
  %v322 = vpop.f32.mrb[0].mxu0
  %v323 = vadd.f32 0.0, %v322
  %v324 = vpop.f32.mrb[0].mxu0
  %325 = vmatprep.mubr.f32.mxu0 0.0
  %326 = vmatmul.mubr.f32.gmra.mrb[0].mxu0 %v116
  %v327 = vpop.f32.mrb[0].mxu0
  %v328 = vadd.f32 0.0, %v327
  %v329 = vpop.f32.mrb[0].mxu0
  %330 = vmatprep.mubr.f32.mxu0 0.0
  %331 = vmatmul.mubr.f32.gmra.mrb[0].mxu0 %v119
  %v332 = vpop.f32.mrb[0].mxu0
  %v333 = vadd.f32 0.0, %v332
  %v334 = vpop.f32.mrb[0].mxu0
  %335 = vmatprep.mubr.f32.mxu0 0.0
  %336 = vmatmul.mubr.f32.gmra.mrb[0].mxu0 %v122
  %v337 = vpop.f32.mrb[0].mxu0
  %v338 = vadd.f32 0.0, %v337
  %v339 = vpop.f32.mrb[0].mxu0
  %340 = vmatprep.mubr.f32.mxu0 0.0
  %341 = vmatmul.mubr.f32.gmra.mrb[0].mxu0 %v125
  %v342 = vpop.f32.mrb[0].mxu0
  %v343 = vadd.f32 0.0, %v342
  %v344 = vpop.f32.mrb[0].mxu0
  %345 = vmatprep.mubr.f32.mxu0 0.0
  %346 = vmatmul.mubr.f32.gmra.mrb[0].mxu0 %v128
  %v347 = vpop.f32.mrb[0].mxu0
  %v348 = vadd.f32 0.0, %v347
  %v349 = vpop.f32.mrb[0].mxu0
  %350 = vmatprep.mubr.f32.mxu0 0.0
  %351 = vmatmul.mubr.f32.gmra.mrb[0].mxu0 %v131
  %v352 = vpop.f32.mrb[0].mxu0
  %v353 = vadd.f32 0.0, %v352
  %v354 = vpop.f32.mrb[0].mxu0
  %355 = vmatprep.mubr.f32.mxu0 0.0
  %356 = vmatmul.mubr.f32.gmra.mrb[0].mxu0 %v134
  %v357 = vpop.f32.mrb[0].mxu0
  %v358 = vadd.f32 0.0, %v357
  %v359 = vpop.f32.mrb[0].mxu0
  %360 = vmatprep.mubr.f32.mxu0 0.0
  %361 = vmatmul.mubr.f32.gmra.mrb[0].mxu0 %v137
  %v362 = vpop.f32.mrb[0].mxu0
  %v363 = vadd.f32 0.0, %v362
  %v364 = vpop.f32.mrb[0].mxu0
  %365 = vmatprep.mubr.f32.mxu0 0.0
  %366 = vmatmul.mubr.f32.gmra.mrb[0].mxu0 %v140
  %v367 = vpop.f32.mrb[0].mxu0
  %v368 = vadd.f32 0.0, %v367
  %v369 = vpop.f32.mrb[0].mxu0
  %370 = vmatprep.mubr.f32.mxu0 0.0
  %371 = vmatmul.mubr.f32.gmra.mrb[0].mxu0 %v143
  %v372 = vpop.f32.mrb[0].mxu0
  %v373 = vadd.f32 0.0, %v372
  %v374 = vpop.f32.mrb[0].mxu0
  %375 = vmatprep.mubr.f32.mxu0 0.0
  %376 = vmatmul.mubr.f32.gmra.mrb[0].mxu0 %v146
  %v377 = vpop.f32.mrb[0].mxu0
  %v378 = vadd.f32 0.0, %v377
  %v379 = vpop.f32.mrb[0].mxu0
  %380 = vmatprep.mubr.f32.mxu0 0.0
  %381 = vmatmul.mubr.f32.gmra.mrb[0].mxu0 %v149
  %v382 = vpop.f32.mrb[0].mxu0
  %v383 = vadd.f32 0.0, %v382
  %v384 = vpop.f32.mrb[0].mxu0
  %385 = vmatprep.mubr.f32.mxu0 0.0
  %386 = vmatmul.mubr.f32.gmra.mrb[0].mxu0 %v152
  %v387 = vpop.f32.mrb[0].mxu0
  %v388 = vadd.f32 0.0, %v387
  %v389 = vpop.f32.mrb[0].mxu0
  %390 = vmatprep.mubr.f32.mxu0 0.0
  %391 = vmatmul.mubr.f32.gmra.mrb[0].mxu0 %v155
  %v392 = vpop.f32.mrb[0].mxu0
  %v393 = vadd.f32 0.0, %v392
  %v394 = vpop.f32.mrb[0].mxu0
  %395 = vmatprep.mubr.f32.mxu0 0.0
  %396 = vmatmul.mubr.f32.gmra.mrb[0].mxu0 %v158
  %v397 = vpop.f32.mrb[0].mxu0
  %v398 = vadd.f32 0.0, %v397
  %v399 = vpop.f32.mrb[0].mxu0
  %400 = vmatprep.mubr.f32.mxu0 0.0
  %401 = vmatmul.mubr.f32.gmra.mrb[0].mxu0 %v161
  %v402 = vpop.f32.mrb[0].mxu0
  %v403 = vadd.f32 0.0, %v402
  %v404 = vpop.f32.mrb[0].mxu0
  %405 = vmatprep.mubr.f32.mxu0 0.0
  %406 = vmatmul.mubr.f32.gmra.mrb[0].mxu0 %v164
  %v407 = vpop.f32.mrb[0].mxu0
  %v408 = vadd.f32 0.0, %v407
  %v409 = vpop.f32.mrb[0].mxu0
  %410 = vmatprep.mubr.f32.mxu0 0.0
  %411 = vmatmul.mubr.f32.gmra.mrb[0].mxu0 %v167
  %v412 = vpop.f32.mrb[0].mxu0
  %v413 = vadd.f32 0.0, %v412
  %v414 = vpop.f32.mrb[0].mxu0
  %415 = vmatprep.mubr.f32.mxu0 0.0
  %416 = vmatmul.mubr.f32.gmra.mrb[0].mxu0 %v170
  %v417 = vpop.f32.mrb[0].mxu0
  %v418 = vadd.f32 0.0, %v417
  %v419 = vpop.f32.mrb[0].mxu0
  %420 = vdwg.mxu0
  %v421 = vld [vmem:[%s1] sm:$0xff]
  %v422 = vld [vmem:[%s1 + $0x8] sm:$0xff]
  %v423 = vld [vmem:[%s1 + $0x10] sm:$0xff]
  %v424 = vld [vmem:[%s1 + $0x18] sm:$0xff]
  %v425 = vld [vmem:[%s1 + $0x20] sm:$0xff]
  %v426 = vld [vmem:[%s1 + $0x28] sm:$0xff]
  %v427 = vld [vmem:[%s1 + $0x30] sm:$0xff]
  %v428 = vld [vmem:[%s1 + $0x38] sm:$0xff]
  %v429 = vld [vmem:[%s1 + $0x40] sm:$0xff]
  %v430 = vld [vmem:[%s1 + $0x48] sm:$0xff]
  %v431 = vld [vmem:[%s1 + $0x50] sm:$0xff]
  %v432 = vld [vmem:[%s1 + $0x58] sm:$0xff]
  %v433 = vld [vmem:[%s1 + $0x60] sm:$0xff]
  %v434 = vld [vmem:[%s1 + $0x68] sm:$0xff]
  %v435 = vld [vmem:[%s1 + $0x70] sm:$0xff]
  %v436 = vld [vmem:[%s1 + $0x78] sm:$0xff]
  %v437 = vld [vmem:[%s1 + $0x80] sm:$0xff]
  %v438 = vld [vmem:[%s1 + $0x88] sm:$0xff]
  %v439 = vld [vmem:[%s1 + $0x90] sm:$0xff]
  %v440 = vld [vmem:[%s1 + $0x98] sm:$0xff]
  %v441 = vld [vmem:[%s1 + $0xa0] sm:$0xff]
  %v442 = vld [vmem:[%s1 + $0xa8] sm:$0xff]
  %v443 = vld [vmem:[%s1 + $0xb0] sm:$0xff]
  %v444 = vld [vmem:[%s1 + $0xb8] sm:$0xff]
  %v445 = vld [vmem:[%s1 + $0xc0] sm:$0xff]
  %v446 = vld [vmem:[%s1 + $0xc8] sm:$0xff]
  %v447 = vld [vmem:[%s1 + $0xd0] sm:$0xff]
  %v448 = vld [vmem:[%s1 + $0xd8] sm:$0xff]
  %v449 = vld [vmem:[%s1 + $0xe0] sm:$0xff]
  %v450 = vld [vmem:[%s1 + $0xe8] sm:$0xff]
  %v451 = vld [vmem:[%s1 + $0xf0] sm:$0xff]
  %v452 = vld [vmem:[%s1 + $0xf8] sm:$0xff]
  %v453 = vld [vmem:[%s1 + $0x100] sm:$0xff]
  %v454 = vld [vmem:[%s1 + $0x108] sm:$0xff]
  %v455 = vld [vmem:[%s1 + $0x110] sm:$0xff]
  %v456 = vld [vmem:[%s1 + $0x118] sm:$0xff]
  %v458 = vsel %vm63, %v421, 0
  %v461 = vsel %vm63, %v422, 0
  %v464 = vsel %vm63, %v423, 0
  %v467 = vsel %vm63, %v424, 0
  %v470 = vsel %vm63, %v425, 0
  %v473 = vsel %vm63, %v426, 0
  %v476 = vsel %vm63, %v427, 0
  %v479 = vsel %vm63, %v428, 0
  %v482 = vsel %vm63, %v429, 0
  %v485 = vsel %vm63, %v430, 0
  %v488 = vsel %vm63, %v431, 0
  %v491 = vsel %vm63, %v432, 0
  %v494 = vsel %vm63, %v433, 0
  %v497 = vsel %vm63, %v434, 0
  %v500 = vsel %vm63, %v435, 0
  %v503 = vsel %vm63, %v436, 0
  %v506 = vsel %vm63, %v437, 0
  %v509 = vsel %vm63, %v438, 0
  %v512 = vsel %vm63, %v439, 0
  %v515 = vsel %vm63, %v440, 0
  %v518 = vsel %vm63, %v441, 0
  %v521 = vsel %vm63, %v442, 0
  %v524 = vsel %vm63, %v443, 0
  %v527 = vsel %vm63, %v444, 0
  %v530 = vsel %vm63, %v445, 0
  %v533 = vsel %vm63, %v446, 0
  %v536 = vsel %vm63, %v447, 0
  %v539 = vsel %vm63, %v448, 0
  %v542 = vsel %vm63, %v449, 0
  %v545 = vsel %vm63, %v450, 0
  %v548 = vsel %vm63, %v451, 0
  %v551 = vsel %vm63, %v452, 0
  %v554 = vsel %vm63, %v453, 0
  %v557 = vsel %vm63, %v454, 0
  %v560 = vsel %vm63, %v455, 0
  %v563 = vsel %vm63, %v456, 0
  %565 = vmatprep.subr.mxu0 0.0
  %566 = vmatpush1.msra.mxu0 %v23
  %567 = vmatprep.subr.mxu0 0.0
  %568 = vmatpush1.msra.mxu0 %v24
  %569 = vmatprep.subr.mxu0 0.0
  %570 = vmatpush1.msra.mxu0 %v25
  %571 = vmatprep.subr.mxu0 0.0
  %572 = vmatpush1.msra.mxu0 %v174
  %573 = vmatprep.subr.mxu0 0.0
  %574 = vmatpush1.msra.mxu0 0.0
  %575 = vmatprep.subr.mxu0 0.0
  %576 = vmatpush1.msra.mxu0 0.0
  %577 = vmatprep.subr.mxu0 0.0
  %578 = vmatpush1.msra.mxu0 0.0
  %579 = vmatprep.subr.mxu0 0.0
  %580 = vmatpush1.msra.mxu0 0.0
  %581 = vmatprep.subr.mxu0 0.0
  %582 = vmatpush1.msra.mxu0 0.0
  %583 = vmatprep.subr.mxu0 0.0
  %584 = vmatpush1.msra.mxu0 0.0
  %585 = vmatprep.subr.mxu0 0.0
  %586 = vmatpush1.msra.mxu0 0.0
  %587 = vmatprep.subr.mxu0 0.0
  %588 = vmatpush1.msra.mxu0 0.0
  %589 = vmatprep.subr.mxu0 0.0
  %590 = vmatpush1.msra.mxu0 0.0
  %591 = vmatprep.subr.mxu0 0.0
  %592 = vmatpush1.msra.mxu0 0.0
  %593 = vmatprep.subr.mxu0 0.0
  %594 = vmatpush1.msra.mxu0 0.0
  %595 = vmatprep.subr.mxu0 0.0
  %596 = vmatpush1.msra.mxu0 0.0
  %597 = vmatprep.subr.mxu0 0.0
  %598 = vmatpush1.msra.mxu0 0.0
  %599 = vmatprep.subr.mxu0 0.0
  %600 = vmatpush1.msra.mxu0 0.0
  %601 = vmatprep.subr.mxu0 0.0
  %602 = vmatpush1.msra.mxu0 0.0
  %603 = vmatprep.subr.mxu0 0.0
  %604 = vmatpush1.msra.mxu0 0.0
  %605 = vmatprep.subr.mxu0 0.0
  %606 = vmatpush1.msra.mxu0 0.0
  %607 = vmatprep.subr.mxu0 0.0
  %608 = vmatpush1.msra.mxu0 0.0
  %609 = vmatprep.subr.mxu0 0.0
  %610 = vmatpush1.msra.mxu0 0.0
  %611 = vmatprep.subr.mxu0 0.0
  %612 = vmatpush1.msra.mxu0 0.0
  %613 = vmatprep.subr.mxu0 0.0
  %614 = vmatpush1.msra.mxu0 0.0
  %615 = vmatprep.subr.mxu0 0.0
  %616 = vmatpush1.msra.mxu0 0.0
  %617 = vmatprep.subr.mxu0 0.0
  %618 = vmatpush1.msra.mxu0 0.0
  %619 = vmatprep.subr.mxu0 0.0
  %620 = vmatpush1.msra.mxu0 0.0
  %621 = vmatprep.subr.mxu0 0.0
  %622 = vmatpush1.msra.mxu0 0.0
  %623 = vmatprep.subr.mxu0 0.0
  %624 = vmatpush1.msra.mxu0 0.0
  %625 = vmatprep.subr.mxu0 0.0
  %626 = vmatpush1.msra.mxu0 0.0
  %627 = vmatprep.subr.mxu0 0.0
  %628 = vmatpush1.msra.mxu0 0.0
  %629 = vmatprep.mubr.f32.mxu0 0.0
  %630 = vmatmul.mubr.f32.gmra.mrb[0].mxu0 %v458
  %v631 = vpop.f32.mrb[0].mxu0
  %v632 = vadd.f32 0.0, %v631
  %v633 = vpop.f32.mrb[0].mxu0
  %634 = vmatprep.mubr.f32.mxu0 0.0
  %635 = vmatmul.mubr.f32.gmra.mrb[0].mxu0 %v461
  %v636 = vpop.f32.mrb[0].mxu0
  %v637 = vadd.f32 0.0, %v636
  %v638 = vpop.f32.mrb[0].mxu0
  %639 = vmatprep.mubr.f32.mxu0 0.0
  %640 = vmatmul.mubr.f32.gmra.mrb[0].mxu0 %v464
  %v641 = vpop.f32.mrb[0].mxu0
  %v642 = vadd.f32 0.0, %v641
  %v643 = vpop.f32.mrb[0].mxu0
  %644 = vmatprep.mubr.f32.mxu0 0.0
  %645 = vmatmul.mubr.f32.gmra.mrb[0].mxu0 %v467
  %v646 = vpop.f32.mrb[0].mxu0
  %v647 = vadd.f32 0.0, %v646
  %v648 = vpop.f32.mrb[0].mxu0
  %649 = vmatprep.mubr.f32.mxu0 0.0
  %650 = vmatmul.mubr.f32.gmra.mrb[0].mxu0 %v470
  %v651 = vpop.f32.mrb[0].mxu0
  %v652 = vadd.f32 0.0, %v651
  %v653 = vpop.f32.mrb[0].mxu0
  %654 = vmatprep.mubr.f32.mxu0 0.0
  %655 = vmatmul.mubr.f32.gmra.mrb[0].mxu0 %v473
  %v656 = vpop.f32.mrb[0].mxu0
  %v657 = vadd.f32 0.0, %v656
  %v658 = vpop.f32.mrb[0].mxu0
  %659 = vmatprep.mubr.f32.mxu0 0.0
  %660 = vmatmul.mubr.f32.gmra.mrb[0].mxu0 %v476
  %v661 = vpop.f32.mrb[0].mxu0
  %v662 = vadd.f32 0.0, %v661
  %v663 = vpop.f32.mrb[0].mxu0
  %664 = vmatprep.mubr.f32.mxu0 0.0
  %665 = vmatmul.mubr.f32.gmra.mrb[0].mxu0 %v479
  %v666 = vpop.f32.mrb[0].mxu0
  %v667 = vadd.f32 0.0, %v666
  %v668 = vpop.f32.mrb[0].mxu0
  %669 = vmatprep.mubr.f32.mxu0 0.0
  %670 = vmatmul.mubr.f32.gmra.mrb[0].mxu0 %v482
  %v671 = vpop.f32.mrb[0].mxu0
  %v672 = vadd.f32 0.0, %v671
  %v673 = vpop.f32.mrb[0].mxu0
  %674 = vmatprep.mubr.f32.mxu0 0.0
  %675 = vmatmul.mubr.f32.gmra.mrb[0].mxu0 %v485
  %v676 = vpop.f32.mrb[0].mxu0
  %v677 = vadd.f32 0.0, %v676
  %v678 = vpop.f32.mrb[0].mxu0
  %679 = vmatprep.mubr.f32.mxu0 0.0
  %680 = vmatmul.mubr.f32.gmra.mrb[0].mxu0 %v488
  %v681 = vpop.f32.mrb[0].mxu0
  %v682 = vadd.f32 0.0, %v681
  %v683 = vpop.f32.mrb[0].mxu0
  %684 = vmatprep.mubr.f32.mxu0 0.0
  %685 = vmatmul.mubr.f32.gmra.mrb[0].mxu0 %v491
  %v686 = vpop.f32.mrb[0].mxu0
  %v687 = vadd.f32 0.0, %v686
  %v688 = vpop.f32.mrb[0].mxu0
  %689 = vmatprep.mubr.f32.mxu0 0.0
  %690 = vmatmul.mubr.f32.gmra.mrb[0].mxu0 %v494
  %v691 = vpop.f32.mrb[0].mxu0
  %v692 = vadd.f32 0.0, %v691
  %v693 = vpop.f32.mrb[0].mxu0
  %694 = vmatprep.mubr.f32.mxu0 0.0
  %695 = vmatmul.mubr.f32.gmra.mrb[0].mxu0 %v497
  %v696 = vpop.f32.mrb[0].mxu0
  %v697 = vadd.f32 0.0, %v696
  %v698 = vpop.f32.mrb[0].mxu0
  %699 = vmatprep.mubr.f32.mxu0 0.0
  %700 = vmatmul.mubr.f32.gmra.mrb[0].mxu0 %v500
  %v701 = vpop.f32.mrb[0].mxu0
  %v702 = vadd.f32 0.0, %v701
  %v703 = vpop.f32.mrb[0].mxu0
  %704 = vmatprep.mubr.f32.mxu0 0.0
  %705 = vmatmul.mubr.f32.gmra.mrb[0].mxu0 %v503
  %v706 = vpop.f32.mrb[0].mxu0
  %v707 = vadd.f32 0.0, %v706
  %v708 = vpop.f32.mrb[0].mxu0
  %709 = vmatprep.mubr.f32.mxu0 0.0
  %710 = vmatmul.mubr.f32.gmra.mrb[0].mxu0 %v506
  %v711 = vpop.f32.mrb[0].mxu0
  %v712 = vadd.f32 0.0, %v711
  %v713 = vpop.f32.mrb[0].mxu0
  %714 = vmatprep.mubr.f32.mxu0 0.0
  %715 = vmatmul.mubr.f32.gmra.mrb[0].mxu0 %v509
  %v716 = vpop.f32.mrb[0].mxu0
  %v717 = vadd.f32 0.0, %v716
  %v718 = vpop.f32.mrb[0].mxu0
  %719 = vmatprep.mubr.f32.mxu0 0.0
  %720 = vmatmul.mubr.f32.gmra.mrb[0].mxu0 %v512
  %v721 = vpop.f32.mrb[0].mxu0
  %v722 = vadd.f32 0.0, %v721
  %v723 = vpop.f32.mrb[0].mxu0
  %724 = vmatprep.mubr.f32.mxu0 0.0
  %725 = vmatmul.mubr.f32.gmra.mrb[0].mxu0 %v515
  %v726 = vpop.f32.mrb[0].mxu0
  %v727 = vadd.f32 0.0, %v726
  %v728 = vpop.f32.mrb[0].mxu0
  %729 = vmatprep.mubr.f32.mxu0 0.0
  %730 = vmatmul.mubr.f32.gmra.mrb[0].mxu0 %v518
  %v731 = vpop.f32.mrb[0].mxu0
  %v732 = vadd.f32 0.0, %v731
  %v733 = vpop.f32.mrb[0].mxu0
  %734 = vmatprep.mubr.f32.mxu0 0.0
  %735 = vmatmul.mubr.f32.gmra.mrb[0].mxu0 %v521
  %v736 = vpop.f32.mrb[0].mxu0
  %v737 = vadd.f32 0.0, %v736
  %v738 = vpop.f32.mrb[0].mxu0
  %739 = vmatprep.mubr.f32.mxu0 0.0
  %740 = vmatmul.mubr.f32.gmra.mrb[0].mxu0 %v524
  %v741 = vpop.f32.mrb[0].mxu0
  %v742 = vadd.f32 0.0, %v741
  %v743 = vpop.f32.mrb[0].mxu0
  %744 = vmatprep.mubr.f32.mxu0 0.0
  %745 = vmatmul.mubr.f32.gmra.mrb[0].mxu0 %v527
  %v746 = vpop.f32.mrb[0].mxu0
  %v747 = vadd.f32 0.0, %v746
  %v748 = vpop.f32.mrb[0].mxu0
  %749 = vmatprep.mubr.f32.mxu0 0.0
  %750 = vmatmul.mubr.f32.gmra.mrb[0].mxu0 %v530
  %v751 = vpop.f32.mrb[0].mxu0
  %v752 = vadd.f32 0.0, %v751
  %v753 = vpop.f32.mrb[0].mxu0
  %754 = vmatprep.mubr.f32.mxu0 0.0
  %755 = vmatmul.mubr.f32.gmra.mrb[0].mxu0 %v533
  %v756 = vpop.f32.mrb[0].mxu0
  %v757 = vadd.f32 0.0, %v756
  %v758 = vpop.f32.mrb[0].mxu0
  %759 = vmatprep.mubr.f32.mxu0 0.0
  %760 = vmatmul.mubr.f32.gmra.mrb[0].mxu0 %v536
  %v761 = vpop.f32.mrb[0].mxu0
  %v762 = vadd.f32 0.0, %v761
  %v763 = vpop.f32.mrb[0].mxu0
  %764 = vmatprep.mubr.f32.mxu0 0.0
  %765 = vmatmul.mubr.f32.gmra.mrb[0].mxu0 %v539
  %v766 = vpop.f32.mrb[0].mxu0
  %v767 = vadd.f32 0.0, %v766
  %v768 = vpop.f32.mrb[0].mxu0
  %769 = vmatprep.mubr.f32.mxu0 0.0
  %770 = vmatmul.mubr.f32.gmra.mrb[0].mxu0 %v542
  %v771 = vpop.f32.mrb[0].mxu0
  %v772 = vadd.f32 0.0, %v771
  %v773 = vpop.f32.mrb[0].mxu0
  %774 = vmatprep.mubr.f32.mxu0 0.0
  %775 = vmatmul.mubr.f32.gmra.mrb[0].mxu0 %v545
  %v776 = vpop.f32.mrb[0].mxu0
  %v777 = vadd.f32 0.0, %v776
  %v778 = vpop.f32.mrb[0].mxu0
  %779 = vmatprep.mubr.f32.mxu0 0.0
  %780 = vmatmul.mubr.f32.gmra.mrb[0].mxu0 %v548
  %v781 = vpop.f32.mrb[0].mxu0
  %v782 = vadd.f32 0.0, %v781
  %v783 = vpop.f32.mrb[0].mxu0
  %784 = vmatprep.mubr.f32.mxu0 0.0
  %785 = vmatmul.mubr.f32.gmra.mrb[0].mxu0 %v551
  %v786 = vpop.f32.mrb[0].mxu0
  %v787 = vadd.f32 0.0, %v786
  %v788 = vpop.f32.mrb[0].mxu0
  %789 = vmatprep.mubr.f32.mxu0 0.0
  %790 = vmatmul.mubr.f32.gmra.mrb[0].mxu0 %v554
  %v791 = vpop.f32.mrb[0].mxu0
  %v792 = vadd.f32 0.0, %v791
  %v793 = vpop.f32.mrb[0].mxu0
  %794 = vmatprep.mubr.f32.mxu0 0.0
  %795 = vmatmul.mubr.f32.gmra.mrb[0].mxu0 %v557
  %v796 = vpop.f32.mrb[0].mxu0
  %v797 = vadd.f32 0.0, %v796
  %v798 = vpop.f32.mrb[0].mxu0
  %799 = vmatprep.mubr.f32.mxu0 0.0
  %800 = vmatmul.mubr.f32.gmra.mrb[0].mxu0 %v560
  %v801 = vpop.f32.mrb[0].mxu0
  %v802 = vadd.f32 0.0, %v801
  %v803 = vpop.f32.mrb[0].mxu0
  %804 = vmatprep.mubr.f32.mxu0 0.0
  %805 = vmatmul.mubr.f32.gmra.mrb[0].mxu0 %v563
  %v806 = vpop.f32.mrb[0].mxu0
  %v807 = vadd.f32 0.0, %v806
  %v808 = vpop.f32.mrb[0].mxu0
  %809 = vdwg.mxu0
  %v810 = vmax.f32 %v243, %v632
  %v811 = vmax.f32 %v248, %v637
  %v812 = vmax.f32 %v253, %v642
  %v813 = vmax.f32 %v258, %v647
  %v814 = vmax.f32 %v263, %v652
  %v815 = vmax.f32 %v268, %v657
  %v816 = vmax.f32 %v273, %v662
  %v817 = vmax.f32 %v278, %v667
  %v818 = vmax.f32 %v283, %v672
  %v819 = vmax.f32 %v288, %v677
  %v820 = vmax.f32 %v293, %v682
  %v821 = vmax.f32 %v298, %v687
  %v822 = vmax.f32 %v303, %v692
  %v823 = vmax.f32 %v308, %v697
  %v824 = vmax.f32 %v313, %v702
  %v825 = vmax.f32 %v318, %v707
  %v826 = vmax.f32 %v323, %v712
  %v827 = vmax.f32 %v328, %v717
  %v828 = vmax.f32 %v333, %v722
  %v829 = vmax.f32 %v338, %v727
  %v830 = vmax.f32 %v343, %v732
  %v831 = vmax.f32 %v348, %v737
  %v832 = vmax.f32 %v353, %v742
  %v833 = vmax.f32 %v358, %v747
  %v834 = vmax.f32 %v363, %v752
  %v835 = vmax.f32 %v368, %v757
  %v836 = vmax.f32 %v373, %v762
  %v837 = vmax.f32 %v378, %v767
  %v838 = vmax.f32 %v383, %v772
  %v839 = vmax.f32 %v388, %v777
  %v840 = vmax.f32 %v393, %v782
  %v841 = vmax.f32 %v398, %v787
  %v842 = vmax.f32 %v403, %v792
  %v843 = vmax.f32 %v408, %v797
  %v844 = vmax.f32 %v413, %v802
  %v845 = vmax.f32 %v418, %v807
  %v846 = vld [vmem:[%s2] sm:$0xff]
  %v847 = vld [vmem:[%s2 + $0x8] sm:$0xff]
  %v848 = vld [vmem:[%s2 + $0x10] sm:$0xff]
  %v849 = vld [vmem:[%s2 + $0x18] sm:$0xff]
  %v850 = vld [vmem:[%s2 + $0x20] sm:$0xff]
  %v851 = vld [vmem:[%s2 + $0x28] sm:$0xff]
  %v852 = vld [vmem:[%s2 + $0x30] sm:$0xff]
  %v853 = vld [vmem:[%s2 + $0x38] sm:$0xff]
  %v854 = vld [vmem:[%s2 + $0x40] sm:$0xff]
  %v855 = vld [vmem:[%s2 + $0x48] sm:$0xff]
  %v856 = vld [vmem:[%s2 + $0x50] sm:$0xff]
  %v857 = vld [vmem:[%s2 + $0x58] sm:$0xff]
  %v858 = vld [vmem:[%s2 + $0x60] sm:$0xff]
  %v859 = vld [vmem:[%s2 + $0x68] sm:$0xff]
  %v860 = vld [vmem:[%s2 + $0x70] sm:$0xff]
  %v861 = vld [vmem:[%s2 + $0x78] sm:$0xff]
  %v862 = vld [vmem:[%s2 + $0x80] sm:$0xff]
  %v863 = vld [vmem:[%s2 + $0x88] sm:$0xff]
  %v864 = vld [vmem:[%s2 + $0x90] sm:$0xff]
  %v865 = vld [vmem:[%s2 + $0x98] sm:$0xff]
  %v866 = vld [vmem:[%s2 + $0xa0] sm:$0xff]
  %v867 = vld [vmem:[%s2 + $0xa8] sm:$0xff]
  %v868 = vld [vmem:[%s2 + $0xb0] sm:$0xff]
  %v869 = vld [vmem:[%s2 + $0xb8] sm:$0xff]
  %v870 = vld [vmem:[%s2 + $0xc0] sm:$0xff]
  %v871 = vld [vmem:[%s2 + $0xc8] sm:$0xff]
  %v872 = vld [vmem:[%s2 + $0xd0] sm:$0xff]
  %v873 = vld [vmem:[%s2 + $0xd8] sm:$0xff]
  %v874 = vld [vmem:[%s2 + $0xe0] sm:$0xff]
  %v875 = vld [vmem:[%s2 + $0xe8] sm:$0xff]
  %v876 = vld [vmem:[%s2 + $0xf0] sm:$0xff]
  %v877 = vld [vmem:[%s2 + $0xf8] sm:$0xff]
  %v878 = vld [vmem:[%s2 + $0x100] sm:$0xff]
  %v879 = vld [vmem:[%s2 + $0x108] sm:$0xff]
  %v880 = vld [vmem:[%s2 + $0x110] sm:$0xff]
  %v881 = vld [vmem:[%s2 + $0x118] sm:$0xff]
  %v883 = vsel %vm63, %v846, 0
  %v886 = vsel %vm63, %v847, 0
  %v889 = vsel %vm63, %v848, 0
  %v892 = vsel %vm63, %v849, 0
  %v895 = vsel %vm63, %v850, 0
  %v898 = vsel %vm63, %v851, 0
  %v901 = vsel %vm63, %v852, 0
  %v904 = vsel %vm63, %v853, 0
  %v907 = vsel %vm63, %v854, 0
  %v910 = vsel %vm63, %v855, 0
  %v913 = vsel %vm63, %v856, 0
  %v916 = vsel %vm63, %v857, 0
  %v919 = vsel %vm63, %v858, 0
  %v922 = vsel %vm63, %v859, 0
  %v925 = vsel %vm63, %v860, 0
  %v928 = vsel %vm63, %v861, 0
  %v931 = vsel %vm63, %v862, 0
  %v934 = vsel %vm63, %v863, 0
  %v937 = vsel %vm63, %v864, 0
  %v940 = vsel %vm63, %v865, 0
  %v943 = vsel %vm63, %v866, 0
  %v946 = vsel %vm63, %v867, 0
  %v949 = vsel %vm63, %v868, 0
  %v952 = vsel %vm63, %v869, 0
  %v955 = vsel %vm63, %v870, 0
  %v958 = vsel %vm63, %v871, 0
  %v961 = vsel %vm63, %v872, 0
  %v964 = vsel %vm63, %v873, 0
  %v967 = vsel %vm63, %v874, 0
  %v970 = vsel %vm63, %v875, 0
  %v973 = vsel %vm63, %v876, 0
  %v976 = vsel %vm63, %v877, 0
  %v979 = vsel %vm63, %v878, 0
  %v982 = vsel %vm63, %v879, 0
  %v985 = vsel %vm63, %v880, 0
  %v988 = vsel %vm63, %v881, 0
  %990 = vmatprep.subr.mxu0 0.0
  %991 = vmatpush1.msra.mxu0 %v23
  %992 = vmatprep.subr.mxu0 0.0
  %993 = vmatpush1.msra.mxu0 %v24
  %994 = vmatprep.subr.mxu0 0.0
  %995 = vmatpush1.msra.mxu0 %v25
  %996 = vmatprep.subr.mxu0 0.0
  %997 = vmatpush1.msra.mxu0 %v174
  %998 = vmatprep.subr.mxu0 0.0
  %999 = vmatpush1.msra.mxu0 0.0
  %1000 = vmatprep.subr.mxu0 0.0
  %1001 = vmatpush1.msra.mxu0 0.0
  %1002 = vmatprep.subr.mxu0 0.0
  %1003 = vmatpush1.msra.mxu0 0.0
  %1004 = vmatprep.subr.mxu0 0.0
  %1005 = vmatpush1.msra.mxu0 0.0
  %1006 = vmatprep.subr.mxu0 0.0
  %1007 = vmatpush1.msra.mxu0 0.0
  %1008 = vmatprep.subr.mxu0 0.0
  %1009 = vmatpush1.msra.mxu0 0.0
  %1010 = vmatprep.subr.mxu0 0.0
  %1011 = vmatpush1.msra.mxu0 0.0
  %1012 = vmatprep.subr.mxu0 0.0
  %1013 = vmatpush1.msra.mxu0 0.0
  %1014 = vmatprep.subr.mxu0 0.0
  %1015 = vmatpush1.msra.mxu0 0.0
  %1016 = vmatprep.subr.mxu0 0.0
  %1017 = vmatpush1.msra.mxu0 0.0
  %1018 = vmatprep.subr.mxu0 0.0
  %1019 = vmatpush1.msra.mxu0 0.0
  %1020 = vmatprep.subr.mxu0 0.0
  %1021 = vmatpush1.msra.mxu0 0.0
  %1022 = vmatprep.subr.mxu0 0.0
  %1023 = vmatpush1.msra.mxu0 0.0
  %1024 = vmatprep.subr.mxu0 0.0
  %1025 = vmatpush1.msra.mxu0 0.0
  %1026 = vmatprep.subr.mxu0 0.0
  %1027 = vmatpush1.msra.mxu0 0.0
  %1028 = vmatprep.subr.mxu0 0.0
  %1029 = vmatpush1.msra.mxu0 0.0
  %1030 = vmatprep.subr.mxu0 0.0
  %1031 = vmatpush1.msra.mxu0 0.0
  %1032 = vmatprep.subr.mxu0 0.0
  %1033 = vmatpush1.msra.mxu0 0.0
  %1034 = vmatprep.subr.mxu0 0.0
  %1035 = vmatpush1.msra.mxu0 0.0
  %1036 = vmatprep.subr.mxu0 0.0
  %1037 = vmatpush1.msra.mxu0 0.0
  %1038 = vmatprep.subr.mxu0 0.0
  %1039 = vmatpush1.msra.mxu0 0.0
  %1040 = vmatprep.subr.mxu0 0.0
  %1041 = vmatpush1.msra.mxu0 0.0
  %1042 = vmatprep.subr.mxu0 0.0
  %1043 = vmatpush1.msra.mxu0 0.0
  %1044 = vmatprep.subr.mxu0 0.0
  %1045 = vmatpush1.msra.mxu0 0.0
  %1046 = vmatprep.subr.mxu0 0.0
  %1047 = vmatpush1.msra.mxu0 0.0
  %1048 = vmatprep.subr.mxu0 0.0
  %1049 = vmatpush1.msra.mxu0 0.0
  %1050 = vmatprep.subr.mxu0 0.0
  %1051 = vmatpush1.msra.mxu0 0.0
  %1052 = vmatprep.subr.mxu0 0.0
  %1053 = vmatpush1.msra.mxu0 0.0
  %1054 = vmatprep.mubr.f32.mxu0 0.0
  %1055 = vmatmul.mubr.f32.gmra.mrb[0].mxu0 %v883
  %v1056 = vpop.f32.mrb[0].mxu0
  %v1057 = vadd.f32 0.0, %v1056
  %v1058 = vpop.f32.mrb[0].mxu0
  %1059 = vmatprep.mubr.f32.mxu0 0.0
  %1060 = vmatmul.mubr.f32.gmra.mrb[0].mxu0 %v886
  %v1061 = vpop.f32.mrb[0].mxu0
  %v1062 = vadd.f32 0.0, %v1061
  %v1063 = vpop.f32.mrb[0].mxu0
  %1064 = vmatprep.mubr.f32.mxu0 0.0
  %1065 = vmatmul.mubr.f32.gmra.mrb[0].mxu0 %v889
  %v1066 = vpop.f32.mrb[0].mxu0
  %v1067 = vadd.f32 0.0, %v1066
  %v1068 = vpop.f32.mrb[0].mxu0
  %1069 = vmatprep.mubr.f32.mxu0 0.0
  %1070 = vmatmul.mubr.f32.gmra.mrb[0].mxu0 %v892
  %v1071 = vpop.f32.mrb[0].mxu0
  %v1072 = vadd.f32 0.0, %v1071
  %v1073 = vpop.f32.mrb[0].mxu0
  %1074 = vmatprep.mubr.f32.mxu0 0.0
  %1075 = vmatmul.mubr.f32.gmra.mrb[0].mxu0 %v895
  %v1076 = vpop.f32.mrb[0].mxu0
  %v1077 = vadd.f32 0.0, %v1076
  %v1078 = vpop.f32.mrb[0].mxu0
  %1079 = vmatprep.mubr.f32.mxu0 0.0
  %1080 = vmatmul.mubr.f32.gmra.mrb[0].mxu0 %v898
  %v1081 = vpop.f32.mrb[0].mxu0
  %v1082 = vadd.f32 0.0, %v1081
  %v1083 = vpop.f32.mrb[0].mxu0
  %1084 = vmatprep.mubr.f32.mxu0 0.0
  %1085 = vmatmul.mubr.f32.gmra.mrb[0].mxu0 %v901
  %v1086 = vpop.f32.mrb[0].mxu0
  %v1087 = vadd.f32 0.0, %v1086
  %v1088 = vpop.f32.mrb[0].mxu0
  %1089 = vmatprep.mubr.f32.mxu0 0.0
  %1090 = vmatmul.mubr.f32.gmra.mrb[0].mxu0 %v904
  %v1091 = vpop.f32.mrb[0].mxu0
  %v1092 = vadd.f32 0.0, %v1091
  %v1093 = vpop.f32.mrb[0].mxu0
  %1094 = vmatprep.mubr.f32.mxu0 0.0
  %1095 = vmatmul.mubr.f32.gmra.mrb[0].mxu0 %v907
  %v1096 = vpop.f32.mrb[0].mxu0
  %v1097 = vadd.f32 0.0, %v1096
  %v1098 = vpop.f32.mrb[0].mxu0
  %1099 = vmatprep.mubr.f32.mxu0 0.0
  %1100 = vmatmul.mubr.f32.gmra.mrb[0].mxu0 %v910
  %v1101 = vpop.f32.mrb[0].mxu0
  %v1102 = vadd.f32 0.0, %v1101
  %v1103 = vpop.f32.mrb[0].mxu0
  %1104 = vmatprep.mubr.f32.mxu0 0.0
  %1105 = vmatmul.mubr.f32.gmra.mrb[0].mxu0 %v913
  %v1106 = vpop.f32.mrb[0].mxu0
  %v1107 = vadd.f32 0.0, %v1106
  %v1108 = vpop.f32.mrb[0].mxu0
  %1109 = vmatprep.mubr.f32.mxu0 0.0
  %1110 = vmatmul.mubr.f32.gmra.mrb[0].mxu0 %v916
  %v1111 = vpop.f32.mrb[0].mxu0
  %v1112 = vadd.f32 0.0, %v1111
  %v1113 = vpop.f32.mrb[0].mxu0
  %1114 = vmatprep.mubr.f32.mxu0 0.0
  %1115 = vmatmul.mubr.f32.gmra.mrb[0].mxu0 %v919
  %v1116 = vpop.f32.mrb[0].mxu0
  %v1117 = vadd.f32 0.0, %v1116
  %v1118 = vpop.f32.mrb[0].mxu0
  %1119 = vmatprep.mubr.f32.mxu0 0.0
  %1120 = vmatmul.mubr.f32.gmra.mrb[0].mxu0 %v922
  %v1121 = vpop.f32.mrb[0].mxu0
  %v1122 = vadd.f32 0.0, %v1121
  %v1123 = vpop.f32.mrb[0].mxu0
  %1124 = vmatprep.mubr.f32.mxu0 0.0
  %1125 = vmatmul.mubr.f32.gmra.mrb[0].mxu0 %v925
  %v1126 = vpop.f32.mrb[0].mxu0
  %v1127 = vadd.f32 0.0, %v1126
  %v1128 = vpop.f32.mrb[0].mxu0
  %1129 = vmatprep.mubr.f32.mxu0 0.0
  %1130 = vmatmul.mubr.f32.gmra.mrb[0].mxu0 %v928
  %v1131 = vpop.f32.mrb[0].mxu0
  %v1132 = vadd.f32 0.0, %v1131
  %v1133 = vpop.f32.mrb[0].mxu0
  %1134 = vmatprep.mubr.f32.mxu0 0.0
  %1135 = vmatmul.mubr.f32.gmra.mrb[0].mxu0 %v931
  %v1136 = vpop.f32.mrb[0].mxu0
  %v1137 = vadd.f32 0.0, %v1136
  %v1138 = vpop.f32.mrb[0].mxu0
  %1139 = vmatprep.mubr.f32.mxu0 0.0
  %1140 = vmatmul.mubr.f32.gmra.mrb[0].mxu0 %v934
  %v1141 = vpop.f32.mrb[0].mxu0
  %v1142 = vadd.f32 0.0, %v1141
  %v1143 = vpop.f32.mrb[0].mxu0
  %1144 = vmatprep.mubr.f32.mxu0 0.0
  %1145 = vmatmul.mubr.f32.gmra.mrb[0].mxu0 %v937
  %v1146 = vpop.f32.mrb[0].mxu0
  %v1147 = vadd.f32 0.0, %v1146
  %v1148 = vpop.f32.mrb[0].mxu0
  %1149 = vmatprep.mubr.f32.mxu0 0.0
  %1150 = vmatmul.mubr.f32.gmra.mrb[0].mxu0 %v940
  %v1151 = vpop.f32.mrb[0].mxu0
  %v1152 = vadd.f32 0.0, %v1151
  %v1153 = vpop.f32.mrb[0].mxu0
  %1154 = vmatprep.mubr.f32.mxu0 0.0
  %1155 = vmatmul.mubr.f32.gmra.mrb[0].mxu0 %v943
  %v1156 = vpop.f32.mrb[0].mxu0
  %v1157 = vadd.f32 0.0, %v1156
  %v1158 = vpop.f32.mrb[0].mxu0
  %1159 = vmatprep.mubr.f32.mxu0 0.0
  %1160 = vmatmul.mubr.f32.gmra.mrb[0].mxu0 %v946
  %v1161 = vpop.f32.mrb[0].mxu0
  %v1162 = vadd.f32 0.0, %v1161
  %v1163 = vpop.f32.mrb[0].mxu0
  %1164 = vmatprep.mubr.f32.mxu0 0.0
  %1165 = vmatmul.mubr.f32.gmra.mrb[0].mxu0 %v949
  %v1166 = vpop.f32.mrb[0].mxu0
  %v1167 = vadd.f32 0.0, %v1166
  %v1168 = vpop.f32.mrb[0].mxu0
  %1169 = vmatprep.mubr.f32.mxu0 0.0
  %1170 = vmatmul.mubr.f32.gmra.mrb[0].mxu0 %v952
  %v1171 = vpop.f32.mrb[0].mxu0
  %v1172 = vadd.f32 0.0, %v1171
  %v1173 = vpop.f32.mrb[0].mxu0
  %1174 = vmatprep.mubr.f32.mxu0 0.0
  %1175 = vmatmul.mubr.f32.gmra.mrb[0].mxu0 %v955
  %v1176 = vpop.f32.mrb[0].mxu0
  %v1177 = vadd.f32 0.0, %v1176
  %v1178 = vpop.f32.mrb[0].mxu0
  %1179 = vmatprep.mubr.f32.mxu0 0.0
  %1180 = vmatmul.mubr.f32.gmra.mrb[0].mxu0 %v958
  %v1181 = vpop.f32.mrb[0].mxu0
  %v1182 = vadd.f32 0.0, %v1181
  %v1183 = vpop.f32.mrb[0].mxu0
  %1184 = vmatprep.mubr.f32.mxu0 0.0
  %1185 = vmatmul.mubr.f32.gmra.mrb[0].mxu0 %v961
  %v1186 = vpop.f32.mrb[0].mxu0
  %v1187 = vadd.f32 0.0, %v1186
  %v1188 = vpop.f32.mrb[0].mxu0
  %1189 = vmatprep.mubr.f32.mxu0 0.0
  %1190 = vmatmul.mubr.f32.gmra.mrb[0].mxu0 %v964
  %v1191 = vpop.f32.mrb[0].mxu0
  %v1192 = vadd.f32 0.0, %v1191
  %v1193 = vpop.f32.mrb[0].mxu0
  %1194 = vmatprep.mubr.f32.mxu0 0.0
  %1195 = vmatmul.mubr.f32.gmra.mrb[0].mxu0 %v967
  %v1196 = vpop.f32.mrb[0].mxu0
  %v1197 = vadd.f32 0.0, %v1196
  %v1198 = vpop.f32.mrb[0].mxu0
  %1199 = vmatprep.mubr.f32.mxu0 0.0
  %1200 = vmatmul.mubr.f32.gmra.mrb[0].mxu0 %v970
  %v1201 = vpop.f32.mrb[0].mxu0
  %v1202 = vadd.f32 0.0, %v1201
  %v1203 = vpop.f32.mrb[0].mxu0
  %1204 = vmatprep.mubr.f32.mxu0 0.0
  %1205 = vmatmul.mubr.f32.gmra.mrb[0].mxu0 %v973
  %v1206 = vpop.f32.mrb[0].mxu0
  %v1207 = vadd.f32 0.0, %v1206
  %v1208 = vpop.f32.mrb[0].mxu0
  %1209 = vmatprep.mubr.f32.mxu0 0.0
  %1210 = vmatmul.mubr.f32.gmra.mrb[0].mxu0 %v976
  %v1211 = vpop.f32.mrb[0].mxu0
  %v1212 = vadd.f32 0.0, %v1211
  %v1213 = vpop.f32.mrb[0].mxu0
  %1214 = vmatprep.mubr.f32.mxu0 0.0
  %1215 = vmatmul.mubr.f32.gmra.mrb[0].mxu0 %v979
  %v1216 = vpop.f32.mrb[0].mxu0
  %v1217 = vadd.f32 0.0, %v1216
  %v1218 = vpop.f32.mrb[0].mxu0
  %1219 = vmatprep.mubr.f32.mxu0 0.0
  %1220 = vmatmul.mubr.f32.gmra.mrb[0].mxu0 %v982
  %v1221 = vpop.f32.mrb[0].mxu0
  %v1222 = vadd.f32 0.0, %v1221
  %v1223 = vpop.f32.mrb[0].mxu0
  %1224 = vmatprep.mubr.f32.mxu0 0.0
  %1225 = vmatmul.mubr.f32.gmra.mrb[0].mxu0 %v985
  %v1226 = vpop.f32.mrb[0].mxu0
  %v1227 = vadd.f32 0.0, %v1226
  %v1228 = vpop.f32.mrb[0].mxu0
  %1229 = vmatprep.mubr.f32.mxu0 0.0
  %1230 = vmatmul.mubr.f32.gmra.mrb[0].mxu0 %v988
  %v1231 = vpop.f32.mrb[0].mxu0
  %v1232 = vadd.f32 0.0, %v1231
  %v1233 = vpop.f32.mrb[0].mxu0
  %1234 = vdwg.mxu0
  %v1235 = vmax.f32 %v810, %v1057
  %v1236 = vmax.f32 %v811, %v1062
  %v1237 = vmax.f32 %v812, %v1067
  %v1238 = vmax.f32 %v813, %v1072
  %v1239 = vmax.f32 %v814, %v1077
  %v1240 = vmax.f32 %v815, %v1082
  %v1241 = vmax.f32 %v816, %v1087
  %v1242 = vmax.f32 %v817, %v1092
  %v1243 = vmax.f32 %v818, %v1097
  %v1244 = vmax.f32 %v819, %v1102
  %v1245 = vmax.f32 %v820, %v1107
  %v1246 = vmax.f32 %v821, %v1112
  %v1247 = vmax.f32 %v822, %v1117
  %v1248 = vmax.f32 %v823, %v1122
  %v1249 = vmax.f32 %v824, %v1127
  %v1250 = vmax.f32 %v825, %v1132
  %v1251 = vmax.f32 %v826, %v1137
  %v1252 = vmax.f32 %v827, %v1142
  %v1253 = vmax.f32 %v828, %v1147
  %v1254 = vmax.f32 %v829, %v1152
  %v1255 = vmax.f32 %v830, %v1157
  %v1256 = vmax.f32 %v831, %v1162
  %v1257 = vmax.f32 %v832, %v1167
  %v1258 = vmax.f32 %v833, %v1172
  %v1259 = vmax.f32 %v834, %v1177
  %v1260 = vmax.f32 %v835, %v1182
  %v1261 = vmax.f32 %v836, %v1187
  %v1262 = vmax.f32 %v837, %v1192
  %v1263 = vmax.f32 %v838, %v1197
  %v1264 = vmax.f32 %v839, %v1202
  %v1265 = vmax.f32 %v840, %v1207
  %v1266 = vmax.f32 %v841, %v1212
  %v1267 = vmax.f32 %v842, %v1217
  %v1268 = vmax.f32 %v843, %v1222
  %v1269 = vmax.f32 %v844, %v1227
  %v1270 = vmax.f32 %v845, %v1232
  %v1271 = vld [vmem:[%s3] sm:$0xff]
  %v1272 = vld [vmem:[%s3 + $0x8] sm:$0xff]
  %v1273 = vld [vmem:[%s3 + $0x10] sm:$0xff]
  %v1274 = vld [vmem:[%s3 + $0x18] sm:$0xff]
  %v1275 = vld [vmem:[%s3 + $0x20] sm:$0xff]
  %v1276 = vld [vmem:[%s3 + $0x28] sm:$0xff]
  %v1277 = vld [vmem:[%s3 + $0x30] sm:$0xff]
  %v1278 = vld [vmem:[%s3 + $0x38] sm:$0xff]
  %v1279 = vld [vmem:[%s3 + $0x40] sm:$0xff]
  %v1280 = vld [vmem:[%s3 + $0x48] sm:$0xff]
  %v1281 = vld [vmem:[%s3 + $0x50] sm:$0xff]
  %v1282 = vld [vmem:[%s3 + $0x58] sm:$0xff]
  %v1283 = vld [vmem:[%s3 + $0x60] sm:$0xff]
  %v1284 = vld [vmem:[%s3 + $0x68] sm:$0xff]
  %v1285 = vld [vmem:[%s3 + $0x70] sm:$0xff]
  %v1286 = vld [vmem:[%s3 + $0x78] sm:$0xff]
  %v1287 = vld [vmem:[%s3 + $0x80] sm:$0xff]
  %v1288 = vld [vmem:[%s3 + $0x88] sm:$0xff]
  %v1289 = vld [vmem:[%s3 + $0x90] sm:$0xff]
  %v1290 = vld [vmem:[%s3 + $0x98] sm:$0xff]
  %v1291 = vld [vmem:[%s3 + $0xa0] sm:$0xff]
  %v1292 = vld [vmem:[%s3 + $0xa8] sm:$0xff]
  %v1293 = vld [vmem:[%s3 + $0xb0] sm:$0xff]
  %v1294 = vld [vmem:[%s3 + $0xb8] sm:$0xff]
  %v1295 = vld [vmem:[%s3 + $0xc0] sm:$0xff]
  %v1296 = vld [vmem:[%s3 + $0xc8] sm:$0xff]
  %v1297 = vld [vmem:[%s3 + $0xd0] sm:$0xff]
  %v1298 = vld [vmem:[%s3 + $0xd8] sm:$0xff]
  %v1299 = vld [vmem:[%s3 + $0xe0] sm:$0xff]
  %v1300 = vld [vmem:[%s3 + $0xe8] sm:$0xff]
  %v1301 = vld [vmem:[%s3 + $0xf0] sm:$0xff]
  %v1302 = vld [vmem:[%s3 + $0xf8] sm:$0xff]
  %v1303 = vld [vmem:[%s3 + $0x100] sm:$0xff]
  %v1304 = vld [vmem:[%s3 + $0x108] sm:$0xff]
  %v1305 = vld [vmem:[%s3 + $0x110] sm:$0xff]
  %v1306 = vld [vmem:[%s3 + $0x118] sm:$0xff]
  %v1308 = vsel %vm63, %v1271, 0
  %v1311 = vsel %vm63, %v1272, 0
  %v1314 = vsel %vm63, %v1273, 0
  %v1317 = vsel %vm63, %v1274, 0
  %v1320 = vsel %vm63, %v1275, 0
  %v1323 = vsel %vm63, %v1276, 0
  %v1326 = vsel %vm63, %v1277, 0
  %v1329 = vsel %vm63, %v1278, 0
  %v1332 = vsel %vm63, %v1279, 0
  %v1335 = vsel %vm63, %v1280, 0
  %v1338 = vsel %vm63, %v1281, 0
  %v1341 = vsel %vm63, %v1282, 0
  %v1344 = vsel %vm63, %v1283, 0
  %v1347 = vsel %vm63, %v1284, 0
  %v1350 = vsel %vm63, %v1285, 0
  %v1353 = vsel %vm63, %v1286, 0
  %v1356 = vsel %vm63, %v1287, 0
  %v1359 = vsel %vm63, %v1288, 0
  %v1362 = vsel %vm63, %v1289, 0
  %v1365 = vsel %vm63, %v1290, 0
  %v1368 = vsel %vm63, %v1291, 0
  %v1371 = vsel %vm63, %v1292, 0
  %v1374 = vsel %vm63, %v1293, 0
  %v1377 = vsel %vm63, %v1294, 0
  %v1380 = vsel %vm63, %v1295, 0
  %v1383 = vsel %vm63, %v1296, 0
  %v1386 = vsel %vm63, %v1297, 0
  %v1389 = vsel %vm63, %v1298, 0
  %v1392 = vsel %vm63, %v1299, 0
  %v1395 = vsel %vm63, %v1300, 0
  %v1398 = vsel %vm63, %v1301, 0
  %v1401 = vsel %vm63, %v1302, 0
  %v1404 = vsel %vm63, %v1303, 0
  %v1407 = vsel %vm63, %v1304, 0
  %v1410 = vsel %vm63, %v1305, 0
  %v1413 = vsel %vm63, %v1306, 0
  %1415 = vmatprep.subr.mxu0 0.0
  %1416 = vmatpush1.msra.mxu0 %v23
  %1417 = vmatprep.subr.mxu0 0.0
  %1418 = vmatpush1.msra.mxu0 %v24
  %1419 = vmatprep.subr.mxu0 0.0
  %1420 = vmatpush1.msra.mxu0 %v25
  %1421 = vmatprep.subr.mxu0 0.0
  %1422 = vmatpush1.msra.mxu0 %v174
  %1423 = vmatprep.subr.mxu0 0.0
  %1424 = vmatpush1.msra.mxu0 0.0
  %1425 = vmatprep.subr.mxu0 0.0
  %1426 = vmatpush1.msra.mxu0 0.0
  %1427 = vmatprep.subr.mxu0 0.0
  %1428 = vmatpush1.msra.mxu0 0.0
  %1429 = vmatprep.subr.mxu0 0.0
  %1430 = vmatpush1.msra.mxu0 0.0
  %1431 = vmatprep.subr.mxu0 0.0
  %1432 = vmatpush1.msra.mxu0 0.0
  %1433 = vmatprep.subr.mxu0 0.0
  %1434 = vmatpush1.msra.mxu0 0.0
  %1435 = vmatprep.subr.mxu0 0.0
  %1436 = vmatpush1.msra.mxu0 0.0
  %1437 = vmatprep.subr.mxu0 0.0
  %1438 = vmatpush1.msra.mxu0 0.0
  %1439 = vmatprep.subr.mxu0 0.0
  %1440 = vmatpush1.msra.mxu0 0.0
  %1441 = vmatprep.subr.mxu0 0.0
  %1442 = vmatpush1.msra.mxu0 0.0
  %1443 = vmatprep.subr.mxu0 0.0
  %1444 = vmatpush1.msra.mxu0 0.0
  %1445 = vmatprep.subr.mxu0 0.0
  %1446 = vmatpush1.msra.mxu0 0.0
  %1447 = vmatprep.subr.mxu0 0.0
  %1448 = vmatpush1.msra.mxu0 0.0
  %1449 = vmatprep.subr.mxu0 0.0
  %1450 = vmatpush1.msra.mxu0 0.0
  %1451 = vmatprep.subr.mxu0 0.0
  %1452 = vmatpush1.msra.mxu0 0.0
  %1453 = vmatprep.subr.mxu0 0.0
  %1454 = vmatpush1.msra.mxu0 0.0
  %1455 = vmatprep.subr.mxu0 0.0
  %1456 = vmatpush1.msra.mxu0 0.0
  %1457 = vmatprep.subr.mxu0 0.0
  %1458 = vmatpush1.msra.mxu0 0.0
  %1459 = vmatprep.subr.mxu0 0.0
  %1460 = vmatpush1.msra.mxu0 0.0
  %1461 = vmatprep.subr.mxu0 0.0
  %1462 = vmatpush1.msra.mxu0 0.0
  %1463 = vmatprep.subr.mxu0 0.0
  %1464 = vmatpush1.msra.mxu0 0.0
  %1465 = vmatprep.subr.mxu0 0.0
  %1466 = vmatpush1.msra.mxu0 0.0
  %1467 = vmatprep.subr.mxu0 0.0
  %1468 = vmatpush1.msra.mxu0 0.0
  %1469 = vmatprep.subr.mxu0 0.0
  %1470 = vmatpush1.msra.mxu0 0.0
  %1471 = vmatprep.subr.mxu0 0.0
  %1472 = vmatpush1.msra.mxu0 0.0
  %1473 = vmatprep.subr.mxu0 0.0
  %1474 = vmatpush1.msra.mxu0 0.0
  %1475 = vmatprep.subr.mxu0 0.0
  %1476 = vmatpush1.msra.mxu0 0.0
  %1477 = vmatprep.subr.mxu0 0.0
  %1478 = vmatpush1.msra.mxu0 0.0
  %1479 = vmatprep.mubr.f32.mxu0 0.0
  %1480 = vmatmul.mubr.f32.gmra.mrb[0].mxu0 %v1308
  %v1481 = vpop.f32.mrb[0].mxu0
  %v1482 = vadd.f32 0.0, %v1481
  %v1483 = vpop.f32.mrb[0].mxu0
  %1484 = vmatprep.mubr.f32.mxu0 0.0
  %1485 = vmatmul.mubr.f32.gmra.mrb[0].mxu0 %v1311
  %v1486 = vpop.f32.mrb[0].mxu0
  %v1487 = vadd.f32 0.0, %v1486
  %v1488 = vpop.f32.mrb[0].mxu0
  %1489 = vmatprep.mubr.f32.mxu0 0.0
  %1490 = vmatmul.mubr.f32.gmra.mrb[0].mxu0 %v1314
  %v1491 = vpop.f32.mrb[0].mxu0
  %v1492 = vadd.f32 0.0, %v1491
  %v1493 = vpop.f32.mrb[0].mxu0
  %1494 = vmatprep.mubr.f32.mxu0 0.0
  %1495 = vmatmul.mubr.f32.gmra.mrb[0].mxu0 %v1317
  %v1496 = vpop.f32.mrb[0].mxu0
  %v1497 = vadd.f32 0.0, %v1496
  %v1498 = vpop.f32.mrb[0].mxu0
  %1499 = vmatprep.mubr.f32.mxu0 0.0
  %1500 = vmatmul.mubr.f32.gmra.mrb[0].mxu0 %v1320
  %v1501 = vpop.f32.mrb[0].mxu0
  %v1502 = vadd.f32 0.0, %v1501
  %v1503 = vpop.f32.mrb[0].mxu0
  %1504 = vmatprep.mubr.f32.mxu0 0.0
  %1505 = vmatmul.mubr.f32.gmra.mrb[0].mxu0 %v1323
  %v1506 = vpop.f32.mrb[0].mxu0
  %v1507 = vadd.f32 0.0, %v1506
  %v1508 = vpop.f32.mrb[0].mxu0
  %1509 = vmatprep.mubr.f32.mxu0 0.0
  %1510 = vmatmul.mubr.f32.gmra.mrb[0].mxu0 %v1326
  %v1511 = vpop.f32.mrb[0].mxu0
  %v1512 = vadd.f32 0.0, %v1511
  %v1513 = vpop.f32.mrb[0].mxu0
  %1514 = vmatprep.mubr.f32.mxu0 0.0
  %1515 = vmatmul.mubr.f32.gmra.mrb[0].mxu0 %v1329
  %v1516 = vpop.f32.mrb[0].mxu0
  %v1517 = vadd.f32 0.0, %v1516
  %v1518 = vpop.f32.mrb[0].mxu0
  %1519 = vmatprep.mubr.f32.mxu0 0.0
  %1520 = vmatmul.mubr.f32.gmra.mrb[0].mxu0 %v1332
  %v1521 = vpop.f32.mrb[0].mxu0
  %v1522 = vadd.f32 0.0, %v1521
  %v1523 = vpop.f32.mrb[0].mxu0
  %1524 = vmatprep.mubr.f32.mxu0 0.0
  %1525 = vmatmul.mubr.f32.gmra.mrb[0].mxu0 %v1335
  %v1526 = vpop.f32.mrb[0].mxu0
  %v1527 = vadd.f32 0.0, %v1526
  %v1528 = vpop.f32.mrb[0].mxu0
  %1529 = vmatprep.mubr.f32.mxu0 0.0
  %1530 = vmatmul.mubr.f32.gmra.mrb[0].mxu0 %v1338
  %v1531 = vpop.f32.mrb[0].mxu0
  %v1532 = vadd.f32 0.0, %v1531
  %v1533 = vpop.f32.mrb[0].mxu0
  %1534 = vmatprep.mubr.f32.mxu0 0.0
  %1535 = vmatmul.mubr.f32.gmra.mrb[0].mxu0 %v1341
  %v1536 = vpop.f32.mrb[0].mxu0
  %v1537 = vadd.f32 0.0, %v1536
  %v1538 = vpop.f32.mrb[0].mxu0
  %1539 = vmatprep.mubr.f32.mxu0 0.0
  %1540 = vmatmul.mubr.f32.gmra.mrb[0].mxu0 %v1344
  %v1541 = vpop.f32.mrb[0].mxu0
  %v1542 = vadd.f32 0.0, %v1541
  %v1543 = vpop.f32.mrb[0].mxu0
  %1544 = vmatprep.mubr.f32.mxu0 0.0
  %1545 = vmatmul.mubr.f32.gmra.mrb[0].mxu0 %v1347
  %v1546 = vpop.f32.mrb[0].mxu0
  %v1547 = vadd.f32 0.0, %v1546
  %v1548 = vpop.f32.mrb[0].mxu0
  %1549 = vmatprep.mubr.f32.mxu0 0.0
  %1550 = vmatmul.mubr.f32.gmra.mrb[0].mxu0 %v1350
  %v1551 = vpop.f32.mrb[0].mxu0
  %v1552 = vadd.f32 0.0, %v1551
  %v1553 = vpop.f32.mrb[0].mxu0
  %1554 = vmatprep.mubr.f32.mxu0 0.0
  %1555 = vmatmul.mubr.f32.gmra.mrb[0].mxu0 %v1353
  %v1556 = vpop.f32.mrb[0].mxu0
  %v1557 = vadd.f32 0.0, %v1556
  %v1558 = vpop.f32.mrb[0].mxu0
  %1559 = vmatprep.mubr.f32.mxu0 0.0
  %1560 = vmatmul.mubr.f32.gmra.mrb[0].mxu0 %v1356
  %v1561 = vpop.f32.mrb[0].mxu0
  %v1562 = vadd.f32 0.0, %v1561
  %v1563 = vpop.f32.mrb[0].mxu0
  %1564 = vmatprep.mubr.f32.mxu0 0.0
  %1565 = vmatmul.mubr.f32.gmra.mrb[0].mxu0 %v1359
  %v1566 = vpop.f32.mrb[0].mxu0
  %v1567 = vadd.f32 0.0, %v1566
  %v1568 = vpop.f32.mrb[0].mxu0
  %1569 = vmatprep.mubr.f32.mxu0 0.0
  %1570 = vmatmul.mubr.f32.gmra.mrb[0].mxu0 %v1362
  %v1571 = vpop.f32.mrb[0].mxu0
  %v1572 = vadd.f32 0.0, %v1571
  %v1573 = vpop.f32.mrb[0].mxu0
  %1574 = vmatprep.mubr.f32.mxu0 0.0
  %1575 = vmatmul.mubr.f32.gmra.mrb[0].mxu0 %v1365
  %v1576 = vpop.f32.mrb[0].mxu0
  %v1577 = vadd.f32 0.0, %v1576
  %v1578 = vpop.f32.mrb[0].mxu0
  %1579 = vmatprep.mubr.f32.mxu0 0.0
  %1580 = vmatmul.mubr.f32.gmra.mrb[0].mxu0 %v1368
  %v1581 = vpop.f32.mrb[0].mxu0
  %v1582 = vadd.f32 0.0, %v1581
  %v1583 = vpop.f32.mrb[0].mxu0
  %1584 = vmatprep.mubr.f32.mxu0 0.0
  %1585 = vmatmul.mubr.f32.gmra.mrb[0].mxu0 %v1371
  %v1586 = vpop.f32.mrb[0].mxu0
  %v1587 = vadd.f32 0.0, %v1586
  %v1588 = vpop.f32.mrb[0].mxu0
  %1589 = vmatprep.mubr.f32.mxu0 0.0
  %1590 = vmatmul.mubr.f32.gmra.mrb[0].mxu0 %v1374
  %v1591 = vpop.f32.mrb[0].mxu0
  %v1592 = vadd.f32 0.0, %v1591
  %v1593 = vpop.f32.mrb[0].mxu0
  %1594 = vmatprep.mubr.f32.mxu0 0.0
  %1595 = vmatmul.mubr.f32.gmra.mrb[0].mxu0 %v1377
  %v1596 = vpop.f32.mrb[0].mxu0
  %v1597 = vadd.f32 0.0, %v1596
  %v1598 = vpop.f32.mrb[0].mxu0
  %1599 = vmatprep.mubr.f32.mxu0 0.0
  %1600 = vmatmul.mubr.f32.gmra.mrb[0].mxu0 %v1380
  %v1601 = vpop.f32.mrb[0].mxu0
  %v1602 = vadd.f32 0.0, %v1601
  %v1603 = vpop.f32.mrb[0].mxu0
  %1604 = vmatprep.mubr.f32.mxu0 0.0
  %1605 = vmatmul.mubr.f32.gmra.mrb[0].mxu0 %v1383
  %v1606 = vpop.f32.mrb[0].mxu0
  %v1607 = vadd.f32 0.0, %v1606
  %v1608 = vpop.f32.mrb[0].mxu0
  %1609 = vmatprep.mubr.f32.mxu0 0.0
  %1610 = vmatmul.mubr.f32.gmra.mrb[0].mxu0 %v1386
  %v1611 = vpop.f32.mrb[0].mxu0
  %v1612 = vadd.f32 0.0, %v1611
  %v1613 = vpop.f32.mrb[0].mxu0
  %1614 = vmatprep.mubr.f32.mxu0 0.0
  %1615 = vmatmul.mubr.f32.gmra.mrb[0].mxu0 %v1389
  %v1616 = vpop.f32.mrb[0].mxu0
  %v1617 = vadd.f32 0.0, %v1616
  %v1618 = vpop.f32.mrb[0].mxu0
  %1619 = vmatprep.mubr.f32.mxu0 0.0
  %1620 = vmatmul.mubr.f32.gmra.mrb[0].mxu0 %v1392
  %v1621 = vpop.f32.mrb[0].mxu0
  %v1622 = vadd.f32 0.0, %v1621
  %v1623 = vpop.f32.mrb[0].mxu0
  %1624 = vmatprep.mubr.f32.mxu0 0.0
  %1625 = vmatmul.mubr.f32.gmra.mrb[0].mxu0 %v1395
  %v1626 = vpop.f32.mrb[0].mxu0
  %v1627 = vadd.f32 0.0, %v1626
  %v1628 = vpop.f32.mrb[0].mxu0
  %1629 = vmatprep.mubr.f32.mxu0 0.0
  %1630 = vmatmul.mubr.f32.gmra.mrb[0].mxu0 %v1398
  %v1631 = vpop.f32.mrb[0].mxu0
  %v1632 = vadd.f32 0.0, %v1631
  %v1633 = vpop.f32.mrb[0].mxu0
  %1634 = vmatprep.mubr.f32.mxu0 0.0
  %1635 = vmatmul.mubr.f32.gmra.mrb[0].mxu0 %v1401
  %v1636 = vpop.f32.mrb[0].mxu0
  %v1637 = vadd.f32 0.0, %v1636
  %v1638 = vpop.f32.mrb[0].mxu0
  %1639 = vmatprep.mubr.f32.mxu0 0.0
  %1640 = vmatmul.mubr.f32.gmra.mrb[0].mxu0 %v1404
  %v1641 = vpop.f32.mrb[0].mxu0
  %v1642 = vadd.f32 0.0, %v1641
  %v1643 = vpop.f32.mrb[0].mxu0
  %1644 = vmatprep.mubr.f32.mxu0 0.0
  %1645 = vmatmul.mubr.f32.gmra.mrb[0].mxu0 %v1407
  %v1646 = vpop.f32.mrb[0].mxu0
  %v1647 = vadd.f32 0.0, %v1646
  %v1648 = vpop.f32.mrb[0].mxu0
  %1649 = vmatprep.mubr.f32.mxu0 0.0
  %1650 = vmatmul.mubr.f32.gmra.mrb[0].mxu0 %v1410
  %v1651 = vpop.f32.mrb[0].mxu0
  %v1652 = vadd.f32 0.0, %v1651
  %v1653 = vpop.f32.mrb[0].mxu0
  %1654 = vmatprep.mubr.f32.mxu0 0.0
  %1655 = vmatmul.mubr.f32.gmra.mrb[0].mxu0 %v1413
  %v1656 = vpop.f32.mrb[0].mxu0
  %v1657 = vadd.f32 0.0, %v1656
  %v1658 = vpop.f32.mrb[0].mxu0
  %1659 = vdwg.mxu0
  %v1660 = vmax.f32 %v1235, %v1482
  %v1661 = vmax.f32 %v1236, %v1487
  %v1662 = vmax.f32 %v1237, %v1492
  %v1663 = vmax.f32 %v1238, %v1497
  %v1664 = vmax.f32 %v1239, %v1502
  %v1665 = vmax.f32 %v1240, %v1507
  %v1666 = vmax.f32 %v1241, %v1512
  %v1667 = vmax.f32 %v1242, %v1517
  %v1668 = vmax.f32 %v1243, %v1522
  %v1669 = vmax.f32 %v1244, %v1527
  %v1670 = vmax.f32 %v1245, %v1532
  %v1671 = vmax.f32 %v1246, %v1537
  %v1672 = vmax.f32 %v1247, %v1542
  %v1673 = vmax.f32 %v1248, %v1547
  %v1674 = vmax.f32 %v1249, %v1552
  %v1675 = vmax.f32 %v1250, %v1557
  %v1676 = vmax.f32 %v1251, %v1562
  %v1677 = vmax.f32 %v1252, %v1567
  %v1678 = vmax.f32 %v1253, %v1572
  %v1679 = vmax.f32 %v1254, %v1577
  %v1680 = vmax.f32 %v1255, %v1582
  %v1681 = vmax.f32 %v1256, %v1587
  %v1682 = vmax.f32 %v1257, %v1592
  %v1683 = vmax.f32 %v1258, %v1597
  %v1684 = vmax.f32 %v1259, %v1602
  %v1685 = vmax.f32 %v1260, %v1607
  %v1686 = vmax.f32 %v1261, %v1612
  %v1687 = vmax.f32 %v1262, %v1617
  %v1688 = vmax.f32 %v1263, %v1622
  %v1689 = vmax.f32 %v1264, %v1627
  %v1690 = vmax.f32 %v1265, %v1632
  %v1691 = vmax.f32 %v1266, %v1637
  %v1692 = vmax.f32 %v1267, %v1642
  %v1693 = vmax.f32 %v1268, %v1647
  %v1694 = vmax.f32 %v1269, %v1652
  %v1695 = vmax.f32 %v1270, %v1657
  %v1696 = vld [vmem:[%s5] sm:$0x1]
  %v1698 = vlaneseq
  %v1699 = vshrl.u32 %v1698, 7
  %v1700 = vsub.s32 0, %v1699
  %v1701 = vrot.slane %v1696, %v1700
  %v1703 = vadd.f32 %v1660, %v1701
  %v1704 = vadd.f32 %v1661, %v1701
  %v1705 = vadd.f32 %v1662, %v1701
  %v1706 = vadd.f32 %v1663, %v1701
  %v1707 = vadd.f32 %v1664, %v1701
  %v1708 = vadd.f32 %v1665, %v1701
  %v1709 = vadd.f32 %v1666, %v1701
  %v1710 = vadd.f32 %v1667, %v1701
  %v1711 = vadd.f32 %v1668, %v1701
  %v1712 = vadd.f32 %v1669, %v1701
  %v1713 = vadd.f32 %v1670, %v1701
  %v1714 = vadd.f32 %v1671, %v1701
  %v1715 = vadd.f32 %v1672, %v1701
  %v1716 = vadd.f32 %v1673, %v1701
  %v1717 = vadd.f32 %v1674, %v1701
  %v1718 = vadd.f32 %v1675, %v1701
  %v1719 = vadd.f32 %v1676, %v1701
  %v1720 = vadd.f32 %v1677, %v1701
  %v1721 = vadd.f32 %v1678, %v1701
  %v1722 = vadd.f32 %v1679, %v1701
  %v1723 = vadd.f32 %v1680, %v1701
  %v1724 = vadd.f32 %v1681, %v1701
  %v1725 = vadd.f32 %v1682, %v1701
  %v1726 = vadd.f32 %v1683, %v1701
  %v1727 = vadd.f32 %v1684, %v1701
  %v1728 = vadd.f32 %v1685, %v1701
  %v1729 = vadd.f32 %v1686, %v1701
  %v1730 = vadd.f32 %v1687, %v1701
  %v1731 = vadd.f32 %v1688, %v1701
  %v1732 = vadd.f32 %v1689, %v1701
  %v1733 = vadd.f32 %v1690, %v1701
  %v1734 = vadd.f32 %v1691, %v1701
  %v1735 = vadd.f32 %v1692, %v1701
  %v1736 = vadd.f32 %v1693, %v1701
  %v1737 = vadd.f32 %v1694, %v1701
  %v1738 = vadd.f32 %v1695, %v1701
  %v1739 = vmax.f32 %v1703, 0.0
  %v1740 = vmax.f32 %v1704, 0.0
  %v1741 = vmax.f32 %v1705, 0.0
  %v1742 = vmax.f32 %v1706, 0.0
  %v1743 = vmax.f32 %v1707, 0.0
  %v1744 = vmax.f32 %v1708, 0.0
  %v1745 = vmax.f32 %v1709, 0.0
  %v1746 = vmax.f32 %v1710, 0.0
  %v1747 = vmax.f32 %v1711, 0.0
  %v1748 = vmax.f32 %v1712, 0.0
  %v1749 = vmax.f32 %v1713, 0.0
  %v1750 = vmax.f32 %v1714, 0.0
  %v1751 = vmax.f32 %v1715, 0.0
  %v1752 = vmax.f32 %v1716, 0.0
  %v1753 = vmax.f32 %v1717, 0.0
  %v1754 = vmax.f32 %v1718, 0.0
  %v1755 = vmax.f32 %v1719, 0.0
  %v1756 = vmax.f32 %v1720, 0.0
  %v1757 = vmax.f32 %v1721, 0.0
  %v1758 = vmax.f32 %v1722, 0.0
  %v1759 = vmax.f32 %v1723, 0.0
  %v1760 = vmax.f32 %v1724, 0.0
  %v1761 = vmax.f32 %v1725, 0.0
  %v1762 = vmax.f32 %v1726, 0.0
  %v1763 = vmax.f32 %v1727, 0.0
  %v1764 = vmax.f32 %v1728, 0.0
  %v1765 = vmax.f32 %v1729, 0.0
  %v1766 = vmax.f32 %v1730, 0.0
  %v1767 = vmax.f32 %v1731, 0.0
  %v1768 = vmax.f32 %v1732, 0.0
  %v1769 = vmax.f32 %v1733, 0.0
  %v1770 = vmax.f32 %v1734, 0.0
  %v1771 = vmax.f32 %v1735, 0.0
  %v1772 = vmax.f32 %v1736, 0.0
  %v1773 = vmax.f32 %v1737, 0.0
  %v1774 = vmax.f32 %v1738, 0.0
  %vm1775 = vcmask 162816
  %1776 = vst.msk [vmem:[%s6] sm:$0xff] %vm1775, %v1739
  %1777 = vst.msk [vmem:[%s6 + $0x8] sm:$0xff] %vm1775, %v1740
  %1778 = vst.msk [vmem:[%s6 + $0x10] sm:$0xff] %vm1775, %v1741
  %1779 = vst.msk [vmem:[%s6 + $0x18] sm:$0xff] %vm1775, %v1742
  %1780 = vst.msk [vmem:[%s6 + $0x20] sm:$0xff] %vm1775, %v1743
  %1781 = vst.msk [vmem:[%s6 + $0x28] sm:$0xff] %vm1775, %v1744
  %1782 = vst.msk [vmem:[%s6 + $0x30] sm:$0xff] %vm1775, %v1745
  %1783 = vst.msk [vmem:[%s6 + $0x38] sm:$0xff] %vm1775, %v1746
  %1784 = vst.msk [vmem:[%s6 + $0x40] sm:$0xff] %vm1775, %v1747
  %1785 = vst.msk [vmem:[%s6 + $0x48] sm:$0xff] %vm1775, %v1748
  %1786 = vst.msk [vmem:[%s6 + $0x50] sm:$0xff] %vm1775, %v1749
  %1787 = vst.msk [vmem:[%s6 + $0x58] sm:$0xff] %vm1775, %v1750
  %1788 = vst.msk [vmem:[%s6 + $0x60] sm:$0xff] %vm1775, %v1751
  %1789 = vst.msk [vmem:[%s6 + $0x68] sm:$0xff] %vm1775, %v1752
  %1790 = vst.msk [vmem:[%s6 + $0x70] sm:$0xff] %vm1775, %v1753
  %1791 = vst.msk [vmem:[%s6 + $0x78] sm:$0xff] %vm1775, %v1754
  %1792 = vst.msk [vmem:[%s6 + $0x80] sm:$0xff] %vm1775, %v1755
  %1793 = vst.msk [vmem:[%s6 + $0x88] sm:$0xff] %vm1775, %v1756
  %1794 = vst.msk [vmem:[%s6 + $0x90] sm:$0xff] %vm1775, %v1757
  %1795 = vst.msk [vmem:[%s6 + $0x98] sm:$0xff] %vm1775, %v1758
  %1796 = vst.msk [vmem:[%s6 + $0xa0] sm:$0xff] %vm1775, %v1759
  %1797 = vst.msk [vmem:[%s6 + $0xa8] sm:$0xff] %vm1775, %v1760
  %1798 = vst.msk [vmem:[%s6 + $0xb0] sm:$0xff] %vm1775, %v1761
  %1799 = vst.msk [vmem:[%s6 + $0xb8] sm:$0xff] %vm1775, %v1762
  %1800 = vst.msk [vmem:[%s6 + $0xc0] sm:$0xff] %vm1775, %v1763
  %1801 = vst.msk [vmem:[%s6 + $0xc8] sm:$0xff] %vm1775, %v1764
  %1802 = vst.msk [vmem:[%s6 + $0xd0] sm:$0xff] %vm1775, %v1765
  %1803 = vst.msk [vmem:[%s6 + $0xd8] sm:$0xff] %vm1775, %v1766
  %1804 = vst.msk [vmem:[%s6 + $0xe0] sm:$0xff] %vm1775, %v1767
  %1805 = vst.msk [vmem:[%s6 + $0xe8] sm:$0xff] %vm1775, %v1768
  %1806 = vst.msk [vmem:[%s6 + $0xf0] sm:$0xff] %vm1775, %v1769
  %1807 = vst.msk [vmem:[%s6 + $0xf8] sm:$0xff] %vm1775, %v1770
  %1808 = vst.msk [vmem:[%s6 + $0x100] sm:$0xff] %vm1775, %v1771
  %1809 = vst.msk [vmem:[%s6 + $0x108] sm:$0xff] %vm1775, %v1772
  %1810 = vst.msk [vmem:[%s6 + $0x110] sm:$0xff] %vm1775, %v1773
  %1811 = vst.msk [vmem:[%s6 + $0x118] sm:$0xff] %vm1775, %v1774
  // Predicated region
  $region26: #{net_forward.3} parent=0 // pred_check
    _
  $region27: #{net_forward.3} parent=0 // pred_check_branch
    %1813 = sbr.rel (0) target = $region29
  $region28: #{net_forward.3} parent=0 // pred_region
    _
  $region29: #{net_forward.3} parent=0 // pred_fallthru
    _
  // Predicated region
  $region30: #{net_forward.3} parent=0 // pred_check
    _
  $region31: #{net_forward.3} parent=0 // pred_check_branch
    %1815 = sbr.rel (0) target = $region33
  $region32: #{net_forward.3} parent=0 // pred_region
    _
  $region33: #{net_forward.3} parent=0 // pred_fallthru
    _

// kernel: net_forward.4
$region0: #{net_forward.4}
  #allocation0 [shape = 'u32[]', space=smem, size = 0x4, offset = 0x4, fixed_abs, tag = 'smem constant byte address 0x4 - core index']
  #allocation1 [shape = 'u32[144,128]{1,0:T(1,128)}', space=vmem, size = 0x12000, scoped, tag = 'internal scratch']
  %s0 = inlined_call_operand.vmem [shape: f32[32,500], index: 0, kind: input, shape index: {}]
  %s1 = inlined_call_operand.vmem [shape: f32[32,500], index: 1, kind: input, shape index: {}]
  %s2 = inlined_call_operand.vmem [shape: f32[32,500], index: 2, kind: input, shape index: {}]
  %s3 = inlined_call_operand.vmem [shape: f32[32,500], index: 3, kind: input, shape index: {}]
  %s4 = inlined_call_operand.vmem [shape: f32[500,50], index: 4, kind: input, shape index: {}]
  %s5 = inlined_call_operand.vmem [shape: f32[1,50], index: 5, kind: input, shape index: {}]
  %s6 = inlined_call_operand.vmem [shape: f32[32,50], index: 6, kind: output, shape index: {}]
  %s7 = sld [smem:[#allocation0]]
  $region34: #{net_forward.4} parent=0
    _
  %s9 = ssub.s32 1, %s7
  %s10 = scalar_select 0, %s9, %s7
  // Predicated region
  $region2: #{net_forward.4} parent=0 // pred_check
    _
  $region3: #{net_forward.4} parent=0 // pred_check_branch
    %12 = sbr.rel (0) target = $region5
  $region4: #{net_forward.4} parent=0 // pred_region
    _
  $region5: #{net_forward.4} parent=0 // pred_fallthru
    _
  // Predicated region
  $region6: #{net_forward.4} parent=0 // pred_check
    _
  $region7: #{net_forward.4} parent=0 // pred_check_branch
    %14 = sbr.rel (0) target = $region9
  $region8: #{net_forward.4} parent=0 // pred_region
    _
  $region9: #{net_forward.4} parent=0 // pred_fallthru
    _
  // Predicated region
  $region10: #{net_forward.4} parent=0 // pred_check
    _
  $region11: #{net_forward.4} parent=0 // pred_check_branch
    %16 = sbr.rel (0) target = $region13
  $region12: #{net_forward.4} parent=0 // pred_region
    _
  $region13: #{net_forward.4} parent=0 // pred_fallthru
    _
  // Predicated region
  $region14: #{net_forward.4} parent=0 // pred_check
    _
  $region15: #{net_forward.4} parent=0 // pred_check_branch
    %18 = sbr.rel (0) target = $region17
  $region16: #{net_forward.4} parent=0 // pred_region
    _
  $region17: #{net_forward.4} parent=0 // pred_fallthru
    _
  // Predicated region
  $region18: #{net_forward.4} parent=0 // pred_check
    _
  $region19: #{net_forward.4} parent=0 // pred_check_branch
    %20 = sbr.rel (0) target = $region21
  $region20: #{net_forward.4} parent=0 // pred_region
    _
  $region21: #{net_forward.4} parent=0 // pred_fallthru
    _
  // Predicated region
  $region22: #{net_forward.4} parent=0 // pred_check
    _
  $region23: #{net_forward.4} parent=0 // pred_check_branch
    %22 = sbr.rel (0) target = $region25
  $region24: #{net_forward.4} parent=0 // pred_region
    _
  $region25: #{net_forward.4} parent=0 // pred_fallthru
    _
  %v23 = vld [vmem:[%s4] sm:$0xff]
  %v24 = vld [vmem:[%s4 + $0x8] sm:$0xff]
  %v25 = vld [vmem:[%s4 + $0x10] sm:$0xff]
  %v26 = vld [vmem:[%s4 + $0x18] sm:$0xff]
  %v27 = vld [vmem:[%s4 + $0x20] sm:$0xff]
  %v28 = vld [vmem:[%s4 + $0x28] sm:$0xff]
  %v29 = vld [vmem:[%s4 + $0x30] sm:$0xff]
  %v30 = vld [vmem:[%s4 + $0x38] sm:$0xff]
  %v31 = vld [vmem:[%s4 + $0x40] sm:$0xff]
  %v32 = vld [vmem:[%s4 + $0x48] sm:$0xff]
  %v33 = vld [vmem:[%s4 + $0x50] sm:$0xff]
  %v34 = vld [vmem:[%s4 + $0x58] sm:$0xff]
  %v35 = vld [vmem:[%s4 + $0x60] sm:$0xff]
  %v36 = vld [vmem:[%s4 + $0x68] sm:$0xff]
  %v37 = vld [vmem:[%s4 + $0x70] sm:$0xff]
  %v38 = vld [vmem:[%s4 + $0x78] sm:$0xff]
  %v39 = vld [vmem:[%s4 + $0x80] sm:$0xff]
  %v40 = vld [vmem:[%s4 + $0x88] sm:$0xff]
  %v41 = vld [vmem:[%s4 + $0x90] sm:$0xff]
  %v42 = vld [vmem:[%s4 + $0x98] sm:$0xff]
  %v43 = vld [vmem:[%s4 + $0xa0] sm:$0xff]
  %v44 = vld [vmem:[%s4 + $0xa8] sm:$0xff]
  %v45 = vld [vmem:[%s4 + $0xb0] sm:$0xff]
  %v46 = vld [vmem:[%s4 + $0xb8] sm:$0xff]
  %v47 = vld [vmem:[%s4 + $0xc0] sm:$0xff]
  %v48 = vld [vmem:[%s4 + $0xc8] sm:$0xff]
  %v49 = vld [vmem:[%s4 + $0xd0] sm:$0xff]
  %v50 = vld [vmem:[%s4 + $0xd8] sm:$0xff]
  %v51 = vld [vmem:[%s4 + $0xe0] sm:$0xff]
  %v52 = vld [vmem:[%s4 + $0xe8] sm:$0xff]
  %v53 = vld [vmem:[%s4 + $0xf0] sm:$0xff]
  %v54 = vld [vmem:[%s4 + $0xf8] sm:$0xff]
  %v55 = vld [vmem:[%s4 + $0x100] sm:$0xff]
  %v56 = vld [vmem:[%s4 + $0x108] sm:$0xff]
  %v57 = vld [vmem:[%s4 + $0x110] sm:$0xff]
  %v58 = vld [vmem:[%s4 + $0x118] sm:$0xff]
  %v59 = vld [vmem:[%s4 + $0x120] sm:$0xff]
  %v60 = vld [vmem:[%s4 + $0x128] sm:$0xff]
  %v61 = vld [vmem:[%s4 + $0x130] sm:$0xff]
  %v62 = vld [vmem:[%s4 + $0x138] sm:$0xff]
  %v63 = vld [vmem:[%s4 + $0x140] sm:$0xff]
  %v64 = vld [vmem:[%s4 + $0x148] sm:$0xff]
  %v65 = vld [vmem:[%s4 + $0x150] sm:$0xff]
  %v66 = vld [vmem:[%s4 + $0x158] sm:$0xff]
  %v67 = vld [vmem:[%s4 + $0x160] sm:$0xff]
  %v68 = vld [vmem:[%s4 + $0x168] sm:$0xff]
  %v69 = vld [vmem:[%s4 + $0x170] sm:$0xff]
  %v70 = vld [vmem:[%s4 + $0x178] sm:$0xff]
  %v71 = vld [vmem:[%s4 + $0x180] sm:$0xff]
  %v72 = vld [vmem:[%s4 + $0x188] sm:$0xff]
  %v73 = vld [vmem:[%s4 + $0x190] sm:$0xff]
  %v74 = vld [vmem:[%s4 + $0x198] sm:$0xff]
  %v75 = vld [vmem:[%s4 + $0x1a0] sm:$0xff]
  %v76 = vld [vmem:[%s4 + $0x1a8] sm:$0xff]
  %v77 = vld [vmem:[%s4 + $0x1b0] sm:$0xff]
  %v78 = vld [vmem:[%s4 + $0x1b8] sm:$0xff]
  %v79 = vld [vmem:[%s4 + $0x1c0] sm:$0xff]
  %v80 = vld [vmem:[%s4 + $0x1c8] sm:$0xff]
  %v81 = vld [vmem:[%s4 + $0x1d0] sm:$0xff]
  %v82 = vld [vmem:[%s4 + $0x1d8] sm:$0xff]
  %v83 = vld [vmem:[%s4 + $0x1e0] sm:$0xff]
  %v84 = vld [vmem:[%s4 + $0x1e8] sm:$0xff]
  %v85 = vld [vmem:[%s4 + $0x1f0] sm:$0xf]
  %v86 = vld [vmem:[%s0] sm:$0xff]
  %v87 = vld [vmem:[%s0 + $0x8] sm:$0xff]
  %v88 = vld [vmem:[%s0 + $0x10] sm:$0xff]
  %v89 = vld [vmem:[%s0 + $0x18] sm:$0xff]
  %v90 = vld [vmem:[%s0 + $0x20] sm:$0xff]
  %v91 = vld [vmem:[%s0 + $0x28] sm:$0xff]
  %v92 = vld [vmem:[%s0 + $0x30] sm:$0xff]
  %v93 = vld [vmem:[%s0 + $0x38] sm:$0xff]
  %v94 = vld [vmem:[%s0 + $0x40] sm:$0xff]
  %v95 = vld [vmem:[%s0 + $0x48] sm:$0xff]
  %v96 = vld [vmem:[%s0 + $0x50] sm:$0xff]
  %v97 = vld [vmem:[%s0 + $0x58] sm:$0xff]
  %v98 = vld [vmem:[%s0 + $0x60] sm:$0xff]
  %v99 = vld [vmem:[%s0 + $0x68] sm:$0xff]
  %v100 = vld [vmem:[%s0 + $0x70] sm:$0xff]
  %v101 = vld [vmem:[%s0 + $0x78] sm:$0xff]
  %vm102 = vcmask 949248
  %v104 = vsel %vm102, %v89, 0
  %v107 = vsel %vm102, %v93, 0
  %v110 = vsel %vm102, %v97, 0
  %v113 = vsel %vm102, %v101, 0
  %vm115 = vcmask 1043456
  %v117 = vsel %vm115, %v85, 0
  %119 = vmatprep.subr.mxu0 0.0
  %120 = vmatpush1.msra.mxu0 %v23
  %121 = vmatprep.subr.mxu0 0.0
  %122 = vmatpush1.msra.mxu0 %v24
  %123 = vmatprep.subr.mxu0 0.0
  %124 = vmatpush1.msra.mxu0 %v25
  %125 = vmatprep.subr.mxu0 0.0
  %126 = vmatpush1.msra.mxu0 %v26
  %127 = vmatprep.subr.mxu0 0.0
  %128 = vmatpush1.msra.mxu0 %v27
  %129 = vmatprep.subr.mxu0 0.0
  %130 = vmatpush1.msra.mxu0 %v28
  %131 = vmatprep.subr.mxu0 0.0
  %132 = vmatpush1.msra.mxu0 %v29
  %133 = vmatprep.subr.mxu0 0.0
  %134 = vmatpush1.msra.mxu0 %v30
  %135 = vmatprep.subr.mxu0 0.0
  %136 = vmatpush1.msra.mxu0 %v31
  %137 = vmatprep.subr.mxu0 0.0
  %138 = vmatpush1.msra.mxu0 %v32
  %139 = vmatprep.subr.mxu0 0.0
  %140 = vmatpush1.msra.mxu0 %v33
  %141 = vmatprep.subr.mxu0 0.0
  %142 = vmatpush1.msra.mxu0 %v34
  %143 = vmatprep.subr.mxu0 0.0
  %144 = vmatpush1.msra.mxu0 %v35
  %145 = vmatprep.subr.mxu0 0.0
  %146 = vmatpush1.msra.mxu0 %v36
  %147 = vmatprep.subr.mxu0 0.0
  %148 = vmatpush1.msra.mxu0 %v37
  %149 = vmatprep.subr.mxu0 0.0
  %150 = vmatpush1.msra.mxu0 %v38
  %151 = vmatprep.subr.mxu0 0.0
  %152 = vmatpush1.msra.mxu0 %v39
  %153 = vmatprep.subr.mxu0 0.0
  %154 = vmatpush1.msra.mxu0 %v40
  %155 = vmatprep.subr.mxu0 0.0
  %156 = vmatpush1.msra.mxu0 %v41
  %157 = vmatprep.subr.mxu0 0.0
  %158 = vmatpush1.msra.mxu0 %v42
  %159 = vmatprep.subr.mxu0 0.0
  %160 = vmatpush1.msra.mxu0 %v43
  %161 = vmatprep.subr.mxu0 0.0
  %162 = vmatpush1.msra.mxu0 %v44
  %163 = vmatprep.subr.mxu0 0.0
  %164 = vmatpush1.msra.mxu0 %v45
  %165 = vmatprep.subr.mxu0 0.0
  %166 = vmatpush1.msra.mxu0 %v46
  %167 = vmatprep.subr.mxu0 0.0
  %168 = vmatpush1.msra.mxu0 %v47
  %169 = vmatprep.subr.mxu0 0.0
  %170 = vmatpush1.msra.mxu0 %v48
  %171 = vmatprep.subr.mxu0 0.0
  %172 = vmatpush1.msra.mxu0 %v49
  %173 = vmatprep.subr.mxu0 0.0
  %174 = vmatpush1.msra.mxu0 %v50
  %175 = vmatprep.subr.mxu0 0.0
  %176 = vmatpush1.msra.mxu0 %v51
  %177 = vmatprep.subr.mxu0 0.0
  %178 = vmatpush1.msra.mxu0 %v52
  %179 = vmatprep.subr.mxu0 0.0
  %180 = vmatpush1.msra.mxu0 %v53
  %181 = vmatprep.subr.mxu0 0.0
  %182 = vmatpush1.msra.mxu0 %v54
  %183 = vmatprep.mubr.f32.mxu0 %v87
  %184 = vmatmul.mubr.f32.gmra.mrb[0].mxu0 %v86
  %v185 = vpop.f32.mrb[0].mxu0
  %v186 = vadd.f32 0.0, %v185
  %v187 = vpop.f32.mrb[0].mxu0
  %188 = vmatprep.mubr.f32.mxu0 %v91
  %189 = vmatmul.mubr.f32.gmra.mrb[0].mxu0 %v90
  %v190 = vpop.f32.mrb[0].mxu0
  %v191 = vadd.f32 0.0, %v190
  %v192 = vpop.f32.mrb[0].mxu0
  %193 = vmatprep.mubr.f32.mxu0 %v95
  %194 = vmatmul.mubr.f32.gmra.mrb[0].mxu0 %v94
  %v195 = vpop.f32.mrb[0].mxu0
  %v196 = vadd.f32 0.0, %v195
  %v197 = vpop.f32.mrb[0].mxu0
  %198 = vmatprep.mubr.f32.mxu0 %v99
  %199 = vmatmul.mubr.f32.gmra.mrb[0].mxu0 %v98
  %v200 = vpop.f32.mrb[0].mxu0
  %v201 = vadd.f32 0.0, %v200
  %v202 = vpop.f32.mrb[0].mxu0
  %203 = vdwg.mxu0
  %204 = vmatprep.subr.mxu0 0.0
  %205 = vmatpush1.msra.mxu0 %v55
  %206 = vmatprep.subr.mxu0 0.0
  %207 = vmatpush1.msra.mxu0 %v56
  %208 = vmatprep.subr.mxu0 0.0
  %209 = vmatpush1.msra.mxu0 %v57
  %210 = vmatprep.subr.mxu0 0.0
  %211 = vmatpush1.msra.mxu0 %v58
  %212 = vmatprep.subr.mxu0 0.0
  %213 = vmatpush1.msra.mxu0 %v59
  %214 = vmatprep.subr.mxu0 0.0
  %215 = vmatpush1.msra.mxu0 %v60
  %216 = vmatprep.subr.mxu0 0.0
  %217 = vmatpush1.msra.mxu0 %v61
  %218 = vmatprep.subr.mxu0 0.0
  %219 = vmatpush1.msra.mxu0 %v62
  %220 = vmatprep.subr.mxu0 0.0
  %221 = vmatpush1.msra.mxu0 %v63
  %222 = vmatprep.subr.mxu0 0.0
  %223 = vmatpush1.msra.mxu0 %v64
  %224 = vmatprep.subr.mxu0 0.0
  %225 = vmatpush1.msra.mxu0 %v65
  %226 = vmatprep.subr.mxu0 0.0
  %227 = vmatpush1.msra.mxu0 %v66
  %228 = vmatprep.subr.mxu0 0.0
  %229 = vmatpush1.msra.mxu0 %v67
  %230 = vmatprep.subr.mxu0 0.0
  %231 = vmatpush1.msra.mxu0 %v68
  %232 = vmatprep.subr.mxu0 0.0
  %233 = vmatpush1.msra.mxu0 %v69
  %234 = vmatprep.subr.mxu0 0.0
  %235 = vmatpush1.msra.mxu0 %v70
  %236 = vmatprep.subr.mxu0 0.0
  %237 = vmatpush1.msra.mxu0 %v71
  %238 = vmatprep.subr.mxu0 0.0
  %239 = vmatpush1.msra.mxu0 %v72
  %240 = vmatprep.subr.mxu0 0.0
  %241 = vmatpush1.msra.mxu0 %v73
  %242 = vmatprep.subr.mxu0 0.0
  %243 = vmatpush1.msra.mxu0 %v74
  %244 = vmatprep.subr.mxu0 0.0
  %245 = vmatpush1.msra.mxu0 %v75
  %246 = vmatprep.subr.mxu0 0.0
  %247 = vmatpush1.msra.mxu0 %v76
  %248 = vmatprep.subr.mxu0 0.0
  %249 = vmatpush1.msra.mxu0 %v77
  %250 = vmatprep.subr.mxu0 0.0
  %251 = vmatpush1.msra.mxu0 %v78
  %252 = vmatprep.subr.mxu0 0.0
  %253 = vmatpush1.msra.mxu0 %v79
  %254 = vmatprep.subr.mxu0 0.0
  %255 = vmatpush1.msra.mxu0 %v80
  %256 = vmatprep.subr.mxu0 0.0
  %257 = vmatpush1.msra.mxu0 %v81
  %258 = vmatprep.subr.mxu0 0.0
  %259 = vmatpush1.msra.mxu0 %v82
  %260 = vmatprep.subr.mxu0 0.0
  %261 = vmatpush1.msra.mxu0 %v83
  %262 = vmatprep.subr.mxu0 0.0
  %263 = vmatpush1.msra.mxu0 %v84
  %264 = vmatprep.subr.mxu0 0.0
  %265 = vmatpush1.msra.mxu0 %v117
  %266 = vmatprep.subr.mxu0 0.0
  %267 = vmatpush1.msra.mxu0 0.0
  %268 = vmatprep.mubr.f32.mxu0 %v104
  %269 = vmatmul.mubr.f32.gmra.mrb[0].mxu0 %v88
  %v270 = vpop.f32.mrb[0].mxu0
  %v271 = vadd.f32 %v186, %v270
  %v272 = vpop.f32.mrb[0].mxu0
  %273 = vmatprep.mubr.f32.mxu0 %v107
  %274 = vmatmul.mubr.f32.gmra.mrb[0].mxu0 %v92
  %v275 = vpop.f32.mrb[0].mxu0
  %v276 = vadd.f32 %v191, %v275
  %v277 = vpop.f32.mrb[0].mxu0
  %278 = vmatprep.mubr.f32.mxu0 %v110
  %279 = vmatmul.mubr.f32.gmra.mrb[0].mxu0 %v96
  %v280 = vpop.f32.mrb[0].mxu0
  %v281 = vadd.f32 %v196, %v280
  %v282 = vpop.f32.mrb[0].mxu0
  %283 = vmatprep.mubr.f32.mxu0 %v113
  %284 = vmatmul.mubr.f32.gmra.mrb[0].mxu0 %v100
  %v285 = vpop.f32.mrb[0].mxu0
  %v286 = vadd.f32 %v201, %v285
  %v287 = vpop.f32.mrb[0].mxu0
  %288 = vdwg.mxu0
  %v289 = vld [vmem:[%s1] sm:$0xff]
  %v290 = vld [vmem:[%s1 + $0x8] sm:$0xff]
  %v291 = vld [vmem:[%s1 + $0x10] sm:$0xff]
  %v292 = vld [vmem:[%s1 + $0x18] sm:$0xff]
  %v293 = vld [vmem:[%s1 + $0x20] sm:$0xff]
  %v294 = vld [vmem:[%s1 + $0x28] sm:$0xff]
  %v295 = vld [vmem:[%s1 + $0x30] sm:$0xff]
  %v296 = vld [vmem:[%s1 + $0x38] sm:$0xff]
  %v297 = vld [vmem:[%s1 + $0x40] sm:$0xff]
  %v298 = vld [vmem:[%s1 + $0x48] sm:$0xff]
  %v299 = vld [vmem:[%s1 + $0x50] sm:$0xff]
  %v300 = vld [vmem:[%s1 + $0x58] sm:$0xff]
  %v301 = vld [vmem:[%s1 + $0x60] sm:$0xff]
  %v302 = vld [vmem:[%s1 + $0x68] sm:$0xff]
  %v303 = vld [vmem:[%s1 + $0x70] sm:$0xff]
  %v304 = vld [vmem:[%s1 + $0x78] sm:$0xff]
  %v306 = vsel %vm102, %v292, 0
  %v309 = vsel %vm102, %v296, 0
  %v312 = vsel %vm102, %v300, 0
  %v315 = vsel %vm102, %v304, 0
  %317 = vmatprep.subr.mxu0 0.0
  %318 = vmatpush1.msra.mxu0 %v23
  %319 = vmatprep.subr.mxu0 0.0
  %320 = vmatpush1.msra.mxu0 %v24
  %321 = vmatprep.subr.mxu0 0.0
  %322 = vmatpush1.msra.mxu0 %v25
  %323 = vmatprep.subr.mxu0 0.0
  %324 = vmatpush1.msra.mxu0 %v26
  %325 = vmatprep.subr.mxu0 0.0
  %326 = vmatpush1.msra.mxu0 %v27
  %327 = vmatprep.subr.mxu0 0.0
  %328 = vmatpush1.msra.mxu0 %v28
  %329 = vmatprep.subr.mxu0 0.0
  %330 = vmatpush1.msra.mxu0 %v29
  %331 = vmatprep.subr.mxu0 0.0
  %332 = vmatpush1.msra.mxu0 %v30
  %333 = vmatprep.subr.mxu0 0.0
  %334 = vmatpush1.msra.mxu0 %v31
  %335 = vmatprep.subr.mxu0 0.0
  %336 = vmatpush1.msra.mxu0 %v32
  %337 = vmatprep.subr.mxu0 0.0
  %338 = vmatpush1.msra.mxu0 %v33
  %339 = vmatprep.subr.mxu0 0.0
  %340 = vmatpush1.msra.mxu0 %v34
  %341 = vmatprep.subr.mxu0 0.0
  %342 = vmatpush1.msra.mxu0 %v35
  %343 = vmatprep.subr.mxu0 0.0
  %344 = vmatpush1.msra.mxu0 %v36
  %345 = vmatprep.subr.mxu0 0.0
  %346 = vmatpush1.msra.mxu0 %v37
  %347 = vmatprep.subr.mxu0 0.0
  %348 = vmatpush1.msra.mxu0 %v38
  %349 = vmatprep.subr.mxu0 0.0
  %350 = vmatpush1.msra.mxu0 %v39
  %351 = vmatprep.subr.mxu0 0.0
  %352 = vmatpush1.msra.mxu0 %v40
  %353 = vmatprep.subr.mxu0 0.0
  %354 = vmatpush1.msra.mxu0 %v41
  %355 = vmatprep.subr.mxu0 0.0
  %356 = vmatpush1.msra.mxu0 %v42
  %357 = vmatprep.subr.mxu0 0.0
  %358 = vmatpush1.msra.mxu0 %v43
  %359 = vmatprep.subr.mxu0 0.0
  %360 = vmatpush1.msra.mxu0 %v44
  %361 = vmatprep.subr.mxu0 0.0
  %362 = vmatpush1.msra.mxu0 %v45
  %363 = vmatprep.subr.mxu0 0.0
  %364 = vmatpush1.msra.mxu0 %v46
  %365 = vmatprep.subr.mxu0 0.0
  %366 = vmatpush1.msra.mxu0 %v47
  %367 = vmatprep.subr.mxu0 0.0
  %368 = vmatpush1.msra.mxu0 %v48
  %369 = vmatprep.subr.mxu0 0.0
  %370 = vmatpush1.msra.mxu0 %v49
  %371 = vmatprep.subr.mxu0 0.0
  %372 = vmatpush1.msra.mxu0 %v50
  %373 = vmatprep.subr.mxu0 0.0
  %374 = vmatpush1.msra.mxu0 %v51
  %375 = vmatprep.subr.mxu0 0.0
  %376 = vmatpush1.msra.mxu0 %v52
  %377 = vmatprep.subr.mxu0 0.0
  %378 = vmatpush1.msra.mxu0 %v53
  %379 = vmatprep.subr.mxu0 0.0
  %380 = vmatpush1.msra.mxu0 %v54
  %381 = vmatprep.mubr.f32.mxu0 %v290
  %382 = vmatmul.mubr.f32.gmra.mrb[0].mxu0 %v289
  %v383 = vpop.f32.mrb[0].mxu0
  %v384 = vadd.f32 0.0, %v383
  %v385 = vpop.f32.mrb[0].mxu0
  %386 = vmatprep.mubr.f32.mxu0 %v294
  %387 = vmatmul.mubr.f32.gmra.mrb[0].mxu0 %v293
  %v388 = vpop.f32.mrb[0].mxu0
  %v389 = vadd.f32 0.0, %v388
  %v390 = vpop.f32.mrb[0].mxu0
  %391 = vmatprep.mubr.f32.mxu0 %v298
  %392 = vmatmul.mubr.f32.gmra.mrb[0].mxu0 %v297
  %v393 = vpop.f32.mrb[0].mxu0
  %v394 = vadd.f32 0.0, %v393
  %v395 = vpop.f32.mrb[0].mxu0
  %396 = vmatprep.mubr.f32.mxu0 %v302
  %397 = vmatmul.mubr.f32.gmra.mrb[0].mxu0 %v301
  %v398 = vpop.f32.mrb[0].mxu0
  %v399 = vadd.f32 0.0, %v398
  %v400 = vpop.f32.mrb[0].mxu0
  %401 = vdwg.mxu0
  %402 = vmatprep.subr.mxu0 0.0
  %403 = vmatpush1.msra.mxu0 %v55
  %404 = vmatprep.subr.mxu0 0.0
  %405 = vmatpush1.msra.mxu0 %v56
  %406 = vmatprep.subr.mxu0 0.0
  %407 = vmatpush1.msra.mxu0 %v57
  %408 = vmatprep.subr.mxu0 0.0
  %409 = vmatpush1.msra.mxu0 %v58
  %410 = vmatprep.subr.mxu0 0.0
  %411 = vmatpush1.msra.mxu0 %v59
  %412 = vmatprep.subr.mxu0 0.0
  %413 = vmatpush1.msra.mxu0 %v60
  %414 = vmatprep.subr.mxu0 0.0
  %415 = vmatpush1.msra.mxu0 %v61
  %416 = vmatprep.subr.mxu0 0.0
  %417 = vmatpush1.msra.mxu0 %v62
  %418 = vmatprep.subr.mxu0 0.0
  %419 = vmatpush1.msra.mxu0 %v63
  %420 = vmatprep.subr.mxu0 0.0
  %421 = vmatpush1.msra.mxu0 %v64
  %422 = vmatprep.subr.mxu0 0.0
  %423 = vmatpush1.msra.mxu0 %v65
  %424 = vmatprep.subr.mxu0 0.0
  %425 = vmatpush1.msra.mxu0 %v66
  %426 = vmatprep.subr.mxu0 0.0
  %427 = vmatpush1.msra.mxu0 %v67
  %428 = vmatprep.subr.mxu0 0.0
  %429 = vmatpush1.msra.mxu0 %v68
  %430 = vmatprep.subr.mxu0 0.0
  %431 = vmatpush1.msra.mxu0 %v69
  %432 = vmatprep.subr.mxu0 0.0
  %433 = vmatpush1.msra.mxu0 %v70
  %434 = vmatprep.subr.mxu0 0.0
  %435 = vmatpush1.msra.mxu0 %v71
  %436 = vmatprep.subr.mxu0 0.0
  %437 = vmatpush1.msra.mxu0 %v72
  %438 = vmatprep.subr.mxu0 0.0
  %439 = vmatpush1.msra.mxu0 %v73
  %440 = vmatprep.subr.mxu0 0.0
  %441 = vmatpush1.msra.mxu0 %v74
  %442 = vmatprep.subr.mxu0 0.0
  %443 = vmatpush1.msra.mxu0 %v75
  %444 = vmatprep.subr.mxu0 0.0
  %445 = vmatpush1.msra.mxu0 %v76
  %446 = vmatprep.subr.mxu0 0.0
  %447 = vmatpush1.msra.mxu0 %v77
  %448 = vmatprep.subr.mxu0 0.0
  %449 = vmatpush1.msra.mxu0 %v78
  %450 = vmatprep.subr.mxu0 0.0
  %451 = vmatpush1.msra.mxu0 %v79
  %452 = vmatprep.subr.mxu0 0.0
  %453 = vmatpush1.msra.mxu0 %v80
  %454 = vmatprep.subr.mxu0 0.0
  %455 = vmatpush1.msra.mxu0 %v81
  %456 = vmatprep.subr.mxu0 0.0
  %457 = vmatpush1.msra.mxu0 %v82
  %458 = vmatprep.subr.mxu0 0.0
  %459 = vmatpush1.msra.mxu0 %v83
  %460 = vmatprep.subr.mxu0 0.0
  %461 = vmatpush1.msra.mxu0 %v84
  %462 = vmatprep.subr.mxu0 0.0
  %463 = vmatpush1.msra.mxu0 %v117
  %464 = vmatprep.subr.mxu0 0.0
  %465 = vmatpush1.msra.mxu0 0.0
  %466 = vmatprep.mubr.f32.mxu0 %v306
  %467 = vmatmul.mubr.f32.gmra.mrb[0].mxu0 %v291
  %v468 = vpop.f32.mrb[0].mxu0
  %v469 = vadd.f32 %v384, %v468
  %v470 = vpop.f32.mrb[0].mxu0
  %471 = vmatprep.mubr.f32.mxu0 %v309
  %472 = vmatmul.mubr.f32.gmra.mrb[0].mxu0 %v295
  %v473 = vpop.f32.mrb[0].mxu0
  %v474 = vadd.f32 %v389, %v473
  %v475 = vpop.f32.mrb[0].mxu0
  %476 = vmatprep.mubr.f32.mxu0 %v312
  %477 = vmatmul.mubr.f32.gmra.mrb[0].mxu0 %v299
  %v478 = vpop.f32.mrb[0].mxu0
  %v479 = vadd.f32 %v394, %v478
  %v480 = vpop.f32.mrb[0].mxu0
  %481 = vmatprep.mubr.f32.mxu0 %v315
  %482 = vmatmul.mubr.f32.gmra.mrb[0].mxu0 %v303
  %v483 = vpop.f32.mrb[0].mxu0
  %v484 = vadd.f32 %v399, %v483
  %v485 = vpop.f32.mrb[0].mxu0
  %486 = vdwg.mxu0
  %v487 = vmax.f32 %v271, %v469
  %v488 = vmax.f32 %v276, %v474
  %v489 = vmax.f32 %v281, %v479
  %v490 = vmax.f32 %v286, %v484
  %v491 = vld [vmem:[%s2] sm:$0xff]
  %v492 = vld [vmem:[%s2 + $0x8] sm:$0xff]
  %v493 = vld [vmem:[%s2 + $0x10] sm:$0xff]
  %v494 = vld [vmem:[%s2 + $0x18] sm:$0xff]
  %v495 = vld [vmem:[%s2 + $0x20] sm:$0xff]
  %v496 = vld [vmem:[%s2 + $0x28] sm:$0xff]
  %v497 = vld [vmem:[%s2 + $0x30] sm:$0xff]
  %v498 = vld [vmem:[%s2 + $0x38] sm:$0xff]
  %v499 = vld [vmem:[%s2 + $0x40] sm:$0xff]
  %v500 = vld [vmem:[%s2 + $0x48] sm:$0xff]
  %v501 = vld [vmem:[%s2 + $0x50] sm:$0xff]
  %v502 = vld [vmem:[%s2 + $0x58] sm:$0xff]
  %v503 = vld [vmem:[%s2 + $0x60] sm:$0xff]
  %v504 = vld [vmem:[%s2 + $0x68] sm:$0xff]
  %v505 = vld [vmem:[%s2 + $0x70] sm:$0xff]
  %v506 = vld [vmem:[%s2 + $0x78] sm:$0xff]
  %v508 = vsel %vm102, %v494, 0
  %v511 = vsel %vm102, %v498, 0
  %v514 = vsel %vm102, %v502, 0
  %v517 = vsel %vm102, %v506, 0
  %519 = vmatprep.subr.mxu0 0.0
  %520 = vmatpush1.msra.mxu0 %v23
  %521 = vmatprep.subr.mxu0 0.0
  %522 = vmatpush1.msra.mxu0 %v24
  %523 = vmatprep.subr.mxu0 0.0
  %524 = vmatpush1.msra.mxu0 %v25
  %525 = vmatprep.subr.mxu0 0.0
  %526 = vmatpush1.msra.mxu0 %v26
  %527 = vmatprep.subr.mxu0 0.0
  %528 = vmatpush1.msra.mxu0 %v27
  %529 = vmatprep.subr.mxu0 0.0
  %530 = vmatpush1.msra.mxu0 %v28
  %531 = vmatprep.subr.mxu0 0.0
  %532 = vmatpush1.msra.mxu0 %v29
  %533 = vmatprep.subr.mxu0 0.0
  %534 = vmatpush1.msra.mxu0 %v30
  %535 = vmatprep.subr.mxu0 0.0
  %536 = vmatpush1.msra.mxu0 %v31
  %537 = vmatprep.subr.mxu0 0.0
  %538 = vmatpush1.msra.mxu0 %v32
  %539 = vmatprep.subr.mxu0 0.0
  %540 = vmatpush1.msra.mxu0 %v33
  %541 = vmatprep.subr.mxu0 0.0
  %542 = vmatpush1.msra.mxu0 %v34
  %543 = vmatprep.subr.mxu0 0.0
  %544 = vmatpush1.msra.mxu0 %v35
  %545 = vmatprep.subr.mxu0 0.0
  %546 = vmatpush1.msra.mxu0 %v36
  %547 = vmatprep.subr.mxu0 0.0
  %548 = vmatpush1.msra.mxu0 %v37
  %549 = vmatprep.subr.mxu0 0.0
  %550 = vmatpush1.msra.mxu0 %v38
  %551 = vmatprep.subr.mxu0 0.0
  %552 = vmatpush1.msra.mxu0 %v39
  %553 = vmatprep.subr.mxu0 0.0
  %554 = vmatpush1.msra.mxu0 %v40
  %555 = vmatprep.subr.mxu0 0.0
  %556 = vmatpush1.msra.mxu0 %v41
  %557 = vmatprep.subr.mxu0 0.0
  %558 = vmatpush1.msra.mxu0 %v42
  %559 = vmatprep.subr.mxu0 0.0
  %560 = vmatpush1.msra.mxu0 %v43
  %561 = vmatprep.subr.mxu0 0.0
  %562 = vmatpush1.msra.mxu0 %v44
  %563 = vmatprep.subr.mxu0 0.0
  %564 = vmatpush1.msra.mxu0 %v45
  %565 = vmatprep.subr.mxu0 0.0
  %566 = vmatpush1.msra.mxu0 %v46
  %567 = vmatprep.subr.mxu0 0.0
  %568 = vmatpush1.msra.mxu0 %v47
  %569 = vmatprep.subr.mxu0 0.0
  %570 = vmatpush1.msra.mxu0 %v48
  %571 = vmatprep.subr.mxu0 0.0
  %572 = vmatpush1.msra.mxu0 %v49
  %573 = vmatprep.subr.mxu0 0.0
  %574 = vmatpush1.msra.mxu0 %v50
  %575 = vmatprep.subr.mxu0 0.0
  %576 = vmatpush1.msra.mxu0 %v51
  %577 = vmatprep.subr.mxu0 0.0
  %578 = vmatpush1.msra.mxu0 %v52
  %579 = vmatprep.subr.mxu0 0.0
  %580 = vmatpush1.msra.mxu0 %v53
  %581 = vmatprep.subr.mxu0 0.0
  %582 = vmatpush1.msra.mxu0 %v54
  %583 = vmatprep.mubr.f32.mxu0 %v492
  %584 = vmatmul.mubr.f32.gmra.mrb[0].mxu0 %v491
  %v585 = vpop.f32.mrb[0].mxu0
  %v586 = vadd.f32 0.0, %v585
  %v587 = vpop.f32.mrb[0].mxu0
  %588 = vmatprep.mubr.f32.mxu0 %v496
  %589 = vmatmul.mubr.f32.gmra.mrb[0].mxu0 %v495
  %v590 = vpop.f32.mrb[0].mxu0
  %v591 = vadd.f32 0.0, %v590
  %v592 = vpop.f32.mrb[0].mxu0
  %593 = vmatprep.mubr.f32.mxu0 %v500
  %594 = vmatmul.mubr.f32.gmra.mrb[0].mxu0 %v499
  %v595 = vpop.f32.mrb[0].mxu0
  %v596 = vadd.f32 0.0, %v595
  %v597 = vpop.f32.mrb[0].mxu0
  %598 = vmatprep.mubr.f32.mxu0 %v504
  %599 = vmatmul.mubr.f32.gmra.mrb[0].mxu0 %v503
  %v600 = vpop.f32.mrb[0].mxu0
  %v601 = vadd.f32 0.0, %v600
  %v602 = vpop.f32.mrb[0].mxu0
  %603 = vdwg.mxu0
  %604 = vmatprep.subr.mxu0 0.0
  %605 = vmatpush1.msra.mxu0 %v55
  %606 = vmatprep.subr.mxu0 0.0
  %607 = vmatpush1.msra.mxu0 %v56
  %608 = vmatprep.subr.mxu0 0.0
  %609 = vmatpush1.msra.mxu0 %v57
  %610 = vmatprep.subr.mxu0 0.0
  %611 = vmatpush1.msra.mxu0 %v58
  %612 = vmatprep.subr.mxu0 0.0
  %613 = vmatpush1.msra.mxu0 %v59
  %614 = vmatprep.subr.mxu0 0.0
  %615 = vmatpush1.msra.mxu0 %v60
  %616 = vmatprep.subr.mxu0 0.0
  %617 = vmatpush1.msra.mxu0 %v61
  %618 = vmatprep.subr.mxu0 0.0
  %619 = vmatpush1.msra.mxu0 %v62
  %620 = vmatprep.subr.mxu0 0.0
  %621 = vmatpush1.msra.mxu0 %v63
  %622 = vmatprep.subr.mxu0 0.0
  %623 = vmatpush1.msra.mxu0 %v64
  %624 = vmatprep.subr.mxu0 0.0
  %625 = vmatpush1.msra.mxu0 %v65
  %626 = vmatprep.subr.mxu0 0.0
  %627 = vmatpush1.msra.mxu0 %v66
  %628 = vmatprep.subr.mxu0 0.0
  %629 = vmatpush1.msra.mxu0 %v67
  %630 = vmatprep.subr.mxu0 0.0
  %631 = vmatpush1.msra.mxu0 %v68
  %632 = vmatprep.subr.mxu0 0.0
  %633 = vmatpush1.msra.mxu0 %v69
  %634 = vmatprep.subr.mxu0 0.0
  %635 = vmatpush1.msra.mxu0 %v70
  %636 = vmatprep.subr.mxu0 0.0
  %637 = vmatpush1.msra.mxu0 %v71
  %638 = vmatprep.subr.mxu0 0.0
  %639 = vmatpush1.msra.mxu0 %v72
  %640 = vmatprep.subr.mxu0 0.0
  %641 = vmatpush1.msra.mxu0 %v73
  %642 = vmatprep.subr.mxu0 0.0
  %643 = vmatpush1.msra.mxu0 %v74
  %644 = vmatprep.subr.mxu0 0.0
  %645 = vmatpush1.msra.mxu0 %v75
  %646 = vmatprep.subr.mxu0 0.0
  %647 = vmatpush1.msra.mxu0 %v76
  %648 = vmatprep.subr.mxu0 0.0
  %649 = vmatpush1.msra.mxu0 %v77
  %650 = vmatprep.subr.mxu0 0.0
  %651 = vmatpush1.msra.mxu0 %v78
  %652 = vmatprep.subr.mxu0 0.0
  %653 = vmatpush1.msra.mxu0 %v79
  %654 = vmatprep.subr.mxu0 0.0
  %655 = vmatpush1.msra.mxu0 %v80
  %656 = vmatprep.subr.mxu0 0.0
  %657 = vmatpush1.msra.mxu0 %v81
  %658 = vmatprep.subr.mxu0 0.0
  %659 = vmatpush1.msra.mxu0 %v82
  %660 = vmatprep.subr.mxu0 0.0
  %661 = vmatpush1.msra.mxu0 %v83
  %662 = vmatprep.subr.mxu0 0.0
  %663 = vmatpush1.msra.mxu0 %v84
  %664 = vmatprep.subr.mxu0 0.0
  %665 = vmatpush1.msra.mxu0 %v117
  %666 = vmatprep.subr.mxu0 0.0
  %667 = vmatpush1.msra.mxu0 0.0
  %668 = vmatprep.mubr.f32.mxu0 %v508
  %669 = vmatmul.mubr.f32.gmra.mrb[0].mxu0 %v493
  %v670 = vpop.f32.mrb[0].mxu0
  %v671 = vadd.f32 %v586, %v670
  %v672 = vpop.f32.mrb[0].mxu0
  %673 = vmatprep.mubr.f32.mxu0 %v511
  %674 = vmatmul.mubr.f32.gmra.mrb[0].mxu0 %v497
  %v675 = vpop.f32.mrb[0].mxu0
  %v676 = vadd.f32 %v591, %v675
  %v677 = vpop.f32.mrb[0].mxu0
  %678 = vmatprep.mubr.f32.mxu0 %v514
  %679 = vmatmul.mubr.f32.gmra.mrb[0].mxu0 %v501
  %v680 = vpop.f32.mrb[0].mxu0
  %v681 = vadd.f32 %v596, %v680
  %v682 = vpop.f32.mrb[0].mxu0
  %683 = vmatprep.mubr.f32.mxu0 %v517
  %684 = vmatmul.mubr.f32.gmra.mrb[0].mxu0 %v505
  %v685 = vpop.f32.mrb[0].mxu0
  %v686 = vadd.f32 %v601, %v685
  %v687 = vpop.f32.mrb[0].mxu0
  %688 = vdwg.mxu0
  %v689 = vmax.f32 %v487, %v671
  %v690 = vmax.f32 %v488, %v676
  %v691 = vmax.f32 %v489, %v681
  %v692 = vmax.f32 %v490, %v686
  %v693 = vld [vmem:[%s3] sm:$0xff]
  %v694 = vld [vmem:[%s3 + $0x8] sm:$0xff]
  %v695 = vld [vmem:[%s3 + $0x10] sm:$0xff]
  %v696 = vld [vmem:[%s3 + $0x18] sm:$0xff]
  %v697 = vld [vmem:[%s3 + $0x20] sm:$0xff]
  %v698 = vld [vmem:[%s3 + $0x28] sm:$0xff]
  %v699 = vld [vmem:[%s3 + $0x30] sm:$0xff]
  %v700 = vld [vmem:[%s3 + $0x38] sm:$0xff]
  %v701 = vld [vmem:[%s3 + $0x40] sm:$0xff]
  %v702 = vld [vmem:[%s3 + $0x48] sm:$0xff]
  %v703 = vld [vmem:[%s3 + $0x50] sm:$0xff]
  %v704 = vld [vmem:[%s3 + $0x58] sm:$0xff]
  %v705 = vld [vmem:[%s3 + $0x60] sm:$0xff]
  %v706 = vld [vmem:[%s3 + $0x68] sm:$0xff]
  %v707 = vld [vmem:[%s3 + $0x70] sm:$0xff]
  %v708 = vld [vmem:[%s3 + $0x78] sm:$0xff]
  %v710 = vsel %vm102, %v696, 0
  %v713 = vsel %vm102, %v700, 0
  %v716 = vsel %vm102, %v704, 0
  %v719 = vsel %vm102, %v708, 0
  %721 = vmatprep.subr.mxu0 0.0
  %722 = vmatpush1.msra.mxu0 %v23
  %723 = vmatprep.subr.mxu0 0.0
  %724 = vmatpush1.msra.mxu0 %v24
  %725 = vmatprep.subr.mxu0 0.0
  %726 = vmatpush1.msra.mxu0 %v25
  %727 = vmatprep.subr.mxu0 0.0
  %728 = vmatpush1.msra.mxu0 %v26
  %729 = vmatprep.subr.mxu0 0.0
  %730 = vmatpush1.msra.mxu0 %v27
  %731 = vmatprep.subr.mxu0 0.0
  %732 = vmatpush1.msra.mxu0 %v28
  %733 = vmatprep.subr.mxu0 0.0
  %734 = vmatpush1.msra.mxu0 %v29
  %735 = vmatprep.subr.mxu0 0.0
  %736 = vmatpush1.msra.mxu0 %v30
  %737 = vmatprep.subr.mxu0 0.0
  %738 = vmatpush1.msra.mxu0 %v31
  %739 = vmatprep.subr.mxu0 0.0
  %740 = vmatpush1.msra.mxu0 %v32
  %741 = vmatprep.subr.mxu0 0.0
  %742 = vmatpush1.msra.mxu0 %v33
  %743 = vmatprep.subr.mxu0 0.0
  %744 = vmatpush1.msra.mxu0 %v34
  %745 = vmatprep.subr.mxu0 0.0
  %746 = vmatpush1.msra.mxu0 %v35
  %747 = vmatprep.subr.mxu0 0.0
  %748 = vmatpush1.msra.mxu0 %v36
  %749 = vmatprep.subr.mxu0 0.0
  %750 = vmatpush1.msra.mxu0 %v37
  %751 = vmatprep.subr.mxu0 0.0
  %752 = vmatpush1.msra.mxu0 %v38
  %753 = vmatprep.subr.mxu0 0.0
  %754 = vmatpush1.msra.mxu0 %v39
  %755 = vmatprep.subr.mxu0 0.0
  %756 = vmatpush1.msra.mxu0 %v40
  %757 = vmatprep.subr.mxu0 0.0
  %758 = vmatpush1.msra.mxu0 %v41
  %759 = vmatprep.subr.mxu0 0.0
  %760 = vmatpush1.msra.mxu0 %v42
  %761 = vmatprep.subr.mxu0 0.0
  %762 = vmatpush1.msra.mxu0 %v43
  %763 = vmatprep.subr.mxu0 0.0
  %764 = vmatpush1.msra.mxu0 %v44
  %765 = vmatprep.subr.mxu0 0.0
  %766 = vmatpush1.msra.mxu0 %v45
  %767 = vmatprep.subr.mxu0 0.0
  %768 = vmatpush1.msra.mxu0 %v46
  %769 = vmatprep.subr.mxu0 0.0
  %770 = vmatpush1.msra.mxu0 %v47
  %771 = vmatprep.subr.mxu0 0.0
  %772 = vmatpush1.msra.mxu0 %v48
  %773 = vmatprep.subr.mxu0 0.0
  %774 = vmatpush1.msra.mxu0 %v49
  %775 = vmatprep.subr.mxu0 0.0
  %776 = vmatpush1.msra.mxu0 %v50
  %777 = vmatprep.subr.mxu0 0.0
  %778 = vmatpush1.msra.mxu0 %v51
  %779 = vmatprep.subr.mxu0 0.0
  %780 = vmatpush1.msra.mxu0 %v52
  %781 = vmatprep.subr.mxu0 0.0
  %782 = vmatpush1.msra.mxu0 %v53
  %783 = vmatprep.subr.mxu0 0.0
  %784 = vmatpush1.msra.mxu0 %v54
  %785 = vmatprep.mubr.f32.mxu0 %v694
  %786 = vmatmul.mubr.f32.gmra.mrb[0].mxu0 %v693
  %v787 = vpop.f32.mrb[0].mxu0
  %v788 = vadd.f32 0.0, %v787
  %v789 = vpop.f32.mrb[0].mxu0
  %790 = vmatprep.mubr.f32.mxu0 %v698
  %791 = vmatmul.mubr.f32.gmra.mrb[0].mxu0 %v697
  %v792 = vpop.f32.mrb[0].mxu0
  %v793 = vadd.f32 0.0, %v792
  %v794 = vpop.f32.mrb[0].mxu0
  %795 = vmatprep.mubr.f32.mxu0 %v702
  %796 = vmatmul.mubr.f32.gmra.mrb[0].mxu0 %v701
  %v797 = vpop.f32.mrb[0].mxu0
  %v798 = vadd.f32 0.0, %v797
  %v799 = vpop.f32.mrb[0].mxu0
  %800 = vmatprep.mubr.f32.mxu0 %v706
  %801 = vmatmul.mubr.f32.gmra.mrb[0].mxu0 %v705
  %v802 = vpop.f32.mrb[0].mxu0
  %v803 = vadd.f32 0.0, %v802
  %v804 = vpop.f32.mrb[0].mxu0
  %805 = vdwg.mxu0
  %806 = vmatprep.subr.mxu0 0.0
  %807 = vmatpush1.msra.mxu0 %v55
  %808 = vmatprep.subr.mxu0 0.0
  %809 = vmatpush1.msra.mxu0 %v56
  %810 = vmatprep.subr.mxu0 0.0
  %811 = vmatpush1.msra.mxu0 %v57
  %812 = vmatprep.subr.mxu0 0.0
  %813 = vmatpush1.msra.mxu0 %v58
  %814 = vmatprep.subr.mxu0 0.0
  %815 = vmatpush1.msra.mxu0 %v59
  %816 = vmatprep.subr.mxu0 0.0
  %817 = vmatpush1.msra.mxu0 %v60
  %818 = vmatprep.subr.mxu0 0.0
  %819 = vmatpush1.msra.mxu0 %v61
  %820 = vmatprep.subr.mxu0 0.0
  %821 = vmatpush1.msra.mxu0 %v62
  %822 = vmatprep.subr.mxu0 0.0
  %823 = vmatpush1.msra.mxu0 %v63
  %824 = vmatprep.subr.mxu0 0.0
  %825 = vmatpush1.msra.mxu0 %v64
  %826 = vmatprep.subr.mxu0 0.0
  %827 = vmatpush1.msra.mxu0 %v65
  %828 = vmatprep.subr.mxu0 0.0
  %829 = vmatpush1.msra.mxu0 %v66
  %830 = vmatprep.subr.mxu0 0.0
  %831 = vmatpush1.msra.mxu0 %v67
  %832 = vmatprep.subr.mxu0 0.0
  %833 = vmatpush1.msra.mxu0 %v68
  %834 = vmatprep.subr.mxu0 0.0
  %835 = vmatpush1.msra.mxu0 %v69
  %836 = vmatprep.subr.mxu0 0.0
  %837 = vmatpush1.msra.mxu0 %v70
  %838 = vmatprep.subr.mxu0 0.0
  %839 = vmatpush1.msra.mxu0 %v71
  %840 = vmatprep.subr.mxu0 0.0
  %841 = vmatpush1.msra.mxu0 %v72
  %842 = vmatprep.subr.mxu0 0.0
  %843 = vmatpush1.msra.mxu0 %v73
  %844 = vmatprep.subr.mxu0 0.0
  %845 = vmatpush1.msra.mxu0 %v74
  %846 = vmatprep.subr.mxu0 0.0
  %847 = vmatpush1.msra.mxu0 %v75
  %848 = vmatprep.subr.mxu0 0.0
  %849 = vmatpush1.msra.mxu0 %v76
  %850 = vmatprep.subr.mxu0 0.0
  %851 = vmatpush1.msra.mxu0 %v77
  %852 = vmatprep.subr.mxu0 0.0
  %853 = vmatpush1.msra.mxu0 %v78
  %854 = vmatprep.subr.mxu0 0.0
  %855 = vmatpush1.msra.mxu0 %v79
  %856 = vmatprep.subr.mxu0 0.0
  %857 = vmatpush1.msra.mxu0 %v80
  %858 = vmatprep.subr.mxu0 0.0
  %859 = vmatpush1.msra.mxu0 %v81
  %860 = vmatprep.subr.mxu0 0.0
  %861 = vmatpush1.msra.mxu0 %v82
  %862 = vmatprep.subr.mxu0 0.0
  %863 = vmatpush1.msra.mxu0 %v83
  %864 = vmatprep.subr.mxu0 0.0
  %865 = vmatpush1.msra.mxu0 %v84
  %866 = vmatprep.subr.mxu0 0.0
  %867 = vmatpush1.msra.mxu0 %v117
  %868 = vmatprep.subr.mxu0 0.0
  %869 = vmatpush1.msra.mxu0 0.0
  %870 = vmatprep.mubr.f32.mxu0 %v710
  %871 = vmatmul.mubr.f32.gmra.mrb[0].mxu0 %v695
  %v872 = vpop.f32.mrb[0].mxu0
  %v873 = vadd.f32 %v788, %v872
  %v874 = vpop.f32.mrb[0].mxu0
  %875 = vmatprep.mubr.f32.mxu0 %v713
  %876 = vmatmul.mubr.f32.gmra.mrb[0].mxu0 %v699
  %v877 = vpop.f32.mrb[0].mxu0
  %v878 = vadd.f32 %v793, %v877
  %v879 = vpop.f32.mrb[0].mxu0
  %880 = vmatprep.mubr.f32.mxu0 %v716
  %881 = vmatmul.mubr.f32.gmra.mrb[0].mxu0 %v703
  %v882 = vpop.f32.mrb[0].mxu0
  %v883 = vadd.f32 %v798, %v882
  %v884 = vpop.f32.mrb[0].mxu0
  %885 = vmatprep.mubr.f32.mxu0 %v719
  %886 = vmatmul.mubr.f32.gmra.mrb[0].mxu0 %v707
  %v887 = vpop.f32.mrb[0].mxu0
  %v888 = vadd.f32 %v803, %v887
  %v889 = vpop.f32.mrb[0].mxu0
  %890 = vdwg.mxu0
  %v891 = vmax.f32 %v689, %v873
  %v892 = vmax.f32 %v690, %v878
  %v893 = vmax.f32 %v691, %v883
  %v894 = vmax.f32 %v692, %v888
  %v895 = vld [vmem:[%s5] sm:$0x1]
  %v897 = vlaneseq
  %v898 = vshrl.u32 %v897, 7
  %v899 = vsub.s32 0, %v898
  %v900 = vrot.slane %v895, %v899
  %v902 = vadd.f32 %v891, %v900
  %v903 = vadd.f32 %v892, %v900
  %v904 = vadd.f32 %v893, %v900
  %v905 = vadd.f32 %v894, %v900
  %v906 = vmax.f32 %v902, 0.0
  %v907 = vmax.f32 %v903, 0.0
  %v908 = vmax.f32 %v904, 0.0
  %v909 = vmax.f32 %v905, 0.0
  %vm910 = vcmask 408576
  %911 = vst.msk [vmem:[%s6] sm:$0xff] %vm910, %v906
  %912 = vst.msk [vmem:[%s6 + $0x8] sm:$0xff] %vm910, %v907
  %913 = vst.msk [vmem:[%s6 + $0x10] sm:$0xff] %vm910, %v908
  %914 = vst.msk [vmem:[%s6 + $0x18] sm:$0xff] %vm910, %v909
  // Predicated region
  $region26: #{net_forward.4} parent=0 // pred_check
    _
  $region27: #{net_forward.4} parent=0 // pred_check_branch
    %916 = sbr.rel (0) target = $region29
  $region28: #{net_forward.4} parent=0 // pred_region
    _
  $region29: #{net_forward.4} parent=0 // pred_fallthru
    _
  // Predicated region
  $region30: #{net_forward.4} parent=0 // pred_check
    _
  $region31: #{net_forward.4} parent=0 // pred_check_branch
    %918 = sbr.rel (0) target = $region33
  $region32: #{net_forward.4} parent=0 // pred_region
    _
  $region33: #{net_forward.4} parent=0 // pred_fallthru
    _

// kernel: net_forward.5
$region0: #{net_forward.5}
  #allocation0 [shape = 'u32[]', space=smem, size = 0x4, offset = 0x4, fixed_abs, tag = 'smem constant byte address 0x4 - core index']
  #allocation1 [shape = 'u32[144,128]{1,0:T(1,128)}', space=vmem, size = 0x12000, scoped, tag = 'internal scratch']
  %s0 = inlined_call_operand.vmem [shape: f32[2,800], index: 0, kind: input, shape index: {}]
  %s1 = inlined_call_operand.vmem [shape: f32[800,256], index: 1, kind: input, shape index: {}]
  %s2 = inlined_call_operand.vmem [shape: f32[1,256], index: 2, kind: input, shape index: {}]
  %s3 = inlined_call_operand.vmem [shape: f32[256,10], index: 3, kind: input, shape index: {}]
  %s4 = inlined_call_operand.vmem [shape: f32[1,10], index: 4, kind: input, shape index: {}]
  %s5 = inlined_call_operand.hbm [shape: f32[2,10], index: 5, kind: output, shape index: {}]
  %s6 = sld [smem:[#allocation0]]
  $region30: #{net_forward.5} parent=0
    _
  %s8 = ssub.s32 1, %s6
  %s9 = scalar_select 0, %s8, %s6
  $region1: #{net_forward.5} parent=0
    #allocation2 [shape = 'u8[1024]{0}', space=vmem, size = 0x400, scoped, tag = 'output window, operand 0, single buffered']
    #allocation3 [shape = 's32[1]{0}', space=sflag, size = 0x4, scoped, tag = 'scoped memory for net_forward.5']
    %10 = vsyncpa [#allocation3], 0
    // Predicated region
    $region2: #{net_forward.5} parent=1 // pred_check
      _
    $region3: #{net_forward.5} parent=1 // pred_check_branch
      %12 = sbr.rel (0) target = $region5
    $region4: #{net_forward.5} parent=1 // pred_region
      _
    $region5: #{net_forward.5} parent=1 // pred_fallthru
      _
    // Predicated region
    $region6: #{net_forward.5} parent=1 // pred_check
      _
    $region7: #{net_forward.5} parent=1 // pred_check_branch
      %14 = sbr.rel (0) target = $region9
    $region8: #{net_forward.5} parent=1 // pred_region
      _
    $region9: #{net_forward.5} parent=1 // pred_fallthru
      _
    // Predicated region
    $region10: #{net_forward.5} parent=1 // pred_check
      _
    $region11: #{net_forward.5} parent=1 // pred_check_branch
      %16 = sbr.rel (0) target = $region13
    $region12: #{net_forward.5} parent=1 // pred_region
      _
    $region13: #{net_forward.5} parent=1 // pred_fallthru
      _
    // Predicated region
    $region14: #{net_forward.5} parent=1 // pred_check
      _
    $region15: #{net_forward.5} parent=1 // pred_check_branch
      %18 = sbr.rel (0) target = $region17
    $region16: #{net_forward.5} parent=1 // pred_region
      _
    $region17: #{net_forward.5} parent=1 // pred_fallthru
      _
    // Predicated region
    $region18: #{net_forward.5} parent=1 // pred_check
      _
    $region19: #{net_forward.5} parent=1 // pred_check_branch
      %20 = sbr.rel (0) target = $region21
    $region20: #{net_forward.5} parent=1 // pred_region
      _
    $region21: #{net_forward.5} parent=1 // pred_fallthru
      _
    %v21 = vld [vmem:[%s0] sm:$0xff]
    %v22 = vld [vmem:[%s0 + $0x8] sm:$0x3f]
    %v23 = vld [vmem:[%s1] sm:$0xff]
    %v24 = vld [vmem:[%s1 + $0x8] sm:$0xff]
    %v25 = vld [vmem:[%s1 + $0x10] sm:$0xff]
    %v26 = vld [vmem:[%s1 + $0x18] sm:$0xff]
    %v27 = vld [vmem:[%s1 + $0x20] sm:$0xff]
    %v28 = vld [vmem:[%s1 + $0x28] sm:$0xff]
    %v29 = vld [vmem:[%s1 + $0x30] sm:$0xff]
    %v30 = vld [vmem:[%s1 + $0x38] sm:$0xff]
    %v31 = vld [vmem:[%s1 + $0x40] sm:$0xff]
    %v32 = vld [vmem:[%s1 + $0x48] sm:$0xff]
    %v33 = vld [vmem:[%s1 + $0x50] sm:$0xff]
    %v34 = vld [vmem:[%s1 + $0x58] sm:$0xff]
    %v35 = vld [vmem:[%s1 + $0x60] sm:$0xff]
    %v36 = vld [vmem:[%s1 + $0x68] sm:$0xff]
    %v37 = vld [vmem:[%s1 + $0x70] sm:$0xff]
    %v38 = vld [vmem:[%s1 + $0x78] sm:$0xff]
    %v39 = vld [vmem:[%s1 + $0x80] sm:$0xff]
    %v40 = vld [vmem:[%s1 + $0x88] sm:$0xff]
    %v41 = vld [vmem:[%s1 + $0x90] sm:$0xff]
    %v42 = vld [vmem:[%s1 + $0x98] sm:$0xff]
    %v43 = vld [vmem:[%s1 + $0xa0] sm:$0xff]
    %v44 = vld [vmem:[%s1 + $0xa8] sm:$0xff]
    %v45 = vld [vmem:[%s1 + $0xb0] sm:$0xff]
    %v46 = vld [vmem:[%s1 + $0xb8] sm:$0xff]
    %v47 = vld [vmem:[%s1 + $0xc0] sm:$0xff]
    %v48 = vld [vmem:[%s1 + $0xc8] sm:$0xff]
    %v49 = vld [vmem:[%s1 + $0xd0] sm:$0xff]
    %v50 = vld [vmem:[%s1 + $0xd8] sm:$0xff]
    %v51 = vld [vmem:[%s1 + $0xe0] sm:$0xff]
    %v52 = vld [vmem:[%s1 + $0xe8] sm:$0xff]
    %v53 = vld [vmem:[%s1 + $0xf0] sm:$0xff]
    %v54 = vld [vmem:[%s1 + $0xf8] sm:$0xff]
    %v55 = vld [vmem:[%s1 + $0x100] sm:$0xff]
    %v56 = vld [vmem:[%s1 + $0x108] sm:$0xff]
    %v57 = vld [vmem:[%s1 + $0x110] sm:$0xff]
    %v58 = vld [vmem:[%s1 + $0x118] sm:$0xff]
    %v59 = vld [vmem:[%s1 + $0x120] sm:$0xff]
    %v60 = vld [vmem:[%s1 + $0x128] sm:$0xff]
    %v61 = vld [vmem:[%s1 + $0x130] sm:$0xff]
    %v62 = vld [vmem:[%s1 + $0x138] sm:$0xff]
    %v63 = vld [vmem:[%s1 + $0x140] sm:$0xff]
    %v64 = vld [vmem:[%s1 + $0x148] sm:$0xff]
    %v65 = vld [vmem:[%s1 + $0x150] sm:$0xff]
    %v66 = vld [vmem:[%s1 + $0x158] sm:$0xff]
    %v67 = vld [vmem:[%s1 + $0x160] sm:$0xff]
    %v68 = vld [vmem:[%s1 + $0x168] sm:$0xff]
    %v69 = vld [vmem:[%s1 + $0x170] sm:$0xff]
    %v70 = vld [vmem:[%s1 + $0x178] sm:$0xff]
    %v71 = vld [vmem:[%s1 + $0x180] sm:$0xff]
    %v72 = vld [vmem:[%s1 + $0x188] sm:$0xff]
    %v73 = vld [vmem:[%s1 + $0x190] sm:$0xff]
    %v74 = vld [vmem:[%s1 + $0x198] sm:$0xff]
    %v75 = vld [vmem:[%s1 + $0x1a0] sm:$0xff]
    %v76 = vld [vmem:[%s1 + $0x1a8] sm:$0xff]
    %v77 = vld [vmem:[%s1 + $0x1b0] sm:$0xff]
    %v78 = vld [vmem:[%s1 + $0x1b8] sm:$0xff]
    %v79 = vld [vmem:[%s1 + $0x1c0] sm:$0xff]
    %v80 = vld [vmem:[%s1 + $0x1c8] sm:$0xff]
    %v81 = vld [vmem:[%s1 + $0x1d0] sm:$0xff]
    %v82 = vld [vmem:[%s1 + $0x1d8] sm:$0xff]
    %v83 = vld [vmem:[%s1 + $0x1e0] sm:$0xff]
    %v84 = vld [vmem:[%s1 + $0x1e8] sm:$0xff]
    %v85 = vld [vmem:[%s1 + $0x1f0] sm:$0xff]
    %v86 = vld [vmem:[%s1 + $0x1f8] sm:$0xff]
    %v87 = vld [vmem:[%s1 + $0x200] sm:$0xff]
    %v88 = vld [vmem:[%s1 + $0x208] sm:$0xff]
    %v89 = vld [vmem:[%s1 + $0x210] sm:$0xff]
    %v90 = vld [vmem:[%s1 + $0x218] sm:$0xff]
    %v91 = vld [vmem:[%s1 + $0x220] sm:$0xff]
    %v92 = vld [vmem:[%s1 + $0x228] sm:$0xff]
    %v93 = vld [vmem:[%s1 + $0x230] sm:$0xff]
    %v94 = vld [vmem:[%s1 + $0x238] sm:$0xff]
    %v95 = vld [vmem:[%s1 + $0x240] sm:$0xff]
    %v96 = vld [vmem:[%s1 + $0x248] sm:$0xff]
    %v97 = vld [vmem:[%s1 + $0x250] sm:$0xff]
    %v98 = vld [vmem:[%s1 + $0x258] sm:$0xff]
    %v99 = vld [vmem:[%s1 + $0x260] sm:$0xff]
    %v100 = vld [vmem:[%s1 + $0x268] sm:$0xff]
    %v101 = vld [vmem:[%s1 + $0x270] sm:$0xff]
    %v102 = vld [vmem:[%s1 + $0x278] sm:$0xff]
    %v103 = vld [vmem:[%s1 + $0x280] sm:$0xff]
    %v104 = vld [vmem:[%s1 + $0x288] sm:$0xff]
    %v105 = vld [vmem:[%s1 + $0x290] sm:$0xff]
    %v106 = vld [vmem:[%s1 + $0x298] sm:$0xff]
    %v107 = vld [vmem:[%s1 + $0x2a0] sm:$0xff]
    %v108 = vld [vmem:[%s1 + $0x2a8] sm:$0xff]
    %v109 = vld [vmem:[%s1 + $0x2b0] sm:$0xff]
    %v110 = vld [vmem:[%s1 + $0x2b8] sm:$0xff]
    %v111 = vld [vmem:[%s1 + $0x2c0] sm:$0xff]
    %v112 = vld [vmem:[%s1 + $0x2c8] sm:$0xff]
    %v113 = vld [vmem:[%s1 + $0x2d0] sm:$0xff]
    %v114 = vld [vmem:[%s1 + $0x2d8] sm:$0xff]
    %v115 = vld [vmem:[%s1 + $0x2e0] sm:$0xff]
    %v116 = vld [vmem:[%s1 + $0x2e8] sm:$0xff]
    %v117 = vld [vmem:[%s1 + $0x2f0] sm:$0xff]
    %v118 = vld [vmem:[%s1 + $0x2f8] sm:$0xff]
    %v119 = vld [vmem:[%s1 + $0x300] sm:$0xff]
    %v120 = vld [vmem:[%s1 + $0x308] sm:$0xff]
    %v121 = vld [vmem:[%s1 + $0x310] sm:$0xff]
    %v122 = vld [vmem:[%s1 + $0x318] sm:$0xff]
    %v123 = vld [vmem:[%s1 + $0x320] sm:$0xff]
    %v124 = vld [vmem:[%s1 + $0x328] sm:$0xff]
    %v125 = vld [vmem:[%s1 + $0x330] sm:$0xff]
    %v126 = vld [vmem:[%s1 + $0x338] sm:$0xff]
    %v127 = vld [vmem:[%s1 + $0x340] sm:$0xff]
    %v128 = vld [vmem:[%s1 + $0x348] sm:$0xff]
    %v129 = vld [vmem:[%s1 + $0x350] sm:$0xff]
    %v130 = vld [vmem:[%s1 + $0x358] sm:$0xff]
    %v131 = vld [vmem:[%s1 + $0x360] sm:$0xff]
    %v132 = vld [vmem:[%s1 + $0x368] sm:$0xff]
    %v133 = vld [vmem:[%s1 + $0x370] sm:$0xff]
    %v134 = vld [vmem:[%s1 + $0x378] sm:$0xff]
    %v135 = vld [vmem:[%s1 + $0x380] sm:$0xff]
    %v136 = vld [vmem:[%s1 + $0x388] sm:$0xff]
    %v137 = vld [vmem:[%s1 + $0x390] sm:$0xff]
    %v138 = vld [vmem:[%s1 + $0x398] sm:$0xff]
    %v139 = vld [vmem:[%s1 + $0x3a0] sm:$0xff]
    %v140 = vld [vmem:[%s1 + $0x3a8] sm:$0xff]
    %v141 = vld [vmem:[%s1 + $0x3b0] sm:$0xff]
    %v142 = vld [vmem:[%s1 + $0x3b8] sm:$0xff]
    %v143 = vld [vmem:[%s1 + $0x3c0] sm:$0xff]
    %v144 = vld [vmem:[%s1 + $0x3c8] sm:$0xff]
    %v145 = vld [vmem:[%s1 + $0x3d0] sm:$0xff]
    %v146 = vld [vmem:[%s1 + $0x3d8] sm:$0xff]
    %v147 = vld [vmem:[%s1 + $0x3e0] sm:$0xff]
    %v148 = vld [vmem:[%s1 + $0x3e8] sm:$0xff]
    %v149 = vld [vmem:[%s1 + $0x3f0] sm:$0xff]
    %v150 = vld [vmem:[%s1 + $0x3f8] sm:$0xff]
    %v151 = vld [vmem:[%s1 + $0x400] sm:$0xff]
    %v152 = vld [vmem:[%s1 + $0x408] sm:$0xff]
    %v153 = vld [vmem:[%s1 + $0x410] sm:$0xff]
    %v154 = vld [vmem:[%s1 + $0x418] sm:$0xff]
    %v155 = vld [vmem:[%s1 + $0x420] sm:$0xff]
    %v156 = vld [vmem:[%s1 + $0x428] sm:$0xff]
    %v157 = vld [vmem:[%s1 + $0x430] sm:$0xff]
    %v158 = vld [vmem:[%s1 + $0x438] sm:$0xff]
    %v159 = vld [vmem:[%s1 + $0x440] sm:$0xff]
    %v160 = vld [vmem:[%s1 + $0x448] sm:$0xff]
    %v161 = vld [vmem:[%s1 + $0x450] sm:$0xff]
    %v162 = vld [vmem:[%s1 + $0x458] sm:$0xff]
    %v163 = vld [vmem:[%s1 + $0x460] sm:$0xff]
    %v164 = vld [vmem:[%s1 + $0x468] sm:$0xff]
    %v165 = vld [vmem:[%s1 + $0x470] sm:$0xff]
    %v166 = vld [vmem:[%s1 + $0x478] sm:$0xff]
    %v167 = vld [vmem:[%s1 + $0x480] sm:$0xff]
    %v168 = vld [vmem:[%s1 + $0x488] sm:$0xff]
    %v169 = vld [vmem:[%s1 + $0x490] sm:$0xff]
    %v170 = vld [vmem:[%s1 + $0x498] sm:$0xff]
    %v171 = vld [vmem:[%s1 + $0x4a0] sm:$0xff]
    %v172 = vld [vmem:[%s1 + $0x4a8] sm:$0xff]
    %v173 = vld [vmem:[%s1 + $0x4b0] sm:$0xff]
    %v174 = vld [vmem:[%s1 + $0x4b8] sm:$0xff]
    %v175 = vld [vmem:[%s1 + $0x4c0] sm:$0xff]
    %v176 = vld [vmem:[%s1 + $0x4c8] sm:$0xff]
    %v177 = vld [vmem:[%s1 + $0x4d0] sm:$0xff]
    %v178 = vld [vmem:[%s1 + $0x4d8] sm:$0xff]
    %v179 = vld [vmem:[%s1 + $0x4e0] sm:$0xff]
    %v180 = vld [vmem:[%s1 + $0x4e8] sm:$0xff]
    %v181 = vld [vmem:[%s1 + $0x4f0] sm:$0xff]
    %v182 = vld [vmem:[%s1 + $0x4f8] sm:$0xff]
    %v183 = vld [vmem:[%s1 + $0x500] sm:$0xff]
    %v184 = vld [vmem:[%s1 + $0x508] sm:$0xff]
    %v185 = vld [vmem:[%s1 + $0x510] sm:$0xff]
    %v186 = vld [vmem:[%s1 + $0x518] sm:$0xff]
    %v187 = vld [vmem:[%s1 + $0x520] sm:$0xff]
    %v188 = vld [vmem:[%s1 + $0x528] sm:$0xff]
    %v189 = vld [vmem:[%s1 + $0x530] sm:$0xff]
    %v190 = vld [vmem:[%s1 + $0x538] sm:$0xff]
    %v191 = vld [vmem:[%s1 + $0x540] sm:$0xff]
    %v192 = vld [vmem:[%s1 + $0x548] sm:$0xff]
    %v193 = vld [vmem:[%s1 + $0x550] sm:$0xff]
    %v194 = vld [vmem:[%s1 + $0x558] sm:$0xff]
    %v195 = vld [vmem:[%s1 + $0x560] sm:$0xff]
    %v196 = vld [vmem:[%s1 + $0x568] sm:$0xff]
    %v197 = vld [vmem:[%s1 + $0x570] sm:$0xff]
    %v198 = vld [vmem:[%s1 + $0x578] sm:$0xff]
    %v199 = vld [vmem:[%s1 + $0x580] sm:$0xff]
    %v200 = vld [vmem:[%s1 + $0x588] sm:$0xff]
    %v201 = vld [vmem:[%s1 + $0x590] sm:$0xff]
    %v202 = vld [vmem:[%s1 + $0x598] sm:$0xff]
    %v203 = vld [vmem:[%s1 + $0x5a0] sm:$0xff]
    %v204 = vld [vmem:[%s1 + $0x5a8] sm:$0xff]
    %v205 = vld [vmem:[%s1 + $0x5b0] sm:$0xff]
    %v206 = vld [vmem:[%s1 + $0x5b8] sm:$0xff]
    %v207 = vld [vmem:[%s1 + $0x5c0] sm:$0xff]
    %v208 = vld [vmem:[%s1 + $0x5c8] sm:$0xff]
    %v209 = vld [vmem:[%s1 + $0x5d0] sm:$0xff]
    %v210 = vld [vmem:[%s1 + $0x5d8] sm:$0xff]
    %v211 = vld [vmem:[%s1 + $0x5e0] sm:$0xff]
    %v212 = vld [vmem:[%s1 + $0x5e8] sm:$0xff]
    %v213 = vld [vmem:[%s1 + $0x5f0] sm:$0xff]
    %v214 = vld [vmem:[%s1 + $0x5f8] sm:$0xff]
    %v215 = vld [vmem:[%s1 + $0x600] sm:$0xff]
    %v216 = vld [vmem:[%s1 + $0x608] sm:$0xff]
    %v217 = vld [vmem:[%s1 + $0x610] sm:$0xff]
    %v218 = vld [vmem:[%s1 + $0x618] sm:$0xff]
    %v219 = vld [vmem:[%s1 + $0x620] sm:$0xff]
    %v220 = vld [vmem:[%s1 + $0x628] sm:$0xff]
    %v221 = vld [vmem:[%s1 + $0x630] sm:$0xff]
    %v222 = vld [vmem:[%s1 + $0x638] sm:$0xff]
    %v223 = vld [vmem:[%s2] sm:$0x3]
    %v225 = vlaneseq
    %v226 = vshrl.u32 %v225, 7
    %v227 = vsub.s32 0, %v226
    %v228 = vrot.slane %v223, %v227
    %v229 = vlaneseq
    %v230 = vshrl.u32 %v229, 7
    %v231 = vsub.s32 1, %v230
    %v232 = vrot.slane %v223, %v231
    %v237 = vcombine.high %v21, %v21
    %v239 = vunpack.c.l.s4 1983009808
    %v240 = vunpack.c.0.s8 %v239
    %v241 = vlaneseq
    %v242 = vshrl.u32 %v241, 7
    %v243 = vsub.s32 %v240, %v242
    %v244 = vrot.slane %v21, %v243
    %v246 = vunpack.c.l.s4 1983009808
    %v247 = vunpack.c.0.s8 %v246
    %v248 = vlaneseq
    %v249 = vshrl.u32 %v248, 7
    %v250 = vsub.s32 %v247, %v249
    %v251 = vrot.slane %v237, %v250
    %v252 = vcombine.high %v244, %v244
    %v253 = vcombine.high %v251, %v251
    %v254 = vcombine.high %v22, %v22
    %v256 = vunpack.c.l.s4 1983009808
    %v257 = vunpack.c.0.s8 %v256
    %v258 = vlaneseq
    %v259 = vshrl.u32 %v258, 7
    %v260 = vsub.s32 %v257, %v259
    %v261 = vrot.slane %v22, %v260
    %v263 = vunpack.c.l.s4 1983009808
    %v264 = vunpack.c.0.s8 %v263
    %v265 = vlaneseq
    %v266 = vshrl.u32 %v265, 7
    %v267 = vsub.s32 %v264, %v266
    %v268 = vrot.slane %v254, %v267
    %v269 = vcombine.high %v261, %v261
    %vm276 = vcmask 261120
    %v277 = vsel %vm276, %v268, 0
    %279 = vmatprep.subr.mxu0 %v24
    %280 = vmatpush1.msra.mxu0 %v23
    %281 = vmatprep.subr.mxu0 %v26
    %282 = vmatpush1.msra.mxu0 %v25
    %283 = vmatprep.subr.mxu0 %v28
    %284 = vmatpush1.msra.mxu0 %v27
    %285 = vmatprep.subr.mxu0 %v30
    %286 = vmatpush1.msra.mxu0 %v29
    %287 = vmatprep.subr.mxu0 %v32
    %288 = vmatpush1.msra.mxu0 %v31
    %289 = vmatprep.subr.mxu0 %v34
    %290 = vmatpush1.msra.mxu0 %v33
    %291 = vmatprep.subr.mxu0 %v36
    %292 = vmatpush1.msra.mxu0 %v35
    %293 = vmatprep.subr.mxu0 %v38
    %294 = vmatpush1.msra.mxu0 %v37
    %295 = vmatprep.subr.mxu0 %v40
    %296 = vmatpush1.msra.mxu0 %v39
    %297 = vmatprep.subr.mxu0 %v42
    %298 = vmatpush1.msra.mxu0 %v41
    %299 = vmatprep.subr.mxu0 %v44
    %300 = vmatpush1.msra.mxu0 %v43
    %301 = vmatprep.subr.mxu0 %v46
    %302 = vmatpush1.msra.mxu0 %v45
    %303 = vmatprep.subr.mxu0 %v48
    %304 = vmatpush1.msra.mxu0 %v47
    %305 = vmatprep.subr.mxu0 %v50
    %306 = vmatpush1.msra.mxu0 %v49
    %307 = vmatprep.subr.mxu0 %v52
    %308 = vmatpush1.msra.mxu0 %v51
    %309 = vmatprep.subr.mxu0 %v54
    %310 = vmatpush1.msra.mxu0 %v53
    %311 = vmatprep.subr.mxu0 %v56
    %312 = vmatpush1.msra.mxu0 %v55
    %313 = vmatprep.subr.mxu0 %v58
    %314 = vmatpush1.msra.mxu0 %v57
    %315 = vmatprep.subr.mxu0 %v60
    %316 = vmatpush1.msra.mxu0 %v59
    %317 = vmatprep.subr.mxu0 %v62
    %318 = vmatpush1.msra.mxu0 %v61
    %319 = vmatprep.subr.mxu0 %v64
    %320 = vmatpush1.msra.mxu0 %v63
    %321 = vmatprep.subr.mxu0 %v66
    %322 = vmatpush1.msra.mxu0 %v65
    %323 = vmatprep.subr.mxu0 %v68
    %324 = vmatpush1.msra.mxu0 %v67
    %325 = vmatprep.subr.mxu0 %v70
    %326 = vmatpush1.msra.mxu0 %v69
    %327 = vmatprep.subr.mxu0 %v72
    %328 = vmatpush1.msra.mxu0 %v71
    %329 = vmatprep.subr.mxu0 %v74
    %330 = vmatpush1.msra.mxu0 %v73
    %331 = vmatprep.subr.mxu0 %v76
    %332 = vmatpush1.msra.mxu0 %v75
    %333 = vmatprep.subr.mxu0 %v78
    %334 = vmatpush1.msra.mxu0 %v77
    %335 = vmatprep.subr.mxu0 %v80
    %336 = vmatpush1.msra.mxu0 %v79
    %337 = vmatprep.subr.mxu0 %v82
    %338 = vmatpush1.msra.mxu0 %v81
    %339 = vmatprep.subr.mxu0 %v84
    %340 = vmatpush1.msra.mxu0 %v83
    %341 = vmatprep.subr.mxu0 %v86
    %342 = vmatpush1.msra.mxu0 %v85
    %343 = vmatprep.mubr.f32.mxu0 %v252
    %344 = vmatmul.mubr.f32.gmra.mrb[0].mxu0 %v244
    %v345 = vpop.f32.mrb[0].mxu0
    %v346 = vadd.f32 %v228, %v345
    %v347 = vpop.f32.mrb[0].mxu0
    %v348 = vadd.f32 %v232, %v347
    %349 = vdwg.mxu0
    %350 = vmatprep.subr.mxu0 %v88
    %351 = vmatpush1.msra.mxu0 %v87
    %352 = vmatprep.subr.mxu0 %v90
    %353 = vmatpush1.msra.mxu0 %v89
    %354 = vmatprep.subr.mxu0 %v92
    %355 = vmatpush1.msra.mxu0 %v91
    %356 = vmatprep.subr.mxu0 %v94
    %357 = vmatpush1.msra.mxu0 %v93
    %358 = vmatprep.subr.mxu0 %v96
    %359 = vmatpush1.msra.mxu0 %v95
    %360 = vmatprep.subr.mxu0 %v98
    %361 = vmatpush1.msra.mxu0 %v97
    %362 = vmatprep.subr.mxu0 %v100
    %363 = vmatpush1.msra.mxu0 %v99
    %364 = vmatprep.subr.mxu0 %v102
    %365 = vmatpush1.msra.mxu0 %v101
    %366 = vmatprep.subr.mxu0 %v104
    %367 = vmatpush1.msra.mxu0 %v103
    %368 = vmatprep.subr.mxu0 %v106
    %369 = vmatpush1.msra.mxu0 %v105
    %370 = vmatprep.subr.mxu0 %v108
    %371 = vmatpush1.msra.mxu0 %v107
    %372 = vmatprep.subr.mxu0 %v110
    %373 = vmatpush1.msra.mxu0 %v109
    %374 = vmatprep.subr.mxu0 %v112
    %375 = vmatpush1.msra.mxu0 %v111
    %376 = vmatprep.subr.mxu0 %v114
    %377 = vmatpush1.msra.mxu0 %v113
    %378 = vmatprep.subr.mxu0 %v116
    %379 = vmatpush1.msra.mxu0 %v115
    %380 = vmatprep.subr.mxu0 %v118
    %381 = vmatpush1.msra.mxu0 %v117
    %382 = vmatprep.subr.mxu0 %v120
    %383 = vmatpush1.msra.mxu0 %v119
    %384 = vmatprep.subr.mxu0 %v122
    %385 = vmatpush1.msra.mxu0 %v121
    %386 = vmatprep.subr.mxu0 %v124
    %387 = vmatpush1.msra.mxu0 %v123
    %388 = vmatprep.subr.mxu0 %v126
    %389 = vmatpush1.msra.mxu0 %v125
    %390 = vmatprep.subr.mxu0 %v128
    %391 = vmatpush1.msra.mxu0 %v127
    %392 = vmatprep.subr.mxu0 %v130
    %393 = vmatpush1.msra.mxu0 %v129
    %394 = vmatprep.subr.mxu0 %v132
    %395 = vmatpush1.msra.mxu0 %v131
    %396 = vmatprep.subr.mxu0 %v134
    %397 = vmatpush1.msra.mxu0 %v133
    %398 = vmatprep.subr.mxu0 %v136
    %399 = vmatpush1.msra.mxu0 %v135
    %400 = vmatprep.subr.mxu0 %v138
    %401 = vmatpush1.msra.mxu0 %v137
    %402 = vmatprep.subr.mxu0 %v140
    %403 = vmatpush1.msra.mxu0 %v139
    %404 = vmatprep.subr.mxu0 %v142
    %405 = vmatpush1.msra.mxu0 %v141
    %406 = vmatprep.subr.mxu0 %v144
    %407 = vmatpush1.msra.mxu0 %v143
    %408 = vmatprep.subr.mxu0 %v146
    %409 = vmatpush1.msra.mxu0 %v145
    %410 = vmatprep.subr.mxu0 %v148
    %411 = vmatpush1.msra.mxu0 %v147
    %412 = vmatprep.subr.mxu0 %v150
    %413 = vmatpush1.msra.mxu0 %v149
    %414 = vmatprep.mubr.f32.mxu0 %v253
    %415 = vmatmul.mubr.f32.gmra.mrb[0].mxu0 %v251
    %v416 = vpop.f32.mrb[0].mxu0
    %v417 = vadd.f32 %v346, %v416
    %v418 = vpop.f32.mrb[0].mxu0
    %v419 = vadd.f32 %v348, %v418
    %420 = vdwg.mxu0
    %421 = vmatprep.subr.mxu0 %v152
    %422 = vmatpush1.msra.mxu0 %v151
    %423 = vmatprep.subr.mxu0 %v154
    %424 = vmatpush1.msra.mxu0 %v153
    %425 = vmatprep.subr.mxu0 %v156
    %426 = vmatpush1.msra.mxu0 %v155
    %427 = vmatprep.subr.mxu0 %v158
    %428 = vmatpush1.msra.mxu0 %v157
    %429 = vmatprep.subr.mxu0 %v160
    %430 = vmatpush1.msra.mxu0 %v159
    %431 = vmatprep.subr.mxu0 %v162
    %432 = vmatpush1.msra.mxu0 %v161
    %433 = vmatprep.subr.mxu0 %v164
    %434 = vmatpush1.msra.mxu0 %v163
    %435 = vmatprep.subr.mxu0 %v166
    %436 = vmatpush1.msra.mxu0 %v165
    %437 = vmatprep.subr.mxu0 %v168
    %438 = vmatpush1.msra.mxu0 %v167
    %439 = vmatprep.subr.mxu0 %v170
    %440 = vmatpush1.msra.mxu0 %v169
    %441 = vmatprep.subr.mxu0 %v172
    %442 = vmatpush1.msra.mxu0 %v171
    %443 = vmatprep.subr.mxu0 %v174
    %444 = vmatpush1.msra.mxu0 %v173
    %445 = vmatprep.subr.mxu0 %v176
    %446 = vmatpush1.msra.mxu0 %v175
    %447 = vmatprep.subr.mxu0 %v178
    %448 = vmatpush1.msra.mxu0 %v177
    %449 = vmatprep.subr.mxu0 %v180
    %450 = vmatpush1.msra.mxu0 %v179
    %451 = vmatprep.subr.mxu0 %v182
    %452 = vmatpush1.msra.mxu0 %v181
    %453 = vmatprep.subr.mxu0 %v184
    %454 = vmatpush1.msra.mxu0 %v183
    %455 = vmatprep.subr.mxu0 %v186
    %456 = vmatpush1.msra.mxu0 %v185
    %457 = vmatprep.subr.mxu0 %v188
    %458 = vmatpush1.msra.mxu0 %v187
    %459 = vmatprep.subr.mxu0 %v190
    %460 = vmatpush1.msra.mxu0 %v189
    %461 = vmatprep.subr.mxu0 %v192
    %462 = vmatpush1.msra.mxu0 %v191
    %463 = vmatprep.subr.mxu0 %v194
    %464 = vmatpush1.msra.mxu0 %v193
    %465 = vmatprep.subr.mxu0 %v196
    %466 = vmatpush1.msra.mxu0 %v195
    %467 = vmatprep.subr.mxu0 %v198
    %468 = vmatpush1.msra.mxu0 %v197
    %469 = vmatprep.subr.mxu0 %v200
    %470 = vmatpush1.msra.mxu0 %v199
    %471 = vmatprep.subr.mxu0 %v202
    %472 = vmatpush1.msra.mxu0 %v201
    %473 = vmatprep.subr.mxu0 %v204
    %474 = vmatpush1.msra.mxu0 %v203
    %475 = vmatprep.subr.mxu0 %v206
    %476 = vmatpush1.msra.mxu0 %v205
    %477 = vmatprep.subr.mxu0 %v208
    %478 = vmatpush1.msra.mxu0 %v207
    %479 = vmatprep.subr.mxu0 %v210
    %480 = vmatpush1.msra.mxu0 %v209
    %481 = vmatprep.subr.mxu0 %v212
    %482 = vmatpush1.msra.mxu0 %v211
    %483 = vmatprep.subr.mxu0 %v214
    %484 = vmatpush1.msra.mxu0 %v213
    %485 = vmatprep.mubr.f32.mxu0 %v269
    %486 = vmatmul.mubr.f32.gmra.mrb[0].mxu0 %v261
    %v487 = vpop.f32.mrb[0].mxu0
    %v488 = vadd.f32 %v417, %v487
    %v489 = vpop.f32.mrb[0].mxu0
    %v490 = vadd.f32 %v419, %v489
    %491 = vdwg.mxu0
    %492 = vmatprep.subr.mxu0 %v216
    %493 = vmatpush1.msra.mxu0 %v215
    %494 = vmatprep.subr.mxu0 %v218
    %495 = vmatpush1.msra.mxu0 %v217
    %496 = vmatprep.subr.mxu0 %v220
    %497 = vmatpush1.msra.mxu0 %v219
    %498 = vmatprep.subr.mxu0 %v222
    %499 = vmatpush1.msra.mxu0 %v221
    %500 = vmatprep.subr.mxu0 0.0
    %501 = vmatpush1.msra.mxu0 0.0
    %502 = vmatprep.subr.mxu0 0.0
    %503 = vmatpush1.msra.mxu0 0.0
    %504 = vmatprep.subr.mxu0 0.0
    %505 = vmatpush1.msra.mxu0 0.0
    %506 = vmatprep.subr.mxu0 0.0
    %507 = vmatpush1.msra.mxu0 0.0
    %508 = vmatprep.subr.mxu0 0.0
    %509 = vmatpush1.msra.mxu0 0.0
    %510 = vmatprep.subr.mxu0 0.0
    %511 = vmatpush1.msra.mxu0 0.0
    %512 = vmatprep.subr.mxu0 0.0
    %513 = vmatpush1.msra.mxu0 0.0
    %514 = vmatprep.subr.mxu0 0.0
    %515 = vmatpush1.msra.mxu0 0.0
    %516 = vmatprep.subr.mxu0 0.0
    %517 = vmatpush1.msra.mxu0 0.0
    %518 = vmatprep.subr.mxu0 0.0
    %519 = vmatpush1.msra.mxu0 0.0
    %520 = vmatprep.subr.mxu0 0.0
    %521 = vmatpush1.msra.mxu0 0.0
    %522 = vmatprep.subr.mxu0 0.0
    %523 = vmatpush1.msra.mxu0 0.0
    %524 = vmatprep.subr.mxu0 0.0
    %525 = vmatpush1.msra.mxu0 0.0
    %526 = vmatprep.subr.mxu0 0.0
    %527 = vmatpush1.msra.mxu0 0.0
    %528 = vmatprep.subr.mxu0 0.0
    %529 = vmatpush1.msra.mxu0 0.0
    %530 = vmatprep.subr.mxu0 0.0
    %531 = vmatpush1.msra.mxu0 0.0
    %532 = vmatprep.subr.mxu0 0.0
    %533 = vmatpush1.msra.mxu0 0.0
    %534 = vmatprep.subr.mxu0 0.0
    %535 = vmatpush1.msra.mxu0 0.0
    %536 = vmatprep.subr.mxu0 0.0
    %537 = vmatpush1.msra.mxu0 0.0
    %538 = vmatprep.subr.mxu0 0.0
    %539 = vmatpush1.msra.mxu0 0.0
    %540 = vmatprep.subr.mxu0 0.0
    %541 = vmatpush1.msra.mxu0 0.0
    %542 = vmatprep.subr.mxu0 0.0
    %543 = vmatpush1.msra.mxu0 0.0
    %544 = vmatprep.subr.mxu0 0.0
    %545 = vmatpush1.msra.mxu0 0.0
    %546 = vmatprep.subr.mxu0 0.0
    %547 = vmatpush1.msra.mxu0 0.0
    %548 = vmatprep.subr.mxu0 0.0
    %549 = vmatpush1.msra.mxu0 0.0
    %550 = vmatprep.subr.mxu0 0.0
    %551 = vmatpush1.msra.mxu0 0.0
    %552 = vmatprep.subr.mxu0 0.0
    %553 = vmatpush1.msra.mxu0 0.0
    %554 = vmatprep.subr.mxu0 0.0
    %555 = vmatpush1.msra.mxu0 0.0
    %556 = vmatprep.mubr.f32.mxu0 0.0
    %557 = vmatmul.mubr.f32.gmra.mrb[0].mxu0 %v277
    %v558 = vpop.f32.mrb[0].mxu0
    %v559 = vadd.f32 %v488, %v558
    %v560 = vpop.f32.mrb[0].mxu0
    %v561 = vadd.f32 %v490, %v560
    %562 = vdwg.mxu0
    %v563 = vmax.f32 %v559, 0.0
    %v564 = vmax.f32 %v561, 0.0
    %v565 = vld [vmem:[%s3] sm:$0xff]
    %v566 = vld [vmem:[%s3 + $0x8] sm:$0xff]
    %v567 = vld [vmem:[%s3 + $0x10] sm:$0xff]
    %v568 = vld [vmem:[%s3 + $0x18] sm:$0xff]
    %v569 = vld [vmem:[%s3 + $0x20] sm:$0xff]
    %v570 = vld [vmem:[%s3 + $0x28] sm:$0xff]
    %v571 = vld [vmem:[%s3 + $0x30] sm:$0xff]
    %v572 = vld [vmem:[%s3 + $0x38] sm:$0xff]
    %v573 = vld [vmem:[%s3 + $0x40] sm:$0xff]
    %v574 = vld [vmem:[%s3 + $0x48] sm:$0xff]
    %v575 = vld [vmem:[%s3 + $0x50] sm:$0xff]
    %v576 = vld [vmem:[%s3 + $0x58] sm:$0xff]
    %v577 = vld [vmem:[%s3 + $0x60] sm:$0xff]
    %v578 = vld [vmem:[%s3 + $0x68] sm:$0xff]
    %v579 = vld [vmem:[%s3 + $0x70] sm:$0xff]
    %v580 = vld [vmem:[%s3 + $0x78] sm:$0xff]
    %v581 = vld [vmem:[%s3 + $0x80] sm:$0xff]
    %v582 = vld [vmem:[%s3 + $0x88] sm:$0xff]
    %v583 = vld [vmem:[%s3 + $0x90] sm:$0xff]
    %v584 = vld [vmem:[%s3 + $0x98] sm:$0xff]
    %v585 = vld [vmem:[%s3 + $0xa0] sm:$0xff]
    %v586 = vld [vmem:[%s3 + $0xa8] sm:$0xff]
    %v587 = vld [vmem:[%s3 + $0xb0] sm:$0xff]
    %v588 = vld [vmem:[%s3 + $0xb8] sm:$0xff]
    %v589 = vld [vmem:[%s3 + $0xc0] sm:$0xff]
    %v590 = vld [vmem:[%s3 + $0xc8] sm:$0xff]
    %v591 = vld [vmem:[%s3 + $0xd0] sm:$0xff]
    %v592 = vld [vmem:[%s3 + $0xd8] sm:$0xff]
    %v593 = vld [vmem:[%s3 + $0xe0] sm:$0xff]
    %v594 = vld [vmem:[%s3 + $0xe8] sm:$0xff]
    %v595 = vld [vmem:[%s3 + $0xf0] sm:$0xff]
    %v596 = vld [vmem:[%s3 + $0xf8] sm:$0xff]
    %v597 = vld [vmem:[%s4] sm:$0x1]
    %v599 = vlaneseq
    %v600 = vshrl.u32 %v599, 7
    %v601 = vsub.s32 0, %v600
    %v602 = vrot.slane %v597, %v601
    %604 = vmatprep.subr.mxu0 0.0
    %605 = vmatpush1.msra.mxu0 %v565
    %606 = vmatprep.subr.mxu0 0.0
    %607 = vmatpush1.msra.mxu0 %v566
    %608 = vmatprep.subr.mxu0 0.0
    %609 = vmatpush1.msra.mxu0 %v567
    %610 = vmatprep.subr.mxu0 0.0
    %611 = vmatpush1.msra.mxu0 %v568
    %612 = vmatprep.subr.mxu0 0.0
    %613 = vmatpush1.msra.mxu0 %v569
    %614 = vmatprep.subr.mxu0 0.0
    %615 = vmatpush1.msra.mxu0 %v570
    %616 = vmatprep.subr.mxu0 0.0
    %617 = vmatpush1.msra.mxu0 %v571
    %618 = vmatprep.subr.mxu0 0.0
    %619 = vmatpush1.msra.mxu0 %v572
    %620 = vmatprep.subr.mxu0 0.0
    %621 = vmatpush1.msra.mxu0 %v573
    %622 = vmatprep.subr.mxu0 0.0
    %623 = vmatpush1.msra.mxu0 %v574
    %624 = vmatprep.subr.mxu0 0.0
    %625 = vmatpush1.msra.mxu0 %v575
    %626 = vmatprep.subr.mxu0 0.0
    %627 = vmatpush1.msra.mxu0 %v576
    %628 = vmatprep.subr.mxu0 0.0
    %629 = vmatpush1.msra.mxu0 %v577
    %630 = vmatprep.subr.mxu0 0.0
    %631 = vmatpush1.msra.mxu0 %v578
    %632 = vmatprep.subr.mxu0 0.0
    %633 = vmatpush1.msra.mxu0 %v579
    %634 = vmatprep.subr.mxu0 0.0
    %635 = vmatpush1.msra.mxu0 %v580
    %636 = vmatprep.subr.mxu0 0.0
    %637 = vmatpush1.msra.mxu0 %v581
    %638 = vmatprep.subr.mxu0 0.0
    %639 = vmatpush1.msra.mxu0 %v582
    %640 = vmatprep.subr.mxu0 0.0
    %641 = vmatpush1.msra.mxu0 %v583
    %642 = vmatprep.subr.mxu0 0.0
    %643 = vmatpush1.msra.mxu0 %v584
    %644 = vmatprep.subr.mxu0 0.0
    %645 = vmatpush1.msra.mxu0 %v585
    %646 = vmatprep.subr.mxu0 0.0
    %647 = vmatpush1.msra.mxu0 %v586
    %648 = vmatprep.subr.mxu0 0.0
    %649 = vmatpush1.msra.mxu0 %v587
    %650 = vmatprep.subr.mxu0 0.0
    %651 = vmatpush1.msra.mxu0 %v588
    %652 = vmatprep.subr.mxu0 0.0
    %653 = vmatpush1.msra.mxu0 %v589
    %654 = vmatprep.subr.mxu0 0.0
    %655 = vmatpush1.msra.mxu0 %v590
    %656 = vmatprep.subr.mxu0 0.0
    %657 = vmatpush1.msra.mxu0 %v591
    %658 = vmatprep.subr.mxu0 0.0
    %659 = vmatpush1.msra.mxu0 %v592
    %660 = vmatprep.subr.mxu0 0.0
    %661 = vmatpush1.msra.mxu0 %v593
    %662 = vmatprep.subr.mxu0 0.0
    %663 = vmatpush1.msra.mxu0 %v594
    %664 = vmatprep.subr.mxu0 0.0
    %665 = vmatpush1.msra.mxu0 %v595
    %666 = vmatprep.subr.mxu0 0.0
    %667 = vmatpush1.msra.mxu0 %v596
    %668 = vmatprep.mubr.f32.mxu0 %v564
    %669 = vmatmul.mubr.f32.gmra.mrb[0].mxu0 %v563
    %v670 = vpop.f32.mrb[0].mxu0
    %v671 = vadd.f32 %v602, %v670
    %v672 = vpop.f32.mrb[0].mxu0
    %673 = vdwg.mxu0
    %vm674 = vcmask 74752
    %v675 = vsel %vm674, %v671, -inf
    %676 = vmax.xlane.f32.xlu0 %v675
    %v677 = vpop.xlane.xlu0 %676
    %v678 = vsub.f32 %v671, %v677
    %v679 = vmul.f32 %v678, 1.442695
    %v680 = vpow.pop %v679
    %v681 = vsel %vm674, %v680, 0.0
    %682 = vadd.xlane.f32.xlu0 %v681
    %v683 = vpop.xlane.xlu0 %682
    %v684 = vlog2.pop %v683
    %v685 = vmul.f32 %v684, 0.6931472
    %v686 = vsub.f32 %v678, %v685
    %687 = vst.msk [vmem:[#allocation2] sm:$0x3] %vm674, %v686
    // Predicated region
    $region22: #{net_forward.5} parent=1 // pred_check
      _
    $region23: #{net_forward.5} parent=1 // pred_check_branch
      %689 = sbr.rel (0) target = $region25
    $region24: #{net_forward.5} parent=1 // pred_region
      %s691 = ssub.s32 32, 32
      %692 = vsyncadd [#allocation3], %s691
      %s694 = sshll.u32 [#allocation2], 4
      %s695 = int_to_ptr.vmem [resolvable:$true] %s694
      %697 = dma.vmem_to_hbm [thread:$0]  %s695, 32, %s5, [#allocation3]
    $region25: #{net_forward.5} parent=1 // pred_fallthru
      _
    // Predicated region
    $region26: #{net_forward.5} parent=1 // pred_check
      _
    $region27: #{net_forward.5} parent=1 // pred_check_branch
      %699 = sbr.rel (0) target = $region29
    $region28: #{net_forward.5} parent=1 // pred_region
      %700 = dma.done [#allocation3], 32
    $region29: #{net_forward.5} parent=1 // pred_fallthru
      _
    %701 = vsyncpa [#allocation3], 1

</llo_original>
